<compile_context>
chip_gen: v6e
topology: v6e:2x2x1
jax: 0.10.0
libtpu: 0.0.40
codegen_flags: <defaults>
</compile_context>

<pallas_src>
import functools

import jax
import jax.numpy as jnp
from jax import lax
from jax.experimental import pallas as pl
from jax.experimental.pallas import tpu as pltpu


def _round_up(x, m):
    return (x + m - 1) // m * m


def _se_kernel(x_ref, w1t_ref, b1_ref, w2t_ref, b2_ref, out_ref, acc_ref,
               *, inv_hw, hw, thw, mask_spatial):
    # x_ref:   (TN, C, THW) native dtype (channels on sublanes, spatial on lanes)
    # w1t_ref: (C, Crp) f32    b1_ref: (1, Crp) f32
    # w2t_ref: (Crp, C) f32    b2_ref: (1, C)   f32
    # out_ref: (TN, C)  output dtype
    # acc_ref: (TN, C)  f32 scratch -- running spatial sum for this batch tile
    k = pl.program_id(1)

    @pl.when(k == 0)
    def _():
        acc_ref[...] = jnp.zeros_like(acc_ref)

    # Partial spatial sum for this tile.  The lane reduction (XLU/VPU) and the
    # tiny relayout of the (TN, C) partial are hidden under the next tile's
    # DMA -- the kernel is HBM-bandwidth bound.
    x = x_ref[...].astype(jnp.float32)
    if mask_spatial:
        # Last spatial tile can run past H*W: zero the out-of-bounds lanes so
        # they contribute nothing to the sum (trace-time gated VPU select).
        lane = lax.broadcasted_iota(jnp.int32, x.shape, dimension=2)
        x = jnp.where(k * thw + lane < hw, x, 0.0)
    acc_ref[...] += jnp.sum(x, axis=-1)

    @pl.when(k == pl.num_programs(1) - 1)
    def _():
        pooled = acc_ref[...] * inv_hw                      # mean over H*W
        h = jnp.dot(pooled, w1t_ref[...],
                    preferred_element_type=jnp.float32) + b1_ref[...]
        h = jnp.maximum(h, 0.0)                             # ReLU
        z = jnp.dot(h, w2t_ref[...],
                    preferred_element_type=jnp.float32) + b2_ref[...]
        out_ref[...] = jax.nn.sigmoid(z).astype(out_ref.dtype)


def se_block_forward(x, w1, b1, w2, b2, *, x_block_bytes=4 * 1024 * 1024):
    """SEBlock forward.

    x: (N, C, H, W). w1: (Cr, C), b1: (Cr,), w2: (C, Cr), b2: (C,)
    (PyTorch nn.Linear layouts).  Returns (N, C, 1, 1): sigmoid(fc2(relu(
    fc1(mean_{H,W}(x))))), matching the reference module.
    """
    N, C, H, W = x.shape
    Cr = w1.shape[0]
    HW = H * W
    itemsize = jnp.dtype(x.dtype).itemsize

    # ---- tiling ----------------------------------------------------------
    # Batch tile (leading block dim: no alignment constraint).
    TN = max(1, min(N, 8))
    while TN > 1 and TN * C * min(HW, 128) * itemsize > x_block_bytes:
        TN //= 2
    # Spatial tile: take the full extent if it fits in the per-block budget
    # (a full array dim is legal at any size); otherwise a 128-multiple chunk.
    if TN * C * HW * itemsize <= x_block_bytes:
        THW = HW
    else:
        THW = max(128, (x_block_bytes // (TN * C * itemsize)) // 128 * 128)
    grid_i = pl.cdiv(N, TN)
    grid_k = pl.cdiv(HW, THW)
    mask_spatial = (grid_k * THW) != HW

    # ---- operands --------------------------------------------------------
    # Native layout, free reshape: channels on sublanes, spatial on lanes.
    x3 = x.reshape(N, C, HW)

    f32 = jnp.float32
    Crp = _round_up(max(Cr, 1), 128)  # lane-dense bottleneck for fc1 output
    w1t = jnp.zeros((C, Crp), f32).at[:, :Cr].set(jnp.asarray(w1, f32).T)
    b1p = jnp.zeros((1, Crp), f32).at[:, :Cr].set(jnp.asarray(b1, f32)[None, :])
    w2t = jnp.zeros((Crp, C), f32).at[:Cr, :].set(jnp.asarray(w2, f32).T)
    b2p = jnp.asarray(b2, f32).reshape(1, C)

    kernel = functools.partial(
        _se_kernel, inv_hw=1.0 / HW, hw=HW, thw=THW, mask_spatial=mask_spatial)

    flops = N * C * HW + 2 * N * C * Cr * 2
    bytes_accessed = (x3.size * itemsize
                      + 4 * (w1t.size + b1p.size + w2t.size + b2p.size)
                      + grid_i * TN * C * itemsize)

    out = pl.pallas_call(
        kernel,
        out_shape=jax.ShapeDtypeStruct((grid_i * TN, C), x.dtype),
        grid_spec=pltpu.PrefetchScalarGridSpec(
            num_scalar_prefetch=0,
            grid=(grid_i, grid_k),
            in_specs=[
                pl.BlockSpec((TN, C, THW), lambda i, k: (i, 0, k)),  # x tile
                pl.BlockSpec((C, Crp), lambda i, k: (0, 0)),         # fc1 W^T
                pl.BlockSpec((1, Crp), lambda i, k: (0, 0)),         # fc1 b
                pl.BlockSpec((Crp, C), lambda i, k: (0, 0)),         # fc2 W^T
                pl.BlockSpec((1, C), lambda i, k: (0, 0)),           # fc2 b
            ],
            out_specs=pl.BlockSpec((TN, C), lambda i, k: (i, 0)),
            scratch_shapes=[pltpu.VMEM((TN, C), jnp.float32)],
        ),
        compiler_params=pltpu.CompilerParams(
            dimension_semantics=("parallel", "arbitrary"),
        ),
        cost_estimate=pl.CostEstimate(
            flops=flops,
            transcendentals=N * C,
            bytes_accessed=bytes_accessed,
        ),
    )(x3, w1t, b1p, w2t, b2p)

    return out[:N].reshape(N, C, 1, 1)


if __name__ == "__main__":
    # Module config: SEBlock(in_channels=328) with default r=164 -> hidden = 2.
    N, C, H, W = 2, 328, 8, 8
    r = 164
    Cr = C // r  # 2

    key = jax.random.PRNGKey(0)
    kx, k1, k2, k3, k4 = jax.random.split(key, 5)

    x = jax.random.normal(kx, (N, C, H, W), dtype=jnp.float32)

    # PyTorch nn.Linear parameter shapes: (out_features, in_features) + (out_features,).
    w1 = jax.random.normal(k1, (Cr, C), dtype=jnp.float32) * 0.05   # fc1 weight
    b1 = jax.random.normal(k2, (Cr,), dtype=jnp.float32) * 0.05     # fc1 bias
    w2 = jax.random.normal(k3, (C, Cr), dtype=jnp.float32) * 0.05   # fc2 weight
    b2 = jax.random.normal(k4, (C,), dtype=jnp.float32) * 0.05      # fc2 bias

    y = se_block_forward(x, w1, b1, w2, b2)
    jax.block_until_ready(y)

    # Pure-JAX reference of the same math.
    pooled_ref = jnp.mean(x, axis=(2, 3))
    h_ref = jnp.maximum(pooled_ref @ w1.T + b1, 0.0)
    y_ref = jax.nn.sigmoid(h_ref @ w2.T + b2).reshape(N, C, 1, 1)
    assert y.shape == (N, C, 1, 1)
    assert jnp.allclose(y, y_ref, atol=1e-5, rtol=1e-5)

    print("KERNEL_OK")
</pallas_src>

<mosaic_0001>
module attributes {stable_mosaic.version = 11 : i64} {
  func.func @_se_kernel(%arg0: i32, %arg1: i32, %arg2: memref<2x328x64xf32, #tpu.memory_space<vmem>>, %arg3: memref<328x128xf32, #tpu.memory_space<vmem>>, %arg4: memref<1x128xf32, #tpu.memory_space<vmem>>, %arg5: memref<128x328xf32, #tpu.memory_space<vmem>>, %arg6: memref<1x328xf32, #tpu.memory_space<vmem>>, %arg7: memref<2x328xf32, #tpu.memory_space<vmem>>, %arg8: memref<2x328xf32, #tpu.memory_space<vmem>>) attributes {dimension_semantics = [#tpu.dimension_semantics<parallel>, #tpu.dimension_semantics<arbitrary>], iteration_bounds = array<i64: 1, 1>, scalar_prefetch = 0 : i64, scratch_operands = 1 : i64, tpu.core_type = #tpu.core_type<tc>, window_params = [{transform_indices = @transform_0, window_bounds = array<i64: 2, 328, 64>}, {pipeline_mode = #tpu.pipeline_mode<synchronous>, transform_indices = @transform_1, window_bounds = array<i64: 328, 128>}, {pipeline_mode = #tpu.pipeline_mode<synchronous>, transform_indices = @transform_2, window_bounds = array<i64: 1, 128>}, {pipeline_mode = #tpu.pipeline_mode<synchronous>, transform_indices = @transform_3, window_bounds = array<i64: 128, 328>}, {pipeline_mode = #tpu.pipeline_mode<synchronous>, transform_indices = @transform_4, window_bounds = array<i64: 1, 328>}, {transform_indices = @transform_5, window_bounds = array<i64: 2, 328>}]} {
    %c0_i32 = arith.constant 0 : i32
    %0 = arith.cmpi eq, %arg1, %c0_i32 : i32
    %1 = arith.extui %0 : i1 to i32
    %c0_i32_0 = arith.constant 0 : i32
    %2 = arith.cmpi ne, %1, %c0_i32_0 : i32
    scf.if %2 {
      %cst_9 = arith.constant 0.000000e+00 : f32
      %11 = vector.broadcast %cst_9 : f32 to vector<2x328xf32>
      %c0_10 = arith.constant 0 : index
      %c0_11 = arith.constant 0 : index
      %12 = vector.load %arg8[%c0_10, %c0_11] : memref<2x328xf32, #tpu.memory_space<vmem>>, vector<2x328xf32>
      tpu.vector_store %arg8[%c0_10, %c0_11], %11 {strides = array<i32>} : memref<2x328xf32, #tpu.memory_space<vmem>>, vector<2x328xf32>,
    } else {
    }
    %c0 = arith.constant 0 : index
    %c0_1 = arith.constant 0 : index
    %c0_2 = arith.constant 0 : index
    %3 = vector.load %arg2[%c0, %c0_1, %c0_2] : memref<2x328x64xf32, #tpu.memory_space<vmem>>, vector<2x328x64xf32>
    %c0_3 = arith.constant 0 : index
    %c0_4 = arith.constant 0 : index
    %4 = vector.load %arg8[%c0_3, %c0_4] : memref<2x328xf32, #tpu.memory_space<vmem>>, vector<2x328xf32>
    %cst = arith.constant dense<0.000000e+00> : vector<2x328xf32>
    %5 = vector.multi_reduction <add>, %3, %cst [2] : vector<2x328x64xf32> to vector<2x328xf32>
    %6 = arith.addf %4, %5 : vector<2x328xf32>
    %c0_5 = arith.constant 0 : index
    %c0_6 = arith.constant 0 : index
    %7 = vector.load %arg8[%c0_5, %c0_6] : memref<2x328xf32, #tpu.memory_space<vmem>>, vector<2x328xf32>
    tpu.vector_store %arg8[%c0_5, %c0_6], %6 {strides = array<i32>} : memref<2x328xf32, #tpu.memory_space<vmem>>, vector<2x328xf32>,
    %c0_i32_7 = arith.constant 0 : i32
    %8 = arith.cmpi eq, %arg1, %c0_i32_7 : i32
    %9 = arith.extui %8 : i1 to i32
    %c0_i32_8 = arith.constant 0 : i32
    %10 = arith.cmpi ne, %9, %c0_i32_8 : i32
    scf.if %10 {
      %c0_9 = arith.constant 0 : index
      %c0_10 = arith.constant 0 : index
      %11 = vector.load %arg8[%c0_9, %c0_10] : memref<2x328xf32, #tpu.memory_space<vmem>>, vector<2x328xf32>
      %cst_11 = arith.constant 1.562500e-02 : f32
      %12 = vector.broadcast %cst_11 : f32 to vector<2x328xf32>
      %13 = arith.mulf %11, %12 : vector<2x328xf32>
      %c0_12 = arith.constant 0 : index
      %c0_13 = arith.constant 0 : index
      %14 = vector.load %arg3[%c0_12, %c0_13] : memref<328x128xf32, #tpu.memory_space<vmem>>, vector<328x128xf32>
      %cst_14 = arith.constant dense<0.000000e+00> : vector<2x128xf32>
      %15 = tpu.matmul %13, %14, %cst_14 {dimension_numbers = #tpu.dot_dimension_numbers<[1], [0], [0], [1], [0, 0, 1, 1], [], []>} : vector<2x328xf32>, vector<328x128xf32>, vector<2x128xf32> -> vector<2x128xf32>
      %c0_15 = arith.constant 0 : index
      %c0_16 = arith.constant 0 : index
      %16 = vector.load %arg4[%c0_15, %c0_16] : memref<1x128xf32, #tpu.memory_space<vmem>>, vector<1x128xf32>
      %17 = vector.broadcast %16 : vector<1x128xf32> to vector<2x128xf32>
      %18 = arith.addf %15, %17 : vector<2x128xf32>
      %cst_17 = arith.constant 0.000000e+00 : f32
      %19 = vector.broadcast %cst_17 : f32 to vector<2x128xf32>
      %20 = arith.maximumf %18, %19 : vector<2x128xf32>
      %c0_18 = arith.constant 0 : index
      %c0_19 = arith.constant 0 : index
      %21 = vector.load %arg5[%c0_18, %c0_19] : memref<128x328xf32, #tpu.memory_space<vmem>>, vector<128x328xf32>
      %cst_20 = arith.constant dense<0.000000e+00> : vector<2x328xf32>
      %22 = tpu.matmul %20, %21, %cst_20 {dimension_numbers = #tpu.dot_dimension_numbers<[1], [0], [0], [1], [0, 0, 1, 1], [], []>} : vector<2x128xf32>, vector<128x328xf32>, vector<2x328xf32> -> vector<2x328xf32>
      %c0_21 = arith.constant 0 : index
      %c0_22 = arith.constant 0 : index
      %23 = vector.load %arg6[%c0_21, %c0_22] : memref<1x328xf32, #tpu.memory_space<vmem>>, vector<1x328xf32>
      %24 = vector.broadcast %23 : vector<1x328xf32> to vector<2x328xf32>
      %25 = arith.addf %22, %24 : vector<2x328xf32>
      %26 = arith.negf %25 : vector<2x328xf32>
      %27 = math.exp %26 : vector<2x328xf32>
      %cst_23 = arith.constant 1.000000e+00 : f32
      %28 = vector.broadcast %cst_23 : f32 to vector<2x328xf32>
      %29 = arith.addf %28, %27 : vector<2x328xf32>
      %30 = arith.divf %28, %29 : vector<2x328xf32>
      %c0_24 = arith.constant 0 : index
      %c0_25 = arith.constant 0 : index
      %31 = vector.load %arg7[%c0_24, %c0_25] : memref<2x328xf32, #tpu.memory_space<vmem>>, vector<2x328xf32>
      tpu.vector_store %arg7[%c0_24, %c0_25], %30 {strides = array<i32>} : memref<2x328xf32, #tpu.memory_space<vmem>>, vector<2x328xf32>,
    } else {
    }
    return
  }
  func.func @transform_0(%arg0: i32, %arg1: i32) -> (i32, i32, i32) {
    %c0_i32 = arith.constant 0 : i32
    %c0_i32_0 = arith.constant 0 : i32
    return %arg0, %c0_i32, %arg1 : i32, i32, i32
  }
  func.func @transform_1(%arg0: i32, %arg1: i32) -> (i32, i32) {
    %c0_i32 = arith.constant 0 : i32
    %c0_i32_0 = arith.constant 0 : i32
    %c0_i32_1 = arith.constant 0 : i32
    return %c0_i32, %c0_i32_0 : i32, i32
  }
  func.func @transform_2(%arg0: i32, %arg1: i32) -> (i32, i32) {
    %c0_i32 = arith.constant 0 : i32
    %c0_i32_0 = arith.constant 0 : i32
    %c0_i32_1 = arith.constant 0 : i32
    return %c0_i32, %c0_i32_0 : i32, i32
  }
  func.func @transform_3(%arg0: i32, %arg1: i32) -> (i32, i32) {
    %c0_i32 = arith.constant 0 : i32
    %c0_i32_0 = arith.constant 0 : i32
    %c0_i32_1 = arith.constant 0 : i32
    return %c0_i32, %c0_i32_0 : i32, i32
  }
  func.func @transform_4(%arg0: i32, %arg1: i32) -> (i32, i32) {
    %c0_i32 = arith.constant 0 : i32
    %c0_i32_0 = arith.constant 0 : i32
    %c0_i32_1 = arith.constant 0 : i32
    return %c0_i32, %c0_i32_0 : i32, i32
  }
  func.func @transform_5(%arg0: i32, %arg1: i32) -> (i32, i32) {
    %c0_i32 = arith.constant 0 : i32
    %c0_i32_0 = arith.constant 0 : i32
    return %arg0, %c0_i32 : i32, i32
  }
}

</mosaic_0001>

<llo_original>
// kernel: tpu_custom_call.1
$region0: #{tpu_custom_call.1}
  #allocation0 [shape = 'u32[]', space=smem, size = 0x4, offset = 0x4, fixed_abs, tag = 'smem constant byte address 0x4 - core index']
  #allocation1 [shape = 'u32[144,128]{1,0:T(1,128)}', space=vmem, size = 0x12000, scoped, tag = 'internal scratch']
  #allocation2 [shape = 'f32[2,328]{1,0:T(2,128)}', space=vmem, size = 0xc00, scoped, tag = 'scratch operand']
  %s0 = inlined_call_operand.vmem [shape: f32[2,328,64], index: 0, kind: input, shape index: {}]
  %s1 = inlined_call_operand.vmem [shape: f32[328,128], index: 1, kind: input, shape index: {}]
  %s2 = inlined_call_operand.vmem [shape: f32[1,128], index: 2, kind: input, shape index: {}]
  %s3 = inlined_call_operand.vmem [shape: f32[128,328], index: 3, kind: input, shape index: {}]
  %s4 = inlined_call_operand.vmem [shape: f32[1,328], index: 4, kind: input, shape index: {}]
  %s5 = inlined_call_operand.hbm [shape: f32[2,328], index: 5, kind: output, shape index: {}]
  %s6 = sld [smem:[#allocation0]]
  $region38: #{tpu_custom_call.1} parent=0
    _
  %s8 = ssub.s32 1, %s6
  %s9 = scalar_select 0, %s8, %s6
  $region1: #{tpu_custom_call.1} parent=0
    #allocation3 [shape = 'u8[3072]{0}', space=vmem, size = 0xc00, scoped, tag = 'output window, operand 0, single buffered']
    #allocation4 [shape = 's32[1]{0}', space=sflag, size = 0x4, scoped, tag = 'scoped memory for tpu_custom_call.1']
    %10 = vsyncpa [#allocation4], 0
    // Predicated region
    $region2: #{tpu_custom_call.1} parent=1 // pred_check
      _
    $region3: #{tpu_custom_call.1} parent=1 // pred_check_branch
      %12 = sbr.rel (0) target = $region5
    $region4: #{tpu_custom_call.1} parent=1 // pred_region
      _
    $region5: #{tpu_custom_call.1} parent=1 // pred_fallthru
      _
    // Predicated region
    $region6: #{tpu_custom_call.1} parent=1 // pred_check
      _
    $region7: #{tpu_custom_call.1} parent=1 // pred_check_branch
      %14 = sbr.rel (0) target = $region9
    $region8: #{tpu_custom_call.1} parent=1 // pred_region
      _
    $region9: #{tpu_custom_call.1} parent=1 // pred_fallthru
      _
    // Predicated region
    $region10: #{tpu_custom_call.1} parent=1 // pred_check
      _
    $region11: #{tpu_custom_call.1} parent=1 // pred_check_branch
      %16 = sbr.rel (0) target = $region13
    $region12: #{tpu_custom_call.1} parent=1 // pred_region
      _
    $region13: #{tpu_custom_call.1} parent=1 // pred_fallthru
      _
    // Predicated region
    $region14: #{tpu_custom_call.1} parent=1 // pred_check
      _
    $region15: #{tpu_custom_call.1} parent=1 // pred_check_branch
      %18 = sbr.rel (0) target = $region17
    $region16: #{tpu_custom_call.1} parent=1 // pred_region
      _
    $region17: #{tpu_custom_call.1} parent=1 // pred_fallthru
      _
    // Predicated region
    $region18: #{tpu_custom_call.1} parent=1 // pred_check
      _
    $region19: #{tpu_custom_call.1} parent=1 // pred_check_branch
      %20 = sbr.rel (0) target = $region21
    $region20: #{tpu_custom_call.1} parent=1 // pred_region
      _
    $region21: #{tpu_custom_call.1} parent=1 // pred_fallthru
      _
    %p21 = scmp.eq.s32.totalorder 0, 0
    // Predicated region
    $region22: #{tpu_custom_call.1} parent=1 // pred_check
      %p22 = pneg %p21
    $region23: #{tpu_custom_call.1} parent=1 // pred_check_branch
      %24 = sbr.rel (%p22) target = $region25
    $region24: #{tpu_custom_call.1} parent=1 // pred_region
      %vm25 = vcmask 1041408
      %vm26 = vcmask 1043458
      %vm27 = vmor %vm26, %vm25
      %vm28 = vcmask 586756
      %vm29 = vmor %vm28, %vm27
      %30 = vst.msk [vmem:[#allocation2] sm:$0x3f] %vm29, 0.0
    $region25: #{tpu_custom_call.1} parent=1 // pred_fallthru
      _
    %v31 = vld [vmem:[%s0] sm:$0xff]
    %v32 = vld [vmem:[%s0 + $0x8] sm:$0xff]
    %v33 = vld [vmem:[%s0 + $0x10] sm:$0xff]
    %v34 = vld [vmem:[%s0 + $0x18] sm:$0xff]
    %v35 = vld [vmem:[%s0 + $0x20] sm:$0xff]
    %v36 = vld [vmem:[%s0 + $0x28] sm:$0xff]
    %v37 = vld [vmem:[%s0 + $0x30] sm:$0xff]
    %v38 = vld [vmem:[%s0 + $0x38] sm:$0xff]
    %v39 = vld [vmem:[%s0 + $0x40] sm:$0xff]
    %v40 = vld [vmem:[%s0 + $0x48] sm:$0xff]
    %v41 = vld [vmem:[%s0 + $0x50] sm:$0xff]
    %v42 = vld [vmem:[%s0 + $0x58] sm:$0xff]
    %v43 = vld [vmem:[%s0 + $0x60] sm:$0xff]
    %v44 = vld [vmem:[%s0 + $0x68] sm:$0xff]
    %v45 = vld [vmem:[%s0 + $0x70] sm:$0xff]
    %v46 = vld [vmem:[%s0 + $0x78] sm:$0xff]
    %v47 = vld [vmem:[%s0 + $0x80] sm:$0xff]
    %v48 = vld [vmem:[%s0 + $0x88] sm:$0xff]
    %v49 = vld [vmem:[%s0 + $0x90] sm:$0xff]
    %v50 = vld [vmem:[%s0 + $0x98] sm:$0xff]
    %v51 = vld [vmem:[%s0 + $0xa0] sm:$0xff]
    %v52 = vld [vmem:[%s0 + $0xa8] sm:$0xff]
    %v53 = vld [vmem:[%s0 + $0xb0] sm:$0xff]
    %v54 = vld [vmem:[%s0 + $0xb8] sm:$0xff]
    %v55 = vld [vmem:[%s0 + $0xc0] sm:$0xff]
    %v56 = vld [vmem:[%s0 + $0xc8] sm:$0xff]
    %v57 = vld [vmem:[%s0 + $0xd0] sm:$0xff]
    %v58 = vld [vmem:[%s0 + $0xd8] sm:$0xff]
    %v59 = vld [vmem:[%s0 + $0xe0] sm:$0xff]
    %v60 = vld [vmem:[%s0 + $0xe8] sm:$0xff]
    %v61 = vld [vmem:[%s0 + $0xf0] sm:$0xff]
    %v62 = vld [vmem:[%s0 + $0xf8] sm:$0xff]
    %v63 = vld [vmem:[%s0 + $0x100] sm:$0xff]
    %v64 = vld [vmem:[%s0 + $0x108] sm:$0xff]
    %v65 = vld [vmem:[%s0 + $0x110] sm:$0xff]
    %v66 = vld [vmem:[%s0 + $0x118] sm:$0xff]
    %v67 = vld [vmem:[%s0 + $0x120] sm:$0xff]
    %v68 = vld [vmem:[%s0 + $0x128] sm:$0xff]
    %v69 = vld [vmem:[%s0 + $0x130] sm:$0xff]
    %v70 = vld [vmem:[%s0 + $0x138] sm:$0xff]
    %v71 = vld [vmem:[%s0 + $0x140] sm:$0xff]
    %v72 = vld [vmem:[%s0 + $0x148] sm:$0xff]
    %v73 = vld [vmem:[%s0 + $0x150] sm:$0xff]
    %v74 = vld [vmem:[%s0 + $0x158] sm:$0xff]
    %v75 = vld [vmem:[%s0 + $0x160] sm:$0xff]
    %v76 = vld [vmem:[%s0 + $0x168] sm:$0xff]
    %v77 = vld [vmem:[%s0 + $0x170] sm:$0xff]
    %v78 = vld [vmem:[%s0 + $0x178] sm:$0xff]
    %v79 = vld [vmem:[%s0 + $0x180] sm:$0xff]
    %v80 = vld [vmem:[%s0 + $0x188] sm:$0xff]
    %v81 = vld [vmem:[%s0 + $0x190] sm:$0xff]
    %v82 = vld [vmem:[%s0 + $0x198] sm:$0xff]
    %v83 = vld [vmem:[%s0 + $0x1a0] sm:$0xff]
    %v84 = vld [vmem:[%s0 + $0x1a8] sm:$0xff]
    %v85 = vld [vmem:[%s0 + $0x1b0] sm:$0xff]
    %v86 = vld [vmem:[%s0 + $0x1b8] sm:$0xff]
    %v87 = vld [vmem:[%s0 + $0x1c0] sm:$0xff]
    %v88 = vld [vmem:[%s0 + $0x1c8] sm:$0xff]
    %v89 = vld [vmem:[%s0 + $0x1d0] sm:$0xff]
    %v90 = vld [vmem:[%s0 + $0x1d8] sm:$0xff]
    %v91 = vld [vmem:[%s0 + $0x1e0] sm:$0xff]
    %v92 = vld [vmem:[%s0 + $0x1e8] sm:$0xff]
    %v93 = vld [vmem:[%s0 + $0x1f0] sm:$0xff]
    %v94 = vld [vmem:[%s0 + $0x1f8] sm:$0xff]
    %v95 = vld [vmem:[%s0 + $0x200] sm:$0xff]
    %v96 = vld [vmem:[%s0 + $0x208] sm:$0xff]
    %v97 = vld [vmem:[%s0 + $0x210] sm:$0xff]
    %v98 = vld [vmem:[%s0 + $0x218] sm:$0xff]
    %v99 = vld [vmem:[%s0 + $0x220] sm:$0xff]
    %v100 = vld [vmem:[%s0 + $0x228] sm:$0xff]
    %v101 = vld [vmem:[%s0 + $0x230] sm:$0xff]
    %v102 = vld [vmem:[%s0 + $0x238] sm:$0xff]
    %v103 = vld [vmem:[%s0 + $0x240] sm:$0xff]
    %v104 = vld [vmem:[%s0 + $0x248] sm:$0xff]
    %v105 = vld [vmem:[%s0 + $0x250] sm:$0xff]
    %v106 = vld [vmem:[%s0 + $0x258] sm:$0xff]
    %v107 = vld [vmem:[%s0 + $0x260] sm:$0xff]
    %v108 = vld [vmem:[%s0 + $0x268] sm:$0xff]
    %v109 = vld [vmem:[%s0 + $0x270] sm:$0xff]
    %v110 = vld [vmem:[%s0 + $0x278] sm:$0xff]
    %v111 = vld [vmem:[%s0 + $0x280] sm:$0xff]
    %v112 = vld [vmem:[%s0 + $0x288] sm:$0xff]
    %v113 = vld [vmem:[#allocation2] sm:$0x3f]
    %vm114 = vcmask 523264
    %v115 = vsel %vm114, %v31, 0.0
    %116 = vadd.xlane.f32.xlu0 %v115
    %v117 = vpop.xlane.xlu0 %116
    %v118 = vsel %vm114, %v32, 0.0
    %119 = vadd.xlane.f32.xlu0 %v118
    %v120 = vpop.xlane.xlu0 %119
    %v121 = vsel %vm114, %v33, 0.0
    %122 = vadd.xlane.f32.xlu0 %v121
    %v123 = vpop.xlane.xlu0 %122
    %v124 = vsel %vm114, %v34, 0.0
    %125 = vadd.xlane.f32.xlu0 %v124
    %v126 = vpop.xlane.xlu0 %125
    %v127 = vsel %vm114, %v35, 0.0
    %128 = vadd.xlane.f32.xlu0 %v127
    %v129 = vpop.xlane.xlu0 %128
    %v130 = vsel %vm114, %v36, 0.0
    %131 = vadd.xlane.f32.xlu0 %v130
    %v132 = vpop.xlane.xlu0 %131
    %v133 = vsel %vm114, %v37, 0.0
    %134 = vadd.xlane.f32.xlu0 %v133
    %v135 = vpop.xlane.xlu0 %134
    %v136 = vsel %vm114, %v38, 0.0
    %137 = vadd.xlane.f32.xlu0 %v136
    %v138 = vpop.xlane.xlu0 %137
    %v139 = vsel %vm114, %v39, 0.0
    %140 = vadd.xlane.f32.xlu0 %v139
    %v141 = vpop.xlane.xlu0 %140
    %v142 = vsel %vm114, %v40, 0.0
    %143 = vadd.xlane.f32.xlu0 %v142
    %v144 = vpop.xlane.xlu0 %143
    %v145 = vsel %vm114, %v41, 0.0
    %146 = vadd.xlane.f32.xlu0 %v145
    %v147 = vpop.xlane.xlu0 %146
    %v148 = vsel %vm114, %v42, 0.0
    %149 = vadd.xlane.f32.xlu0 %v148
    %v150 = vpop.xlane.xlu0 %149
    %v151 = vsel %vm114, %v43, 0.0
    %152 = vadd.xlane.f32.xlu0 %v151
    %v153 = vpop.xlane.xlu0 %152
    %v154 = vsel %vm114, %v44, 0.0
    %155 = vadd.xlane.f32.xlu0 %v154
    %v156 = vpop.xlane.xlu0 %155
    %v157 = vsel %vm114, %v45, 0.0
    %158 = vadd.xlane.f32.xlu0 %v157
    %v159 = vpop.xlane.xlu0 %158
    %v160 = vsel %vm114, %v46, 0.0
    %161 = vadd.xlane.f32.xlu0 %v160
    %v162 = vpop.xlane.xlu0 %161
    %v163 = vsel %vm114, %v47, 0.0
    %164 = vadd.xlane.f32.xlu0 %v163
    %v165 = vpop.xlane.xlu0 %164
    %v166 = vsel %vm114, %v48, 0.0
    %167 = vadd.xlane.f32.xlu0 %v166
    %v168 = vpop.xlane.xlu0 %167
    %v169 = vsel %vm114, %v49, 0.0
    %170 = vadd.xlane.f32.xlu0 %v169
    %v171 = vpop.xlane.xlu0 %170
    %v172 = vsel %vm114, %v50, 0.0
    %173 = vadd.xlane.f32.xlu0 %v172
    %v174 = vpop.xlane.xlu0 %173
    %v175 = vsel %vm114, %v51, 0.0
    %176 = vadd.xlane.f32.xlu0 %v175
    %v177 = vpop.xlane.xlu0 %176
    %v178 = vsel %vm114, %v52, 0.0
    %179 = vadd.xlane.f32.xlu0 %v178
    %v180 = vpop.xlane.xlu0 %179
    %v181 = vsel %vm114, %v53, 0.0
    %182 = vadd.xlane.f32.xlu0 %v181
    %v183 = vpop.xlane.xlu0 %182
    %v184 = vsel %vm114, %v54, 0.0
    %185 = vadd.xlane.f32.xlu0 %v184
    %v186 = vpop.xlane.xlu0 %185
    %v187 = vsel %vm114, %v55, 0.0
    %188 = vadd.xlane.f32.xlu0 %v187
    %v189 = vpop.xlane.xlu0 %188
    %v190 = vsel %vm114, %v56, 0.0
    %191 = vadd.xlane.f32.xlu0 %v190
    %v192 = vpop.xlane.xlu0 %191
    %v193 = vsel %vm114, %v57, 0.0
    %194 = vadd.xlane.f32.xlu0 %v193
    %v195 = vpop.xlane.xlu0 %194
    %v196 = vsel %vm114, %v58, 0.0
    %197 = vadd.xlane.f32.xlu0 %v196
    %v198 = vpop.xlane.xlu0 %197
    %v199 = vsel %vm114, %v59, 0.0
    %200 = vadd.xlane.f32.xlu0 %v199
    %v201 = vpop.xlane.xlu0 %200
    %v202 = vsel %vm114, %v60, 0.0
    %203 = vadd.xlane.f32.xlu0 %v202
    %v204 = vpop.xlane.xlu0 %203
    %v205 = vsel %vm114, %v61, 0.0
    %206 = vadd.xlane.f32.xlu0 %v205
    %v207 = vpop.xlane.xlu0 %206
    %v208 = vsel %vm114, %v62, 0.0
    %209 = vadd.xlane.f32.xlu0 %v208
    %v210 = vpop.xlane.xlu0 %209
    %v211 = vsel %vm114, %v63, 0.0
    %212 = vadd.xlane.f32.xlu0 %v211
    %v213 = vpop.xlane.xlu0 %212
    %v214 = vsel %vm114, %v64, 0.0
    %215 = vadd.xlane.f32.xlu0 %v214
    %v216 = vpop.xlane.xlu0 %215
    %v217 = vsel %vm114, %v65, 0.0
    %218 = vadd.xlane.f32.xlu0 %v217
    %v219 = vpop.xlane.xlu0 %218
    %v220 = vsel %vm114, %v66, 0.0
    %221 = vadd.xlane.f32.xlu0 %v220
    %v222 = vpop.xlane.xlu0 %221
    %v223 = vsel %vm114, %v67, 0.0
    %224 = vadd.xlane.f32.xlu0 %v223
    %v225 = vpop.xlane.xlu0 %224
    %v226 = vsel %vm114, %v68, 0.0
    %227 = vadd.xlane.f32.xlu0 %v226
    %v228 = vpop.xlane.xlu0 %227
    %v229 = vsel %vm114, %v69, 0.0
    %230 = vadd.xlane.f32.xlu0 %v229
    %v231 = vpop.xlane.xlu0 %230
    %v232 = vsel %vm114, %v70, 0.0
    %233 = vadd.xlane.f32.xlu0 %v232
    %v234 = vpop.xlane.xlu0 %233
    %v235 = vsel %vm114, %v71, 0.0
    %236 = vadd.xlane.f32.xlu0 %v235
    %v237 = vpop.xlane.xlu0 %236
    %v238 = vsel %vm114, %v72, 0.0
    %239 = vadd.xlane.f32.xlu0 %v238
    %v240 = vpop.xlane.xlu0 %239
    %v241 = vsel %vm114, %v73, 0.0
    %242 = vadd.xlane.f32.xlu0 %v241
    %v243 = vpop.xlane.xlu0 %242
    %v244 = vsel %vm114, %v74, 0.0
    %245 = vadd.xlane.f32.xlu0 %v244
    %v246 = vpop.xlane.xlu0 %245
    %v247 = vsel %vm114, %v75, 0.0
    %248 = vadd.xlane.f32.xlu0 %v247
    %v249 = vpop.xlane.xlu0 %248
    %v250 = vsel %vm114, %v76, 0.0
    %251 = vadd.xlane.f32.xlu0 %v250
    %v252 = vpop.xlane.xlu0 %251
    %v253 = vsel %vm114, %v77, 0.0
    %254 = vadd.xlane.f32.xlu0 %v253
    %v255 = vpop.xlane.xlu0 %254
    %v256 = vsel %vm114, %v78, 0.0
    %257 = vadd.xlane.f32.xlu0 %v256
    %v258 = vpop.xlane.xlu0 %257
    %v259 = vsel %vm114, %v79, 0.0
    %260 = vadd.xlane.f32.xlu0 %v259
    %v261 = vpop.xlane.xlu0 %260
    %v262 = vsel %vm114, %v80, 0.0
    %263 = vadd.xlane.f32.xlu0 %v262
    %v264 = vpop.xlane.xlu0 %263
    %v265 = vsel %vm114, %v81, 0.0
    %266 = vadd.xlane.f32.xlu0 %v265
    %v267 = vpop.xlane.xlu0 %266
    %v268 = vsel %vm114, %v82, 0.0
    %269 = vadd.xlane.f32.xlu0 %v268
    %v270 = vpop.xlane.xlu0 %269
    %v271 = vsel %vm114, %v83, 0.0
    %272 = vadd.xlane.f32.xlu0 %v271
    %v273 = vpop.xlane.xlu0 %272
    %v274 = vsel %vm114, %v84, 0.0
    %275 = vadd.xlane.f32.xlu0 %v274
    %v276 = vpop.xlane.xlu0 %275
    %v277 = vsel %vm114, %v85, 0.0
    %278 = vadd.xlane.f32.xlu0 %v277
    %v279 = vpop.xlane.xlu0 %278
    %v280 = vsel %vm114, %v86, 0.0
    %281 = vadd.xlane.f32.xlu0 %v280
    %v282 = vpop.xlane.xlu0 %281
    %v283 = vsel %vm114, %v87, 0.0
    %284 = vadd.xlane.f32.xlu0 %v283
    %v285 = vpop.xlane.xlu0 %284
    %v286 = vsel %vm114, %v88, 0.0
    %287 = vadd.xlane.f32.xlu0 %v286
    %v288 = vpop.xlane.xlu0 %287
    %v289 = vsel %vm114, %v89, 0.0
    %290 = vadd.xlane.f32.xlu0 %v289
    %v291 = vpop.xlane.xlu0 %290
    %v292 = vsel %vm114, %v90, 0.0
    %293 = vadd.xlane.f32.xlu0 %v292
    %v294 = vpop.xlane.xlu0 %293
    %v295 = vsel %vm114, %v91, 0.0
    %296 = vadd.xlane.f32.xlu0 %v295
    %v297 = vpop.xlane.xlu0 %296
    %v298 = vsel %vm114, %v92, 0.0
    %299 = vadd.xlane.f32.xlu0 %v298
    %v300 = vpop.xlane.xlu0 %299
    %v301 = vsel %vm114, %v93, 0.0
    %302 = vadd.xlane.f32.xlu0 %v301
    %v303 = vpop.xlane.xlu0 %302
    %v304 = vsel %vm114, %v94, 0.0
    %305 = vadd.xlane.f32.xlu0 %v304
    %v306 = vpop.xlane.xlu0 %305
    %v307 = vsel %vm114, %v95, 0.0
    %308 = vadd.xlane.f32.xlu0 %v307
    %v309 = vpop.xlane.xlu0 %308
    %v310 = vsel %vm114, %v96, 0.0
    %311 = vadd.xlane.f32.xlu0 %v310
    %v312 = vpop.xlane.xlu0 %311
    %v313 = vsel %vm114, %v97, 0.0
    %314 = vadd.xlane.f32.xlu0 %v313
    %v315 = vpop.xlane.xlu0 %314
    %v316 = vsel %vm114, %v98, 0.0
    %317 = vadd.xlane.f32.xlu0 %v316
    %v318 = vpop.xlane.xlu0 %317
    %v319 = vsel %vm114, %v99, 0.0
    %320 = vadd.xlane.f32.xlu0 %v319
    %v321 = vpop.xlane.xlu0 %320
    %v322 = vsel %vm114, %v100, 0.0
    %323 = vadd.xlane.f32.xlu0 %v322
    %v324 = vpop.xlane.xlu0 %323
    %v325 = vsel %vm114, %v101, 0.0
    %326 = vadd.xlane.f32.xlu0 %v325
    %v327 = vpop.xlane.xlu0 %326
    %v328 = vsel %vm114, %v102, 0.0
    %329 = vadd.xlane.f32.xlu0 %v328
    %v330 = vpop.xlane.xlu0 %329
    %v331 = vsel %vm114, %v103, 0.0
    %332 = vadd.xlane.f32.xlu0 %v331
    %v333 = vpop.xlane.xlu0 %332
    %v334 = vsel %vm114, %v104, 0.0
    %335 = vadd.xlane.f32.xlu0 %v334
    %v336 = vpop.xlane.xlu0 %335
    %v337 = vsel %vm114, %v105, 0.0
    %338 = vadd.xlane.f32.xlu0 %v337
    %v339 = vpop.xlane.xlu0 %338
    %v340 = vsel %vm114, %v106, 0.0
    %341 = vadd.xlane.f32.xlu0 %v340
    %v342 = vpop.xlane.xlu0 %341
    %v343 = vsel %vm114, %v107, 0.0
    %344 = vadd.xlane.f32.xlu0 %v343
    %v345 = vpop.xlane.xlu0 %344
    %v346 = vsel %vm114, %v108, 0.0
    %347 = vadd.xlane.f32.xlu0 %v346
    %v348 = vpop.xlane.xlu0 %347
    %v349 = vsel %vm114, %v109, 0.0
    %350 = vadd.xlane.f32.xlu0 %v349
    %v351 = vpop.xlane.xlu0 %350
    %v352 = vsel %vm114, %v110, 0.0
    %353 = vadd.xlane.f32.xlu0 %v352
    %v354 = vpop.xlane.xlu0 %353
    %v355 = vsel %vm114, %v111, 0.0
    %356 = vadd.xlane.f32.xlu0 %v355
    %v357 = vpop.xlane.xlu0 %356
    %v358 = vsel %vm114, %v112, 0.0
    %359 = vadd.xlane.f32.xlu0 %v358
    %v360 = vpop.xlane.xlu0 %359
    %v444 = vunpack.c.l.s4 269488144
    %v445 = vunpack.c.0.s8 %v444
    %v446 = vlaneseq
    %v447 = vshrl.u32 %v446, 7
    %v448 = vsub.s32 %v445, %v447
    %v449 = vrot.slane %v117, %v448
    %v451 = vunpack.c.l.s4 842150450
    %v452 = vunpack.c.0.s8 %v451
    %v453 = vlaneseq
    %v454 = vshrl.u32 %v453, 7
    %v455 = vsub.s32 %v452, %v454
    %v456 = vrot.slane %v117, %v455
    %v458 = vunpack.c.l.s4 1414812756
    %v459 = vunpack.c.0.s8 %v458
    %v460 = vlaneseq
    %v461 = vshrl.u32 %v460, 7
    %v462 = vsub.s32 %v459, %v461
    %v463 = vrot.slane %v117, %v462
    %v465 = vunpack.c.l.s4 1987475062
    %v466 = vunpack.c.0.s8 %v465
    %v467 = vlaneseq
    %v468 = vshrl.u32 %v467, 7
    %v469 = vsub.s32 %v466, %v468
    %v470 = vrot.slane %v117, %v469
    %v472 = vunpack.c.l.s4 269488144
    %v473 = vunpack.c.0.s8 %v472
    %v474 = vlaneseq
    %v475 = vshrl.u32 %v474, 7
    %v476 = vsub.s32 %v473, %v475
    %v477 = vrot.slane %v120, %v476
    %v479 = vunpack.c.l.s4 842150450
    %v480 = vunpack.c.0.s8 %v479
    %v481 = vlaneseq
    %v482 = vshrl.u32 %v481, 7
    %v483 = vsub.s32 %v480, %v482
    %v484 = vrot.slane %v120, %v483
    %v486 = vunpack.c.l.s4 1414812756
    %v487 = vunpack.c.0.s8 %v486
    %v488 = vlaneseq
    %v489 = vshrl.u32 %v488, 7
    %v490 = vsub.s32 %v487, %v489
    %v491 = vrot.slane %v120, %v490
    %v493 = vunpack.c.l.s4 1987475062
    %v494 = vunpack.c.0.s8 %v493
    %v495 = vlaneseq
    %v496 = vshrl.u32 %v495, 7
    %v497 = vsub.s32 %v494, %v496
    %v498 = vrot.slane %v120, %v497
    %v500 = vunpack.c.l.s4 269488144
    %v501 = vunpack.c.0.s8 %v500
    %v502 = vlaneseq
    %v503 = vshrl.u32 %v502, 7
    %v504 = vsub.s32 %v501, %v503
    %v505 = vrot.slane %v123, %v504
    %v507 = vunpack.c.l.s4 842150450
    %v508 = vunpack.c.0.s8 %v507
    %v509 = vlaneseq
    %v510 = vshrl.u32 %v509, 7
    %v511 = vsub.s32 %v508, %v510
    %v512 = vrot.slane %v123, %v511
    %v514 = vunpack.c.l.s4 1414812756
    %v515 = vunpack.c.0.s8 %v514
    %v516 = vlaneseq
    %v517 = vshrl.u32 %v516, 7
    %v518 = vsub.s32 %v515, %v517
    %v519 = vrot.slane %v123, %v518
    %v521 = vunpack.c.l.s4 1987475062
    %v522 = vunpack.c.0.s8 %v521
    %v523 = vlaneseq
    %v524 = vshrl.u32 %v523, 7
    %v525 = vsub.s32 %v522, %v524
    %v526 = vrot.slane %v123, %v525
    %v528 = vunpack.c.l.s4 269488144
    %v529 = vunpack.c.0.s8 %v528
    %v530 = vlaneseq
    %v531 = vshrl.u32 %v530, 7
    %v532 = vsub.s32 %v529, %v531
    %v533 = vrot.slane %v126, %v532
    %v535 = vunpack.c.l.s4 842150450
    %v536 = vunpack.c.0.s8 %v535
    %v537 = vlaneseq
    %v538 = vshrl.u32 %v537, 7
    %v539 = vsub.s32 %v536, %v538
    %v540 = vrot.slane %v126, %v539
    %v542 = vunpack.c.l.s4 1414812756
    %v543 = vunpack.c.0.s8 %v542
    %v544 = vlaneseq
    %v545 = vshrl.u32 %v544, 7
    %v546 = vsub.s32 %v543, %v545
    %v547 = vrot.slane %v126, %v546
    %v549 = vunpack.c.l.s4 1987475062
    %v550 = vunpack.c.0.s8 %v549
    %v551 = vlaneseq
    %v552 = vshrl.u32 %v551, 7
    %v553 = vsub.s32 %v550, %v552
    %v554 = vrot.slane %v126, %v553
    %v556 = vunpack.c.l.s4 269488144
    %v557 = vunpack.c.0.s8 %v556
    %v558 = vlaneseq
    %v559 = vshrl.u32 %v558, 7
    %v560 = vsub.s32 %v557, %v559
    %v561 = vrot.slane %v129, %v560
    %v563 = vunpack.c.l.s4 842150450
    %v564 = vunpack.c.0.s8 %v563
    %v565 = vlaneseq
    %v566 = vshrl.u32 %v565, 7
    %v567 = vsub.s32 %v564, %v566
    %v568 = vrot.slane %v129, %v567
    %v570 = vunpack.c.l.s4 1414812756
    %v571 = vunpack.c.0.s8 %v570
    %v572 = vlaneseq
    %v573 = vshrl.u32 %v572, 7
    %v574 = vsub.s32 %v571, %v573
    %v575 = vrot.slane %v129, %v574
    %v577 = vunpack.c.l.s4 1987475062
    %v578 = vunpack.c.0.s8 %v577
    %v579 = vlaneseq
    %v580 = vshrl.u32 %v579, 7
    %v581 = vsub.s32 %v578, %v580
    %v582 = vrot.slane %v129, %v581
    %v584 = vunpack.c.l.s4 269488144
    %v585 = vunpack.c.0.s8 %v584
    %v586 = vlaneseq
    %v587 = vshrl.u32 %v586, 7
    %v588 = vsub.s32 %v585, %v587
    %v589 = vrot.slane %v132, %v588
    %v591 = vunpack.c.l.s4 842150450
    %v592 = vunpack.c.0.s8 %v591
    %v593 = vlaneseq
    %v594 = vshrl.u32 %v593, 7
    %v595 = vsub.s32 %v592, %v594
    %v596 = vrot.slane %v132, %v595
    %v598 = vunpack.c.l.s4 1414812756
    %v599 = vunpack.c.0.s8 %v598
    %v600 = vlaneseq
    %v601 = vshrl.u32 %v600, 7
    %v602 = vsub.s32 %v599, %v601
    %v603 = vrot.slane %v132, %v602
    %v605 = vunpack.c.l.s4 1987475062
    %v606 = vunpack.c.0.s8 %v605
    %v607 = vlaneseq
    %v608 = vshrl.u32 %v607, 7
    %v609 = vsub.s32 %v606, %v608
    %v610 = vrot.slane %v132, %v609
    %v612 = vunpack.c.l.s4 269488144
    %v613 = vunpack.c.0.s8 %v612
    %v614 = vlaneseq
    %v615 = vshrl.u32 %v614, 7
    %v616 = vsub.s32 %v613, %v615
    %v617 = vrot.slane %v135, %v616
    %v619 = vunpack.c.l.s4 842150450
    %v620 = vunpack.c.0.s8 %v619
    %v621 = vlaneseq
    %v622 = vshrl.u32 %v621, 7
    %v623 = vsub.s32 %v620, %v622
    %v624 = vrot.slane %v135, %v623
    %v626 = vunpack.c.l.s4 1414812756
    %v627 = vunpack.c.0.s8 %v626
    %v628 = vlaneseq
    %v629 = vshrl.u32 %v628, 7
    %v630 = vsub.s32 %v627, %v629
    %v631 = vrot.slane %v135, %v630
    %v633 = vunpack.c.l.s4 1987475062
    %v634 = vunpack.c.0.s8 %v633
    %v635 = vlaneseq
    %v636 = vshrl.u32 %v635, 7
    %v637 = vsub.s32 %v634, %v636
    %v638 = vrot.slane %v135, %v637
    %v640 = vunpack.c.l.s4 269488144
    %v641 = vunpack.c.0.s8 %v640
    %v642 = vlaneseq
    %v643 = vshrl.u32 %v642, 7
    %v644 = vsub.s32 %v641, %v643
    %v645 = vrot.slane %v138, %v644
    %v647 = vunpack.c.l.s4 842150450
    %v648 = vunpack.c.0.s8 %v647
    %v649 = vlaneseq
    %v650 = vshrl.u32 %v649, 7
    %v651 = vsub.s32 %v648, %v650
    %v652 = vrot.slane %v138, %v651
    %v654 = vunpack.c.l.s4 1414812756
    %v655 = vunpack.c.0.s8 %v654
    %v656 = vlaneseq
    %v657 = vshrl.u32 %v656, 7
    %v658 = vsub.s32 %v655, %v657
    %v659 = vrot.slane %v138, %v658
    %v661 = vunpack.c.l.s4 1987475062
    %v662 = vunpack.c.0.s8 %v661
    %v663 = vlaneseq
    %v664 = vshrl.u32 %v663, 7
    %v665 = vsub.s32 %v662, %v664
    %v666 = vrot.slane %v138, %v665
    %v668 = vunpack.c.l.s4 269488144
    %v669 = vunpack.c.0.s8 %v668
    %v670 = vlaneseq
    %v671 = vshrl.u32 %v670, 7
    %v672 = vsub.s32 %v669, %v671
    %v673 = vrot.slane %v141, %v672
    %v675 = vunpack.c.l.s4 842150450
    %v676 = vunpack.c.0.s8 %v675
    %v677 = vlaneseq
    %v678 = vshrl.u32 %v677, 7
    %v679 = vsub.s32 %v676, %v678
    %v680 = vrot.slane %v141, %v679
    %v682 = vunpack.c.l.s4 1414812756
    %v683 = vunpack.c.0.s8 %v682
    %v684 = vlaneseq
    %v685 = vshrl.u32 %v684, 7
    %v686 = vsub.s32 %v683, %v685
    %v687 = vrot.slane %v141, %v686
    %v689 = vunpack.c.l.s4 1987475062
    %v690 = vunpack.c.0.s8 %v689
    %v691 = vlaneseq
    %v692 = vshrl.u32 %v691, 7
    %v693 = vsub.s32 %v690, %v692
    %v694 = vrot.slane %v141, %v693
    %v696 = vunpack.c.l.s4 269488144
    %v697 = vunpack.c.0.s8 %v696
    %v698 = vlaneseq
    %v699 = vshrl.u32 %v698, 7
    %v700 = vsub.s32 %v697, %v699
    %v701 = vrot.slane %v144, %v700
    %v703 = vunpack.c.l.s4 842150450
    %v704 = vunpack.c.0.s8 %v703
    %v705 = vlaneseq
    %v706 = vshrl.u32 %v705, 7
    %v707 = vsub.s32 %v704, %v706
    %v708 = vrot.slane %v144, %v707
    %v710 = vunpack.c.l.s4 1414812756
    %v711 = vunpack.c.0.s8 %v710
    %v712 = vlaneseq
    %v713 = vshrl.u32 %v712, 7
    %v714 = vsub.s32 %v711, %v713
    %v715 = vrot.slane %v144, %v714
    %v717 = vunpack.c.l.s4 1987475062
    %v718 = vunpack.c.0.s8 %v717
    %v719 = vlaneseq
    %v720 = vshrl.u32 %v719, 7
    %v721 = vsub.s32 %v718, %v720
    %v722 = vrot.slane %v144, %v721
    %v724 = vunpack.c.l.s4 269488144
    %v725 = vunpack.c.0.s8 %v724
    %v726 = vlaneseq
    %v727 = vshrl.u32 %v726, 7
    %v728 = vsub.s32 %v725, %v727
    %v729 = vrot.slane %v147, %v728
    %v731 = vunpack.c.l.s4 842150450
    %v732 = vunpack.c.0.s8 %v731
    %v733 = vlaneseq
    %v734 = vshrl.u32 %v733, 7
    %v735 = vsub.s32 %v732, %v734
    %v736 = vrot.slane %v147, %v735
    %v738 = vunpack.c.l.s4 1414812756
    %v739 = vunpack.c.0.s8 %v738
    %v740 = vlaneseq
    %v741 = vshrl.u32 %v740, 7
    %v742 = vsub.s32 %v739, %v741
    %v743 = vrot.slane %v147, %v742
    %v745 = vunpack.c.l.s4 1987475062
    %v746 = vunpack.c.0.s8 %v745
    %v747 = vlaneseq
    %v748 = vshrl.u32 %v747, 7
    %v749 = vsub.s32 %v746, %v748
    %v750 = vrot.slane %v147, %v749
    %v752 = vunpack.c.l.s4 269488144
    %v753 = vunpack.c.0.s8 %v752
    %v754 = vlaneseq
    %v755 = vshrl.u32 %v754, 7
    %v756 = vsub.s32 %v753, %v755
    %v757 = vrot.slane %v150, %v756
    %v759 = vunpack.c.l.s4 842150450
    %v760 = vunpack.c.0.s8 %v759
    %v761 = vlaneseq
    %v762 = vshrl.u32 %v761, 7
    %v763 = vsub.s32 %v760, %v762
    %v764 = vrot.slane %v150, %v763
    %v766 = vunpack.c.l.s4 1414812756
    %v767 = vunpack.c.0.s8 %v766
    %v768 = vlaneseq
    %v769 = vshrl.u32 %v768, 7
    %v770 = vsub.s32 %v767, %v769
    %v771 = vrot.slane %v150, %v770
    %v773 = vunpack.c.l.s4 1987475062
    %v774 = vunpack.c.0.s8 %v773
    %v775 = vlaneseq
    %v776 = vshrl.u32 %v775, 7
    %v777 = vsub.s32 %v774, %v776
    %v778 = vrot.slane %v150, %v777
    %v780 = vunpack.c.l.s4 269488144
    %v781 = vunpack.c.0.s8 %v780
    %v782 = vlaneseq
    %v783 = vshrl.u32 %v782, 7
    %v784 = vsub.s32 %v781, %v783
    %v785 = vrot.slane %v153, %v784
    %v787 = vunpack.c.l.s4 842150450
    %v788 = vunpack.c.0.s8 %v787
    %v789 = vlaneseq
    %v790 = vshrl.u32 %v789, 7
    %v791 = vsub.s32 %v788, %v790
    %v792 = vrot.slane %v153, %v791
    %v794 = vunpack.c.l.s4 1414812756
    %v795 = vunpack.c.0.s8 %v794
    %v796 = vlaneseq
    %v797 = vshrl.u32 %v796, 7
    %v798 = vsub.s32 %v795, %v797
    %v799 = vrot.slane %v153, %v798
    %v801 = vunpack.c.l.s4 1987475062
    %v802 = vunpack.c.0.s8 %v801
    %v803 = vlaneseq
    %v804 = vshrl.u32 %v803, 7
    %v805 = vsub.s32 %v802, %v804
    %v806 = vrot.slane %v153, %v805
    %v808 = vunpack.c.l.s4 269488144
    %v809 = vunpack.c.0.s8 %v808
    %v810 = vlaneseq
    %v811 = vshrl.u32 %v810, 7
    %v812 = vsub.s32 %v809, %v811
    %v813 = vrot.slane %v156, %v812
    %v815 = vunpack.c.l.s4 842150450
    %v816 = vunpack.c.0.s8 %v815
    %v817 = vlaneseq
    %v818 = vshrl.u32 %v817, 7
    %v819 = vsub.s32 %v816, %v818
    %v820 = vrot.slane %v156, %v819
    %v822 = vunpack.c.l.s4 1414812756
    %v823 = vunpack.c.0.s8 %v822
    %v824 = vlaneseq
    %v825 = vshrl.u32 %v824, 7
    %v826 = vsub.s32 %v823, %v825
    %v827 = vrot.slane %v156, %v826
    %v829 = vunpack.c.l.s4 1987475062
    %v830 = vunpack.c.0.s8 %v829
    %v831 = vlaneseq
    %v832 = vshrl.u32 %v831, 7
    %v833 = vsub.s32 %v830, %v832
    %v834 = vrot.slane %v156, %v833
    %v836 = vunpack.c.l.s4 269488144
    %v837 = vunpack.c.0.s8 %v836
    %v838 = vlaneseq
    %v839 = vshrl.u32 %v838, 7
    %v840 = vsub.s32 %v837, %v839
    %v841 = vrot.slane %v159, %v840
    %v843 = vunpack.c.l.s4 842150450
    %v844 = vunpack.c.0.s8 %v843
    %v845 = vlaneseq
    %v846 = vshrl.u32 %v845, 7
    %v847 = vsub.s32 %v844, %v846
    %v848 = vrot.slane %v159, %v847
    %v850 = vunpack.c.l.s4 1414812756
    %v851 = vunpack.c.0.s8 %v850
    %v852 = vlaneseq
    %v853 = vshrl.u32 %v852, 7
    %v854 = vsub.s32 %v851, %v853
    %v855 = vrot.slane %v159, %v854
    %v857 = vunpack.c.l.s4 1987475062
    %v858 = vunpack.c.0.s8 %v857
    %v859 = vlaneseq
    %v860 = vshrl.u32 %v859, 7
    %v861 = vsub.s32 %v858, %v860
    %v862 = vrot.slane %v159, %v861
    %v864 = vunpack.c.l.s4 269488144
    %v865 = vunpack.c.0.s8 %v864
    %v866 = vlaneseq
    %v867 = vshrl.u32 %v866, 7
    %v868 = vsub.s32 %v865, %v867
    %v869 = vrot.slane %v162, %v868
    %v871 = vunpack.c.l.s4 842150450
    %v872 = vunpack.c.0.s8 %v871
    %v873 = vlaneseq
    %v874 = vshrl.u32 %v873, 7
    %v875 = vsub.s32 %v872, %v874
    %v876 = vrot.slane %v162, %v875
    %v878 = vunpack.c.l.s4 1414812756
    %v879 = vunpack.c.0.s8 %v878
    %v880 = vlaneseq
    %v881 = vshrl.u32 %v880, 7
    %v882 = vsub.s32 %v879, %v881
    %v883 = vrot.slane %v162, %v882
    %v885 = vunpack.c.l.s4 1987475062
    %v886 = vunpack.c.0.s8 %v885
    %v887 = vlaneseq
    %v888 = vshrl.u32 %v887, 7
    %v889 = vsub.s32 %v886, %v888
    %v890 = vrot.slane %v162, %v889
    %v892 = vunpack.c.l.s4 269488144
    %v893 = vunpack.c.0.s8 %v892
    %v894 = vlaneseq
    %v895 = vshrl.u32 %v894, 7
    %v896 = vsub.s32 %v893, %v895
    %v897 = vrot.slane %v165, %v896
    %v899 = vunpack.c.l.s4 842150450
    %v900 = vunpack.c.0.s8 %v899
    %v901 = vlaneseq
    %v902 = vshrl.u32 %v901, 7
    %v903 = vsub.s32 %v900, %v902
    %v904 = vrot.slane %v165, %v903
    %v906 = vunpack.c.l.s4 1414812756
    %v907 = vunpack.c.0.s8 %v906
    %v908 = vlaneseq
    %v909 = vshrl.u32 %v908, 7
    %v910 = vsub.s32 %v907, %v909
    %v911 = vrot.slane %v165, %v910
    %v913 = vunpack.c.l.s4 1987475062
    %v914 = vunpack.c.0.s8 %v913
    %v915 = vlaneseq
    %v916 = vshrl.u32 %v915, 7
    %v917 = vsub.s32 %v914, %v916
    %v918 = vrot.slane %v165, %v917
    %v920 = vunpack.c.l.s4 269488144
    %v921 = vunpack.c.0.s8 %v920
    %v922 = vlaneseq
    %v923 = vshrl.u32 %v922, 7
    %v924 = vsub.s32 %v921, %v923
    %v925 = vrot.slane %v168, %v924
    %v927 = vunpack.c.l.s4 842150450
    %v928 = vunpack.c.0.s8 %v927
    %v929 = vlaneseq
    %v930 = vshrl.u32 %v929, 7
    %v931 = vsub.s32 %v928, %v930
    %v932 = vrot.slane %v168, %v931
    %v934 = vunpack.c.l.s4 1414812756
    %v935 = vunpack.c.0.s8 %v934
    %v936 = vlaneseq
    %v937 = vshrl.u32 %v936, 7
    %v938 = vsub.s32 %v935, %v937
    %v939 = vrot.slane %v168, %v938
    %v941 = vunpack.c.l.s4 1987475062
    %v942 = vunpack.c.0.s8 %v941
    %v943 = vlaneseq
    %v944 = vshrl.u32 %v943, 7
    %v945 = vsub.s32 %v942, %v944
    %v946 = vrot.slane %v168, %v945
    %v948 = vunpack.c.l.s4 269488144
    %v949 = vunpack.c.0.s8 %v948
    %v950 = vlaneseq
    %v951 = vshrl.u32 %v950, 7
    %v952 = vsub.s32 %v949, %v951
    %v953 = vrot.slane %v171, %v952
    %v955 = vunpack.c.l.s4 842150450
    %v956 = vunpack.c.0.s8 %v955
    %v957 = vlaneseq
    %v958 = vshrl.u32 %v957, 7
    %v959 = vsub.s32 %v956, %v958
    %v960 = vrot.slane %v171, %v959
    %v962 = vunpack.c.l.s4 1414812756
    %v963 = vunpack.c.0.s8 %v962
    %v964 = vlaneseq
    %v965 = vshrl.u32 %v964, 7
    %v966 = vsub.s32 %v963, %v965
    %v967 = vrot.slane %v171, %v966
    %v969 = vunpack.c.l.s4 1987475062
    %v970 = vunpack.c.0.s8 %v969
    %v971 = vlaneseq
    %v972 = vshrl.u32 %v971, 7
    %v973 = vsub.s32 %v970, %v972
    %v974 = vrot.slane %v171, %v973
    %v976 = vunpack.c.l.s4 269488144
    %v977 = vunpack.c.0.s8 %v976
    %v978 = vlaneseq
    %v979 = vshrl.u32 %v978, 7
    %v980 = vsub.s32 %v977, %v979
    %v981 = vrot.slane %v174, %v980
    %v983 = vunpack.c.l.s4 842150450
    %v984 = vunpack.c.0.s8 %v983
    %v985 = vlaneseq
    %v986 = vshrl.u32 %v985, 7
    %v987 = vsub.s32 %v984, %v986
    %v988 = vrot.slane %v174, %v987
    %v990 = vunpack.c.l.s4 1414812756
    %v991 = vunpack.c.0.s8 %v990
    %v992 = vlaneseq
    %v993 = vshrl.u32 %v992, 7
    %v994 = vsub.s32 %v991, %v993
    %v995 = vrot.slane %v174, %v994
    %v997 = vunpack.c.l.s4 1987475062
    %v998 = vunpack.c.0.s8 %v997
    %v999 = vlaneseq
    %v1000 = vshrl.u32 %v999, 7
    %v1001 = vsub.s32 %v998, %v1000
    %v1002 = vrot.slane %v174, %v1001
    %v1004 = vunpack.c.l.s4 269488144
    %v1005 = vunpack.c.0.s8 %v1004
    %v1006 = vlaneseq
    %v1007 = vshrl.u32 %v1006, 7
    %v1008 = vsub.s32 %v1005, %v1007
    %v1009 = vrot.slane %v177, %v1008
    %v1011 = vunpack.c.l.s4 842150450
    %v1012 = vunpack.c.0.s8 %v1011
    %v1013 = vlaneseq
    %v1014 = vshrl.u32 %v1013, 7
    %v1015 = vsub.s32 %v1012, %v1014
    %v1016 = vrot.slane %v177, %v1015
    %v1018 = vunpack.c.l.s4 1414812756
    %v1019 = vunpack.c.0.s8 %v1018
    %v1020 = vlaneseq
    %v1021 = vshrl.u32 %v1020, 7
    %v1022 = vsub.s32 %v1019, %v1021
    %v1023 = vrot.slane %v177, %v1022
    %v1025 = vunpack.c.l.s4 1987475062
    %v1026 = vunpack.c.0.s8 %v1025
    %v1027 = vlaneseq
    %v1028 = vshrl.u32 %v1027, 7
    %v1029 = vsub.s32 %v1026, %v1028
    %v1030 = vrot.slane %v177, %v1029
    %v1032 = vunpack.c.l.s4 269488144
    %v1033 = vunpack.c.0.s8 %v1032
    %v1034 = vlaneseq
    %v1035 = vshrl.u32 %v1034, 7
    %v1036 = vsub.s32 %v1033, %v1035
    %v1037 = vrot.slane %v180, %v1036
    %v1039 = vunpack.c.l.s4 842150450
    %v1040 = vunpack.c.0.s8 %v1039
    %v1041 = vlaneseq
    %v1042 = vshrl.u32 %v1041, 7
    %v1043 = vsub.s32 %v1040, %v1042
    %v1044 = vrot.slane %v180, %v1043
    %v1046 = vunpack.c.l.s4 1414812756
    %v1047 = vunpack.c.0.s8 %v1046
    %v1048 = vlaneseq
    %v1049 = vshrl.u32 %v1048, 7
    %v1050 = vsub.s32 %v1047, %v1049
    %v1051 = vrot.slane %v180, %v1050
    %v1053 = vunpack.c.l.s4 1987475062
    %v1054 = vunpack.c.0.s8 %v1053
    %v1055 = vlaneseq
    %v1056 = vshrl.u32 %v1055, 7
    %v1057 = vsub.s32 %v1054, %v1056
    %v1058 = vrot.slane %v180, %v1057
    %v1060 = vunpack.c.l.s4 269488144
    %v1061 = vunpack.c.0.s8 %v1060
    %v1062 = vlaneseq
    %v1063 = vshrl.u32 %v1062, 7
    %v1064 = vsub.s32 %v1061, %v1063
    %v1065 = vrot.slane %v183, %v1064
    %v1067 = vunpack.c.l.s4 842150450
    %v1068 = vunpack.c.0.s8 %v1067
    %v1069 = vlaneseq
    %v1070 = vshrl.u32 %v1069, 7
    %v1071 = vsub.s32 %v1068, %v1070
    %v1072 = vrot.slane %v183, %v1071
    %v1074 = vunpack.c.l.s4 1414812756
    %v1075 = vunpack.c.0.s8 %v1074
    %v1076 = vlaneseq
    %v1077 = vshrl.u32 %v1076, 7
    %v1078 = vsub.s32 %v1075, %v1077
    %v1079 = vrot.slane %v183, %v1078
    %v1081 = vunpack.c.l.s4 1987475062
    %v1082 = vunpack.c.0.s8 %v1081
    %v1083 = vlaneseq
    %v1084 = vshrl.u32 %v1083, 7
    %v1085 = vsub.s32 %v1082, %v1084
    %v1086 = vrot.slane %v183, %v1085
    %v1088 = vunpack.c.l.s4 269488144
    %v1089 = vunpack.c.0.s8 %v1088
    %v1090 = vlaneseq
    %v1091 = vshrl.u32 %v1090, 7
    %v1092 = vsub.s32 %v1089, %v1091
    %v1093 = vrot.slane %v186, %v1092
    %v1095 = vunpack.c.l.s4 842150450
    %v1096 = vunpack.c.0.s8 %v1095
    %v1097 = vlaneseq
    %v1098 = vshrl.u32 %v1097, 7
    %v1099 = vsub.s32 %v1096, %v1098
    %v1100 = vrot.slane %v186, %v1099
    %v1102 = vunpack.c.l.s4 1414812756
    %v1103 = vunpack.c.0.s8 %v1102
    %v1104 = vlaneseq
    %v1105 = vshrl.u32 %v1104, 7
    %v1106 = vsub.s32 %v1103, %v1105
    %v1107 = vrot.slane %v186, %v1106
    %v1109 = vunpack.c.l.s4 1987475062
    %v1110 = vunpack.c.0.s8 %v1109
    %v1111 = vlaneseq
    %v1112 = vshrl.u32 %v1111, 7
    %v1113 = vsub.s32 %v1110, %v1112
    %v1114 = vrot.slane %v186, %v1113
    %v1116 = vunpack.c.l.s4 269488144
    %v1117 = vunpack.c.0.s8 %v1116
    %v1118 = vlaneseq
    %v1119 = vshrl.u32 %v1118, 7
    %v1120 = vsub.s32 %v1117, %v1119
    %v1121 = vrot.slane %v189, %v1120
    %v1123 = vunpack.c.l.s4 842150450
    %v1124 = vunpack.c.0.s8 %v1123
    %v1125 = vlaneseq
    %v1126 = vshrl.u32 %v1125, 7
    %v1127 = vsub.s32 %v1124, %v1126
    %v1128 = vrot.slane %v189, %v1127
    %v1130 = vunpack.c.l.s4 1414812756
    %v1131 = vunpack.c.0.s8 %v1130
    %v1132 = vlaneseq
    %v1133 = vshrl.u32 %v1132, 7
    %v1134 = vsub.s32 %v1131, %v1133
    %v1135 = vrot.slane %v189, %v1134
    %v1137 = vunpack.c.l.s4 1987475062
    %v1138 = vunpack.c.0.s8 %v1137
    %v1139 = vlaneseq
    %v1140 = vshrl.u32 %v1139, 7
    %v1141 = vsub.s32 %v1138, %v1140
    %v1142 = vrot.slane %v189, %v1141
    %v1144 = vunpack.c.l.s4 269488144
    %v1145 = vunpack.c.0.s8 %v1144
    %v1146 = vlaneseq
    %v1147 = vshrl.u32 %v1146, 7
    %v1148 = vsub.s32 %v1145, %v1147
    %v1149 = vrot.slane %v192, %v1148
    %v1151 = vunpack.c.l.s4 842150450
    %v1152 = vunpack.c.0.s8 %v1151
    %v1153 = vlaneseq
    %v1154 = vshrl.u32 %v1153, 7
    %v1155 = vsub.s32 %v1152, %v1154
    %v1156 = vrot.slane %v192, %v1155
    %v1158 = vunpack.c.l.s4 1414812756
    %v1159 = vunpack.c.0.s8 %v1158
    %v1160 = vlaneseq
    %v1161 = vshrl.u32 %v1160, 7
    %v1162 = vsub.s32 %v1159, %v1161
    %v1163 = vrot.slane %v192, %v1162
    %v1165 = vunpack.c.l.s4 1987475062
    %v1166 = vunpack.c.0.s8 %v1165
    %v1167 = vlaneseq
    %v1168 = vshrl.u32 %v1167, 7
    %v1169 = vsub.s32 %v1166, %v1168
    %v1170 = vrot.slane %v192, %v1169
    %v1172 = vunpack.c.l.s4 269488144
    %v1173 = vunpack.c.0.s8 %v1172
    %v1174 = vlaneseq
    %v1175 = vshrl.u32 %v1174, 7
    %v1176 = vsub.s32 %v1173, %v1175
    %v1177 = vrot.slane %v195, %v1176
    %v1179 = vunpack.c.l.s4 842150450
    %v1180 = vunpack.c.0.s8 %v1179
    %v1181 = vlaneseq
    %v1182 = vshrl.u32 %v1181, 7
    %v1183 = vsub.s32 %v1180, %v1182
    %v1184 = vrot.slane %v195, %v1183
    %v1186 = vunpack.c.l.s4 1414812756
    %v1187 = vunpack.c.0.s8 %v1186
    %v1188 = vlaneseq
    %v1189 = vshrl.u32 %v1188, 7
    %v1190 = vsub.s32 %v1187, %v1189
    %v1191 = vrot.slane %v195, %v1190
    %v1193 = vunpack.c.l.s4 1987475062
    %v1194 = vunpack.c.0.s8 %v1193
    %v1195 = vlaneseq
    %v1196 = vshrl.u32 %v1195, 7
    %v1197 = vsub.s32 %v1194, %v1196
    %v1198 = vrot.slane %v195, %v1197
    %v1200 = vunpack.c.l.s4 269488144
    %v1201 = vunpack.c.0.s8 %v1200
    %v1202 = vlaneseq
    %v1203 = vshrl.u32 %v1202, 7
    %v1204 = vsub.s32 %v1201, %v1203
    %v1205 = vrot.slane %v198, %v1204
    %v1207 = vunpack.c.l.s4 842150450
    %v1208 = vunpack.c.0.s8 %v1207
    %v1209 = vlaneseq
    %v1210 = vshrl.u32 %v1209, 7
    %v1211 = vsub.s32 %v1208, %v1210
    %v1212 = vrot.slane %v198, %v1211
    %v1214 = vunpack.c.l.s4 1414812756
    %v1215 = vunpack.c.0.s8 %v1214
    %v1216 = vlaneseq
    %v1217 = vshrl.u32 %v1216, 7
    %v1218 = vsub.s32 %v1215, %v1217
    %v1219 = vrot.slane %v198, %v1218
    %v1221 = vunpack.c.l.s4 1987475062
    %v1222 = vunpack.c.0.s8 %v1221
    %v1223 = vlaneseq
    %v1224 = vshrl.u32 %v1223, 7
    %v1225 = vsub.s32 %v1222, %v1224
    %v1226 = vrot.slane %v198, %v1225
    %v1228 = vunpack.c.l.s4 269488144
    %v1229 = vunpack.c.0.s8 %v1228
    %v1230 = vlaneseq
    %v1231 = vshrl.u32 %v1230, 7
    %v1232 = vsub.s32 %v1229, %v1231
    %v1233 = vrot.slane %v201, %v1232
    %v1235 = vunpack.c.l.s4 842150450
    %v1236 = vunpack.c.0.s8 %v1235
    %v1237 = vlaneseq
    %v1238 = vshrl.u32 %v1237, 7
    %v1239 = vsub.s32 %v1236, %v1238
    %v1240 = vrot.slane %v201, %v1239
    %v1242 = vunpack.c.l.s4 1414812756
    %v1243 = vunpack.c.0.s8 %v1242
    %v1244 = vlaneseq
    %v1245 = vshrl.u32 %v1244, 7
    %v1246 = vsub.s32 %v1243, %v1245
    %v1247 = vrot.slane %v201, %v1246
    %v1249 = vunpack.c.l.s4 1987475062
    %v1250 = vunpack.c.0.s8 %v1249
    %v1251 = vlaneseq
    %v1252 = vshrl.u32 %v1251, 7
    %v1253 = vsub.s32 %v1250, %v1252
    %v1254 = vrot.slane %v201, %v1253
    %v1256 = vunpack.c.l.s4 269488144
    %v1257 = vunpack.c.0.s8 %v1256
    %v1258 = vlaneseq
    %v1259 = vshrl.u32 %v1258, 7
    %v1260 = vsub.s32 %v1257, %v1259
    %v1261 = vrot.slane %v204, %v1260
    %v1263 = vunpack.c.l.s4 842150450
    %v1264 = vunpack.c.0.s8 %v1263
    %v1265 = vlaneseq
    %v1266 = vshrl.u32 %v1265, 7
    %v1267 = vsub.s32 %v1264, %v1266
    %v1268 = vrot.slane %v204, %v1267
    %v1270 = vunpack.c.l.s4 1414812756
    %v1271 = vunpack.c.0.s8 %v1270
    %v1272 = vlaneseq
    %v1273 = vshrl.u32 %v1272, 7
    %v1274 = vsub.s32 %v1271, %v1273
    %v1275 = vrot.slane %v204, %v1274
    %v1277 = vunpack.c.l.s4 1987475062
    %v1278 = vunpack.c.0.s8 %v1277
    %v1279 = vlaneseq
    %v1280 = vshrl.u32 %v1279, 7
    %v1281 = vsub.s32 %v1278, %v1280
    %v1282 = vrot.slane %v204, %v1281
    %v1284 = vunpack.c.l.s4 269488144
    %v1285 = vunpack.c.0.s8 %v1284
    %v1286 = vlaneseq
    %v1287 = vshrl.u32 %v1286, 7
    %v1288 = vsub.s32 %v1285, %v1287
    %v1289 = vrot.slane %v207, %v1288
    %v1291 = vunpack.c.l.s4 842150450
    %v1292 = vunpack.c.0.s8 %v1291
    %v1293 = vlaneseq
    %v1294 = vshrl.u32 %v1293, 7
    %v1295 = vsub.s32 %v1292, %v1294
    %v1296 = vrot.slane %v207, %v1295
    %v1298 = vunpack.c.l.s4 1414812756
    %v1299 = vunpack.c.0.s8 %v1298
    %v1300 = vlaneseq
    %v1301 = vshrl.u32 %v1300, 7
    %v1302 = vsub.s32 %v1299, %v1301
    %v1303 = vrot.slane %v207, %v1302
    %v1305 = vunpack.c.l.s4 1987475062
    %v1306 = vunpack.c.0.s8 %v1305
    %v1307 = vlaneseq
    %v1308 = vshrl.u32 %v1307, 7
    %v1309 = vsub.s32 %v1306, %v1308
    %v1310 = vrot.slane %v207, %v1309
    %v1312 = vunpack.c.l.s4 269488144
    %v1313 = vunpack.c.0.s8 %v1312
    %v1314 = vlaneseq
    %v1315 = vshrl.u32 %v1314, 7
    %v1316 = vsub.s32 %v1313, %v1315
    %v1317 = vrot.slane %v210, %v1316
    %v1319 = vunpack.c.l.s4 842150450
    %v1320 = vunpack.c.0.s8 %v1319
    %v1321 = vlaneseq
    %v1322 = vshrl.u32 %v1321, 7
    %v1323 = vsub.s32 %v1320, %v1322
    %v1324 = vrot.slane %v210, %v1323
    %v1326 = vunpack.c.l.s4 1414812756
    %v1327 = vunpack.c.0.s8 %v1326
    %v1328 = vlaneseq
    %v1329 = vshrl.u32 %v1328, 7
    %v1330 = vsub.s32 %v1327, %v1329
    %v1331 = vrot.slane %v210, %v1330
    %v1333 = vunpack.c.l.s4 1987475062
    %v1334 = vunpack.c.0.s8 %v1333
    %v1335 = vlaneseq
    %v1336 = vshrl.u32 %v1335, 7
    %v1337 = vsub.s32 %v1334, %v1336
    %v1338 = vrot.slane %v210, %v1337
    %v1340 = vunpack.c.l.s4 269488144
    %v1341 = vunpack.c.0.s8 %v1340
    %v1342 = vlaneseq
    %v1343 = vshrl.u32 %v1342, 7
    %v1344 = vsub.s32 %v1341, %v1343
    %v1345 = vrot.slane %v213, %v1344
    %v1347 = vunpack.c.l.s4 842150450
    %v1348 = vunpack.c.0.s8 %v1347
    %v1349 = vlaneseq
    %v1350 = vshrl.u32 %v1349, 7
    %v1351 = vsub.s32 %v1348, %v1350
    %v1352 = vrot.slane %v213, %v1351
    %v1354 = vunpack.c.l.s4 1414812756
    %v1355 = vunpack.c.0.s8 %v1354
    %v1356 = vlaneseq
    %v1357 = vshrl.u32 %v1356, 7
    %v1358 = vsub.s32 %v1355, %v1357
    %v1359 = vrot.slane %v213, %v1358
    %v1361 = vunpack.c.l.s4 1987475062
    %v1362 = vunpack.c.0.s8 %v1361
    %v1363 = vlaneseq
    %v1364 = vshrl.u32 %v1363, 7
    %v1365 = vsub.s32 %v1362, %v1364
    %v1366 = vrot.slane %v213, %v1365
    %v1368 = vunpack.c.l.s4 269488144
    %v1369 = vunpack.c.0.s8 %v1368
    %v1370 = vlaneseq
    %v1371 = vshrl.u32 %v1370, 7
    %v1372 = vsub.s32 %v1369, %v1371
    %v1373 = vrot.slane %v216, %v1372
    %v1375 = vunpack.c.l.s4 842150450
    %v1376 = vunpack.c.0.s8 %v1375
    %v1377 = vlaneseq
    %v1378 = vshrl.u32 %v1377, 7
    %v1379 = vsub.s32 %v1376, %v1378
    %v1380 = vrot.slane %v216, %v1379
    %v1382 = vunpack.c.l.s4 1414812756
    %v1383 = vunpack.c.0.s8 %v1382
    %v1384 = vlaneseq
    %v1385 = vshrl.u32 %v1384, 7
    %v1386 = vsub.s32 %v1383, %v1385
    %v1387 = vrot.slane %v216, %v1386
    %v1389 = vunpack.c.l.s4 1987475062
    %v1390 = vunpack.c.0.s8 %v1389
    %v1391 = vlaneseq
    %v1392 = vshrl.u32 %v1391, 7
    %v1393 = vsub.s32 %v1390, %v1392
    %v1394 = vrot.slane %v216, %v1393
    %v1396 = vunpack.c.l.s4 269488144
    %v1397 = vunpack.c.0.s8 %v1396
    %v1398 = vlaneseq
    %v1399 = vshrl.u32 %v1398, 7
    %v1400 = vsub.s32 %v1397, %v1399
    %v1401 = vrot.slane %v219, %v1400
    %v1403 = vunpack.c.l.s4 842150450
    %v1404 = vunpack.c.0.s8 %v1403
    %v1405 = vlaneseq
    %v1406 = vshrl.u32 %v1405, 7
    %v1407 = vsub.s32 %v1404, %v1406
    %v1408 = vrot.slane %v219, %v1407
    %v1410 = vunpack.c.l.s4 1414812756
    %v1411 = vunpack.c.0.s8 %v1410
    %v1412 = vlaneseq
    %v1413 = vshrl.u32 %v1412, 7
    %v1414 = vsub.s32 %v1411, %v1413
    %v1415 = vrot.slane %v219, %v1414
    %v1417 = vunpack.c.l.s4 1987475062
    %v1418 = vunpack.c.0.s8 %v1417
    %v1419 = vlaneseq
    %v1420 = vshrl.u32 %v1419, 7
    %v1421 = vsub.s32 %v1418, %v1420
    %v1422 = vrot.slane %v219, %v1421
    %v1424 = vunpack.c.l.s4 269488144
    %v1425 = vunpack.c.0.s8 %v1424
    %v1426 = vlaneseq
    %v1427 = vshrl.u32 %v1426, 7
    %v1428 = vsub.s32 %v1425, %v1427
    %v1429 = vrot.slane %v222, %v1428
    %v1431 = vunpack.c.l.s4 842150450
    %v1432 = vunpack.c.0.s8 %v1431
    %v1433 = vlaneseq
    %v1434 = vshrl.u32 %v1433, 7
    %v1435 = vsub.s32 %v1432, %v1434
    %v1436 = vrot.slane %v222, %v1435
    %v1438 = vunpack.c.l.s4 1414812756
    %v1439 = vunpack.c.0.s8 %v1438
    %v1440 = vlaneseq
    %v1441 = vshrl.u32 %v1440, 7
    %v1442 = vsub.s32 %v1439, %v1441
    %v1443 = vrot.slane %v222, %v1442
    %v1445 = vunpack.c.l.s4 1987475062
    %v1446 = vunpack.c.0.s8 %v1445
    %v1447 = vlaneseq
    %v1448 = vshrl.u32 %v1447, 7
    %v1449 = vsub.s32 %v1446, %v1448
    %v1450 = vrot.slane %v222, %v1449
    %v1452 = vunpack.c.l.s4 269488144
    %v1453 = vunpack.c.0.s8 %v1452
    %v1454 = vlaneseq
    %v1455 = vshrl.u32 %v1454, 7
    %v1456 = vsub.s32 %v1453, %v1455
    %v1457 = vrot.slane %v225, %v1456
    %v1459 = vunpack.c.l.s4 842150450
    %v1460 = vunpack.c.0.s8 %v1459
    %v1461 = vlaneseq
    %v1462 = vshrl.u32 %v1461, 7
    %v1463 = vsub.s32 %v1460, %v1462
    %v1464 = vrot.slane %v225, %v1463
    %v1466 = vunpack.c.l.s4 1414812756
    %v1467 = vunpack.c.0.s8 %v1466
    %v1468 = vlaneseq
    %v1469 = vshrl.u32 %v1468, 7
    %v1470 = vsub.s32 %v1467, %v1469
    %v1471 = vrot.slane %v225, %v1470
    %v1473 = vunpack.c.l.s4 1987475062
    %v1474 = vunpack.c.0.s8 %v1473
    %v1475 = vlaneseq
    %v1476 = vshrl.u32 %v1475, 7
    %v1477 = vsub.s32 %v1474, %v1476
    %v1478 = vrot.slane %v225, %v1477
    %v1480 = vunpack.c.l.s4 269488144
    %v1481 = vunpack.c.0.s8 %v1480
    %v1482 = vlaneseq
    %v1483 = vshrl.u32 %v1482, 7
    %v1484 = vsub.s32 %v1481, %v1483
    %v1485 = vrot.slane %v228, %v1484
    %v1487 = vunpack.c.l.s4 842150450
    %v1488 = vunpack.c.0.s8 %v1487
    %v1489 = vlaneseq
    %v1490 = vshrl.u32 %v1489, 7
    %v1491 = vsub.s32 %v1488, %v1490
    %v1492 = vrot.slane %v228, %v1491
    %v1494 = vunpack.c.l.s4 1414812756
    %v1495 = vunpack.c.0.s8 %v1494
    %v1496 = vlaneseq
    %v1497 = vshrl.u32 %v1496, 7
    %v1498 = vsub.s32 %v1495, %v1497
    %v1499 = vrot.slane %v228, %v1498
    %v1501 = vunpack.c.l.s4 1987475062
    %v1502 = vunpack.c.0.s8 %v1501
    %v1503 = vlaneseq
    %v1504 = vshrl.u32 %v1503, 7
    %v1505 = vsub.s32 %v1502, %v1504
    %v1506 = vrot.slane %v228, %v1505
    %v1508 = vunpack.c.l.s4 269488144
    %v1509 = vunpack.c.0.s8 %v1508
    %v1510 = vlaneseq
    %v1511 = vshrl.u32 %v1510, 7
    %v1512 = vsub.s32 %v1509, %v1511
    %v1513 = vrot.slane %v231, %v1512
    %v1515 = vunpack.c.l.s4 842150450
    %v1516 = vunpack.c.0.s8 %v1515
    %v1517 = vlaneseq
    %v1518 = vshrl.u32 %v1517, 7
    %v1519 = vsub.s32 %v1516, %v1518
    %v1520 = vrot.slane %v231, %v1519
    %v1522 = vunpack.c.l.s4 1414812756
    %v1523 = vunpack.c.0.s8 %v1522
    %v1524 = vlaneseq
    %v1525 = vshrl.u32 %v1524, 7
    %v1526 = vsub.s32 %v1523, %v1525
    %v1527 = vrot.slane %v231, %v1526
    %v1529 = vunpack.c.l.s4 1987475062
    %v1530 = vunpack.c.0.s8 %v1529
    %v1531 = vlaneseq
    %v1532 = vshrl.u32 %v1531, 7
    %v1533 = vsub.s32 %v1530, %v1532
    %v1534 = vrot.slane %v231, %v1533
    %v1536 = vunpack.c.l.s4 269488144
    %v1537 = vunpack.c.0.s8 %v1536
    %v1538 = vlaneseq
    %v1539 = vshrl.u32 %v1538, 7
    %v1540 = vsub.s32 %v1537, %v1539
    %v1541 = vrot.slane %v234, %v1540
    %v1543 = vunpack.c.l.s4 842150450
    %v1544 = vunpack.c.0.s8 %v1543
    %v1545 = vlaneseq
    %v1546 = vshrl.u32 %v1545, 7
    %v1547 = vsub.s32 %v1544, %v1546
    %v1548 = vrot.slane %v234, %v1547
    %v1550 = vunpack.c.l.s4 1414812756
    %v1551 = vunpack.c.0.s8 %v1550
    %v1552 = vlaneseq
    %v1553 = vshrl.u32 %v1552, 7
    %v1554 = vsub.s32 %v1551, %v1553
    %v1555 = vrot.slane %v234, %v1554
    %v1557 = vunpack.c.l.s4 1987475062
    %v1558 = vunpack.c.0.s8 %v1557
    %v1559 = vlaneseq
    %v1560 = vshrl.u32 %v1559, 7
    %v1561 = vsub.s32 %v1558, %v1560
    %v1562 = vrot.slane %v234, %v1561
    %v1564 = vunpack.c.l.s4 269488144
    %v1565 = vunpack.c.0.s8 %v1564
    %v1566 = vlaneseq
    %v1567 = vshrl.u32 %v1566, 7
    %v1568 = vsub.s32 %v1565, %v1567
    %v1569 = vrot.slane %v237, %v1568
    %v1571 = vunpack.c.l.s4 842150450
    %v1572 = vunpack.c.0.s8 %v1571
    %v1573 = vlaneseq
    %v1574 = vshrl.u32 %v1573, 7
    %v1575 = vsub.s32 %v1572, %v1574
    %v1576 = vrot.slane %v237, %v1575
    %v1578 = vunpack.c.l.s4 1414812756
    %v1579 = vunpack.c.0.s8 %v1578
    %v1580 = vlaneseq
    %v1581 = vshrl.u32 %v1580, 7
    %v1582 = vsub.s32 %v1579, %v1581
    %v1583 = vrot.slane %v237, %v1582
    %v1585 = vunpack.c.l.s4 1987475062
    %v1586 = vunpack.c.0.s8 %v1585
    %v1587 = vlaneseq
    %v1588 = vshrl.u32 %v1587, 7
    %v1589 = vsub.s32 %v1586, %v1588
    %v1590 = vrot.slane %v237, %v1589
    %v1592 = vunpack.c.l.s4 269488144
    %v1593 = vunpack.c.0.s8 %v1592
    %v1594 = vlaneseq
    %v1595 = vshrl.u32 %v1594, 7
    %v1596 = vsub.s32 %v1593, %v1595
    %v1597 = vrot.slane %v240, %v1596
    %v1599 = vunpack.c.l.s4 842150450
    %v1600 = vunpack.c.0.s8 %v1599
    %v1601 = vlaneseq
    %v1602 = vshrl.u32 %v1601, 7
    %v1603 = vsub.s32 %v1600, %v1602
    %v1604 = vrot.slane %v240, %v1603
    %v1606 = vunpack.c.l.s4 1414812756
    %v1607 = vunpack.c.0.s8 %v1606
    %v1608 = vlaneseq
    %v1609 = vshrl.u32 %v1608, 7
    %v1610 = vsub.s32 %v1607, %v1609
    %v1611 = vrot.slane %v240, %v1610
    %v1613 = vunpack.c.l.s4 1987475062
    %v1614 = vunpack.c.0.s8 %v1613
    %v1615 = vlaneseq
    %v1616 = vshrl.u32 %v1615, 7
    %v1617 = vsub.s32 %v1614, %v1616
    %v1618 = vrot.slane %v240, %v1617
    %v1620 = vunpack.c.l.s4 269488144
    %v1621 = vunpack.c.0.s8 %v1620
    %v1622 = vlaneseq
    %v1623 = vshrl.u32 %v1622, 7
    %v1624 = vsub.s32 %v1621, %v1623
    %v1625 = vrot.slane %v243, %v1624
    %v1627 = vunpack.c.l.s4 842150450
    %v1628 = vunpack.c.0.s8 %v1627
    %v1629 = vlaneseq
    %v1630 = vshrl.u32 %v1629, 7
    %v1631 = vsub.s32 %v1628, %v1630
    %v1632 = vrot.slane %v243, %v1631
    %v1634 = vunpack.c.l.s4 1414812756
    %v1635 = vunpack.c.0.s8 %v1634
    %v1636 = vlaneseq
    %v1637 = vshrl.u32 %v1636, 7
    %v1638 = vsub.s32 %v1635, %v1637
    %v1639 = vrot.slane %v243, %v1638
    %v1641 = vunpack.c.l.s4 1987475062
    %v1642 = vunpack.c.0.s8 %v1641
    %v1643 = vlaneseq
    %v1644 = vshrl.u32 %v1643, 7
    %v1645 = vsub.s32 %v1642, %v1644
    %v1646 = vrot.slane %v243, %v1645
    %v1648 = vunpack.c.l.s4 269488144
    %v1649 = vunpack.c.0.s8 %v1648
    %v1650 = vlaneseq
    %v1651 = vshrl.u32 %v1650, 7
    %v1652 = vsub.s32 %v1649, %v1651
    %v1653 = vrot.slane %v246, %v1652
    %v1655 = vunpack.c.l.s4 842150450
    %v1656 = vunpack.c.0.s8 %v1655
    %v1657 = vlaneseq
    %v1658 = vshrl.u32 %v1657, 7
    %v1659 = vsub.s32 %v1656, %v1658
    %v1660 = vrot.slane %v246, %v1659
    %v1662 = vunpack.c.l.s4 1414812756
    %v1663 = vunpack.c.0.s8 %v1662
    %v1664 = vlaneseq
    %v1665 = vshrl.u32 %v1664, 7
    %v1666 = vsub.s32 %v1663, %v1665
    %v1667 = vrot.slane %v246, %v1666
    %v1669 = vunpack.c.l.s4 1987475062
    %v1670 = vunpack.c.0.s8 %v1669
    %v1671 = vlaneseq
    %v1672 = vshrl.u32 %v1671, 7
    %v1673 = vsub.s32 %v1670, %v1672
    %v1674 = vrot.slane %v246, %v1673
    %v1676 = vunpack.c.l.s4 269488144
    %v1677 = vunpack.c.0.s8 %v1676
    %v1678 = vlaneseq
    %v1679 = vshrl.u32 %v1678, 7
    %v1680 = vsub.s32 %v1677, %v1679
    %v1681 = vrot.slane %v249, %v1680
    %v1683 = vunpack.c.l.s4 842150450
    %v1684 = vunpack.c.0.s8 %v1683
    %v1685 = vlaneseq
    %v1686 = vshrl.u32 %v1685, 7
    %v1687 = vsub.s32 %v1684, %v1686
    %v1688 = vrot.slane %v249, %v1687
    %v1690 = vunpack.c.l.s4 1414812756
    %v1691 = vunpack.c.0.s8 %v1690
    %v1692 = vlaneseq
    %v1693 = vshrl.u32 %v1692, 7
    %v1694 = vsub.s32 %v1691, %v1693
    %v1695 = vrot.slane %v249, %v1694
    %v1697 = vunpack.c.l.s4 1987475062
    %v1698 = vunpack.c.0.s8 %v1697
    %v1699 = vlaneseq
    %v1700 = vshrl.u32 %v1699, 7
    %v1701 = vsub.s32 %v1698, %v1700
    %v1702 = vrot.slane %v249, %v1701
    %v1704 = vunpack.c.l.s4 269488144
    %v1705 = vunpack.c.0.s8 %v1704
    %v1706 = vlaneseq
    %v1707 = vshrl.u32 %v1706, 7
    %v1708 = vsub.s32 %v1705, %v1707
    %v1709 = vrot.slane %v252, %v1708
    %v1711 = vunpack.c.l.s4 842150450
    %v1712 = vunpack.c.0.s8 %v1711
    %v1713 = vlaneseq
    %v1714 = vshrl.u32 %v1713, 7
    %v1715 = vsub.s32 %v1712, %v1714
    %v1716 = vrot.slane %v252, %v1715
    %v1718 = vunpack.c.l.s4 1414812756
    %v1719 = vunpack.c.0.s8 %v1718
    %v1720 = vlaneseq
    %v1721 = vshrl.u32 %v1720, 7
    %v1722 = vsub.s32 %v1719, %v1721
    %v1723 = vrot.slane %v252, %v1722
    %v1725 = vunpack.c.l.s4 1987475062
    %v1726 = vunpack.c.0.s8 %v1725
    %v1727 = vlaneseq
    %v1728 = vshrl.u32 %v1727, 7
    %v1729 = vsub.s32 %v1726, %v1728
    %v1730 = vrot.slane %v252, %v1729
    %v1732 = vunpack.c.l.s4 269488144
    %v1733 = vunpack.c.0.s8 %v1732
    %v1734 = vlaneseq
    %v1735 = vshrl.u32 %v1734, 7
    %v1736 = vsub.s32 %v1733, %v1735
    %v1737 = vrot.slane %v255, %v1736
    %v1739 = vunpack.c.l.s4 842150450
    %v1740 = vunpack.c.0.s8 %v1739
    %v1741 = vlaneseq
    %v1742 = vshrl.u32 %v1741, 7
    %v1743 = vsub.s32 %v1740, %v1742
    %v1744 = vrot.slane %v255, %v1743
    %v1746 = vunpack.c.l.s4 1414812756
    %v1747 = vunpack.c.0.s8 %v1746
    %v1748 = vlaneseq
    %v1749 = vshrl.u32 %v1748, 7
    %v1750 = vsub.s32 %v1747, %v1749
    %v1751 = vrot.slane %v255, %v1750
    %v1753 = vunpack.c.l.s4 1987475062
    %v1754 = vunpack.c.0.s8 %v1753
    %v1755 = vlaneseq
    %v1756 = vshrl.u32 %v1755, 7
    %v1757 = vsub.s32 %v1754, %v1756
    %v1758 = vrot.slane %v255, %v1757
    %v1760 = vunpack.c.l.s4 269488144
    %v1761 = vunpack.c.0.s8 %v1760
    %v1762 = vlaneseq
    %v1763 = vshrl.u32 %v1762, 7
    %v1764 = vsub.s32 %v1761, %v1763
    %v1765 = vrot.slane %v258, %v1764
    %v1767 = vunpack.c.l.s4 842150450
    %v1768 = vunpack.c.0.s8 %v1767
    %v1769 = vlaneseq
    %v1770 = vshrl.u32 %v1769, 7
    %v1771 = vsub.s32 %v1768, %v1770
    %v1772 = vrot.slane %v258, %v1771
    %v1774 = vunpack.c.l.s4 1414812756
    %v1775 = vunpack.c.0.s8 %v1774
    %v1776 = vlaneseq
    %v1777 = vshrl.u32 %v1776, 7
    %v1778 = vsub.s32 %v1775, %v1777
    %v1779 = vrot.slane %v258, %v1778
    %v1781 = vunpack.c.l.s4 1987475062
    %v1782 = vunpack.c.0.s8 %v1781
    %v1783 = vlaneseq
    %v1784 = vshrl.u32 %v1783, 7
    %v1785 = vsub.s32 %v1782, %v1784
    %v1786 = vrot.slane %v258, %v1785
    %v1788 = vunpack.c.l.s4 269488144
    %v1789 = vunpack.c.0.s8 %v1788
    %v1790 = vlaneseq
    %v1791 = vshrl.u32 %v1790, 7
    %v1792 = vsub.s32 %v1789, %v1791
    %v1793 = vrot.slane %v261, %v1792
    %v1795 = vunpack.c.l.s4 842150450
    %v1796 = vunpack.c.0.s8 %v1795
    %v1797 = vlaneseq
    %v1798 = vshrl.u32 %v1797, 7
    %v1799 = vsub.s32 %v1796, %v1798
    %v1800 = vrot.slane %v261, %v1799
    %v1802 = vunpack.c.l.s4 1414812756
    %v1803 = vunpack.c.0.s8 %v1802
    %v1804 = vlaneseq
    %v1805 = vshrl.u32 %v1804, 7
    %v1806 = vsub.s32 %v1803, %v1805
    %v1807 = vrot.slane %v261, %v1806
    %v1809 = vunpack.c.l.s4 1987475062
    %v1810 = vunpack.c.0.s8 %v1809
    %v1811 = vlaneseq
    %v1812 = vshrl.u32 %v1811, 7
    %v1813 = vsub.s32 %v1810, %v1812
    %v1814 = vrot.slane %v261, %v1813
    %v1816 = vunpack.c.l.s4 269488144
    %v1817 = vunpack.c.0.s8 %v1816
    %v1818 = vlaneseq
    %v1819 = vshrl.u32 %v1818, 7
    %v1820 = vsub.s32 %v1817, %v1819
    %v1821 = vrot.slane %v264, %v1820
    %v1823 = vunpack.c.l.s4 842150450
    %v1824 = vunpack.c.0.s8 %v1823
    %v1825 = vlaneseq
    %v1826 = vshrl.u32 %v1825, 7
    %v1827 = vsub.s32 %v1824, %v1826
    %v1828 = vrot.slane %v264, %v1827
    %v1830 = vunpack.c.l.s4 1414812756
    %v1831 = vunpack.c.0.s8 %v1830
    %v1832 = vlaneseq
    %v1833 = vshrl.u32 %v1832, 7
    %v1834 = vsub.s32 %v1831, %v1833
    %v1835 = vrot.slane %v264, %v1834
    %v1837 = vunpack.c.l.s4 1987475062
    %v1838 = vunpack.c.0.s8 %v1837
    %v1839 = vlaneseq
    %v1840 = vshrl.u32 %v1839, 7
    %v1841 = vsub.s32 %v1838, %v1840
    %v1842 = vrot.slane %v264, %v1841
    %v1844 = vunpack.c.l.s4 269488144
    %v1845 = vunpack.c.0.s8 %v1844
    %v1846 = vlaneseq
    %v1847 = vshrl.u32 %v1846, 7
    %v1848 = vsub.s32 %v1845, %v1847
    %v1849 = vrot.slane %v267, %v1848
    %v1851 = vunpack.c.l.s4 842150450
    %v1852 = vunpack.c.0.s8 %v1851
    %v1853 = vlaneseq
    %v1854 = vshrl.u32 %v1853, 7
    %v1855 = vsub.s32 %v1852, %v1854
    %v1856 = vrot.slane %v267, %v1855
    %v1858 = vunpack.c.l.s4 1414812756
    %v1859 = vunpack.c.0.s8 %v1858
    %v1860 = vlaneseq
    %v1861 = vshrl.u32 %v1860, 7
    %v1862 = vsub.s32 %v1859, %v1861
    %v1863 = vrot.slane %v267, %v1862
    %v1865 = vunpack.c.l.s4 1987475062
    %v1866 = vunpack.c.0.s8 %v1865
    %v1867 = vlaneseq
    %v1868 = vshrl.u32 %v1867, 7
    %v1869 = vsub.s32 %v1866, %v1868
    %v1870 = vrot.slane %v267, %v1869
    %v1872 = vunpack.c.l.s4 269488144
    %v1873 = vunpack.c.0.s8 %v1872
    %v1874 = vlaneseq
    %v1875 = vshrl.u32 %v1874, 7
    %v1876 = vsub.s32 %v1873, %v1875
    %v1877 = vrot.slane %v270, %v1876
    %v1879 = vunpack.c.l.s4 842150450
    %v1880 = vunpack.c.0.s8 %v1879
    %v1881 = vlaneseq
    %v1882 = vshrl.u32 %v1881, 7
    %v1883 = vsub.s32 %v1880, %v1882
    %v1884 = vrot.slane %v270, %v1883
    %v1886 = vunpack.c.l.s4 1414812756
    %v1887 = vunpack.c.0.s8 %v1886
    %v1888 = vlaneseq
    %v1889 = vshrl.u32 %v1888, 7
    %v1890 = vsub.s32 %v1887, %v1889
    %v1891 = vrot.slane %v270, %v1890
    %v1893 = vunpack.c.l.s4 1987475062
    %v1894 = vunpack.c.0.s8 %v1893
    %v1895 = vlaneseq
    %v1896 = vshrl.u32 %v1895, 7
    %v1897 = vsub.s32 %v1894, %v1896
    %v1898 = vrot.slane %v270, %v1897
    %v1900 = vunpack.c.l.s4 269488144
    %v1901 = vunpack.c.0.s8 %v1900
    %v1902 = vlaneseq
    %v1903 = vshrl.u32 %v1902, 7
    %v1904 = vsub.s32 %v1901, %v1903
    %v1905 = vrot.slane %v273, %v1904
    %v1907 = vunpack.c.l.s4 842150450
    %v1908 = vunpack.c.0.s8 %v1907
    %v1909 = vlaneseq
    %v1910 = vshrl.u32 %v1909, 7
    %v1911 = vsub.s32 %v1908, %v1910
    %v1912 = vrot.slane %v273, %v1911
    %v1914 = vunpack.c.l.s4 1414812756
    %v1915 = vunpack.c.0.s8 %v1914
    %v1916 = vlaneseq
    %v1917 = vshrl.u32 %v1916, 7
    %v1918 = vsub.s32 %v1915, %v1917
    %v1919 = vrot.slane %v273, %v1918
    %v1921 = vunpack.c.l.s4 1987475062
    %v1922 = vunpack.c.0.s8 %v1921
    %v1923 = vlaneseq
    %v1924 = vshrl.u32 %v1923, 7
    %v1925 = vsub.s32 %v1922, %v1924
    %v1926 = vrot.slane %v273, %v1925
    %v1928 = vunpack.c.l.s4 269488144
    %v1929 = vunpack.c.0.s8 %v1928
    %v1930 = vlaneseq
    %v1931 = vshrl.u32 %v1930, 7
    %v1932 = vsub.s32 %v1929, %v1931
    %v1933 = vrot.slane %v276, %v1932
    %v1935 = vunpack.c.l.s4 842150450
    %v1936 = vunpack.c.0.s8 %v1935
    %v1937 = vlaneseq
    %v1938 = vshrl.u32 %v1937, 7
    %v1939 = vsub.s32 %v1936, %v1938
    %v1940 = vrot.slane %v276, %v1939
    %v1942 = vunpack.c.l.s4 1414812756
    %v1943 = vunpack.c.0.s8 %v1942
    %v1944 = vlaneseq
    %v1945 = vshrl.u32 %v1944, 7
    %v1946 = vsub.s32 %v1943, %v1945
    %v1947 = vrot.slane %v276, %v1946
    %v1949 = vunpack.c.l.s4 1987475062
    %v1950 = vunpack.c.0.s8 %v1949
    %v1951 = vlaneseq
    %v1952 = vshrl.u32 %v1951, 7
    %v1953 = vsub.s32 %v1950, %v1952
    %v1954 = vrot.slane %v276, %v1953
    %v1956 = vunpack.c.l.s4 269488144
    %v1957 = vunpack.c.0.s8 %v1956
    %v1958 = vlaneseq
    %v1959 = vshrl.u32 %v1958, 7
    %v1960 = vsub.s32 %v1957, %v1959
    %v1961 = vrot.slane %v279, %v1960
    %v1963 = vunpack.c.l.s4 842150450
    %v1964 = vunpack.c.0.s8 %v1963
    %v1965 = vlaneseq
    %v1966 = vshrl.u32 %v1965, 7
    %v1967 = vsub.s32 %v1964, %v1966
    %v1968 = vrot.slane %v279, %v1967
    %v1970 = vunpack.c.l.s4 1414812756
    %v1971 = vunpack.c.0.s8 %v1970
    %v1972 = vlaneseq
    %v1973 = vshrl.u32 %v1972, 7
    %v1974 = vsub.s32 %v1971, %v1973
    %v1975 = vrot.slane %v279, %v1974
    %v1977 = vunpack.c.l.s4 1987475062
    %v1978 = vunpack.c.0.s8 %v1977
    %v1979 = vlaneseq
    %v1980 = vshrl.u32 %v1979, 7
    %v1981 = vsub.s32 %v1978, %v1980
    %v1982 = vrot.slane %v279, %v1981
    %v1984 = vunpack.c.l.s4 269488144
    %v1985 = vunpack.c.0.s8 %v1984
    %v1986 = vlaneseq
    %v1987 = vshrl.u32 %v1986, 7
    %v1988 = vsub.s32 %v1985, %v1987
    %v1989 = vrot.slane %v282, %v1988
    %v1991 = vunpack.c.l.s4 842150450
    %v1992 = vunpack.c.0.s8 %v1991
    %v1993 = vlaneseq
    %v1994 = vshrl.u32 %v1993, 7
    %v1995 = vsub.s32 %v1992, %v1994
    %v1996 = vrot.slane %v282, %v1995
    %v1998 = vunpack.c.l.s4 1414812756
    %v1999 = vunpack.c.0.s8 %v1998
    %v2000 = vlaneseq
    %v2001 = vshrl.u32 %v2000, 7
    %v2002 = vsub.s32 %v1999, %v2001
    %v2003 = vrot.slane %v282, %v2002
    %v2005 = vunpack.c.l.s4 1987475062
    %v2006 = vunpack.c.0.s8 %v2005
    %v2007 = vlaneseq
    %v2008 = vshrl.u32 %v2007, 7
    %v2009 = vsub.s32 %v2006, %v2008
    %v2010 = vrot.slane %v282, %v2009
    %v2012 = vunpack.c.l.s4 269488144
    %v2013 = vunpack.c.0.s8 %v2012
    %v2014 = vlaneseq
    %v2015 = vshrl.u32 %v2014, 7
    %v2016 = vsub.s32 %v2013, %v2015
    %v2017 = vrot.slane %v285, %v2016
    %v2019 = vunpack.c.l.s4 842150450
    %v2020 = vunpack.c.0.s8 %v2019
    %v2021 = vlaneseq
    %v2022 = vshrl.u32 %v2021, 7
    %v2023 = vsub.s32 %v2020, %v2022
    %v2024 = vrot.slane %v285, %v2023
    %v2026 = vunpack.c.l.s4 1414812756
    %v2027 = vunpack.c.0.s8 %v2026
    %v2028 = vlaneseq
    %v2029 = vshrl.u32 %v2028, 7
    %v2030 = vsub.s32 %v2027, %v2029
    %v2031 = vrot.slane %v285, %v2030
    %v2033 = vunpack.c.l.s4 1987475062
    %v2034 = vunpack.c.0.s8 %v2033
    %v2035 = vlaneseq
    %v2036 = vshrl.u32 %v2035, 7
    %v2037 = vsub.s32 %v2034, %v2036
    %v2038 = vrot.slane %v285, %v2037
    %v2040 = vunpack.c.l.s4 269488144
    %v2041 = vunpack.c.0.s8 %v2040
    %v2042 = vlaneseq
    %v2043 = vshrl.u32 %v2042, 7
    %v2044 = vsub.s32 %v2041, %v2043
    %v2045 = vrot.slane %v288, %v2044
    %v2047 = vunpack.c.l.s4 842150450
    %v2048 = vunpack.c.0.s8 %v2047
    %v2049 = vlaneseq
    %v2050 = vshrl.u32 %v2049, 7
    %v2051 = vsub.s32 %v2048, %v2050
    %v2052 = vrot.slane %v288, %v2051
    %v2054 = vunpack.c.l.s4 1414812756
    %v2055 = vunpack.c.0.s8 %v2054
    %v2056 = vlaneseq
    %v2057 = vshrl.u32 %v2056, 7
    %v2058 = vsub.s32 %v2055, %v2057
    %v2059 = vrot.slane %v288, %v2058
    %v2061 = vunpack.c.l.s4 1987475062
    %v2062 = vunpack.c.0.s8 %v2061
    %v2063 = vlaneseq
    %v2064 = vshrl.u32 %v2063, 7
    %v2065 = vsub.s32 %v2062, %v2064
    %v2066 = vrot.slane %v288, %v2065
    %v2068 = vunpack.c.l.s4 269488144
    %v2069 = vunpack.c.0.s8 %v2068
    %v2070 = vlaneseq
    %v2071 = vshrl.u32 %v2070, 7
    %v2072 = vsub.s32 %v2069, %v2071
    %v2073 = vrot.slane %v291, %v2072
    %v2075 = vunpack.c.l.s4 842150450
    %v2076 = vunpack.c.0.s8 %v2075
    %v2077 = vlaneseq
    %v2078 = vshrl.u32 %v2077, 7
    %v2079 = vsub.s32 %v2076, %v2078
    %v2080 = vrot.slane %v291, %v2079
    %v2082 = vunpack.c.l.s4 1414812756
    %v2083 = vunpack.c.0.s8 %v2082
    %v2084 = vlaneseq
    %v2085 = vshrl.u32 %v2084, 7
    %v2086 = vsub.s32 %v2083, %v2085
    %v2087 = vrot.slane %v291, %v2086
    %v2089 = vunpack.c.l.s4 1987475062
    %v2090 = vunpack.c.0.s8 %v2089
    %v2091 = vlaneseq
    %v2092 = vshrl.u32 %v2091, 7
    %v2093 = vsub.s32 %v2090, %v2092
    %v2094 = vrot.slane %v291, %v2093
    %v2096 = vunpack.c.l.s4 269488144
    %v2097 = vunpack.c.0.s8 %v2096
    %v2098 = vlaneseq
    %v2099 = vshrl.u32 %v2098, 7
    %v2100 = vsub.s32 %v2097, %v2099
    %v2101 = vrot.slane %v294, %v2100
    %v2103 = vunpack.c.l.s4 842150450
    %v2104 = vunpack.c.0.s8 %v2103
    %v2105 = vlaneseq
    %v2106 = vshrl.u32 %v2105, 7
    %v2107 = vsub.s32 %v2104, %v2106
    %v2108 = vrot.slane %v294, %v2107
    %v2110 = vunpack.c.l.s4 1414812756
    %v2111 = vunpack.c.0.s8 %v2110
    %v2112 = vlaneseq
    %v2113 = vshrl.u32 %v2112, 7
    %v2114 = vsub.s32 %v2111, %v2113
    %v2115 = vrot.slane %v294, %v2114
    %v2117 = vunpack.c.l.s4 1987475062
    %v2118 = vunpack.c.0.s8 %v2117
    %v2119 = vlaneseq
    %v2120 = vshrl.u32 %v2119, 7
    %v2121 = vsub.s32 %v2118, %v2120
    %v2122 = vrot.slane %v294, %v2121
    %v2124 = vunpack.c.l.s4 269488144
    %v2125 = vunpack.c.0.s8 %v2124
    %v2126 = vlaneseq
    %v2127 = vshrl.u32 %v2126, 7
    %v2128 = vsub.s32 %v2125, %v2127
    %v2129 = vrot.slane %v297, %v2128
    %v2131 = vunpack.c.l.s4 842150450
    %v2132 = vunpack.c.0.s8 %v2131
    %v2133 = vlaneseq
    %v2134 = vshrl.u32 %v2133, 7
    %v2135 = vsub.s32 %v2132, %v2134
    %v2136 = vrot.slane %v297, %v2135
    %v2138 = vunpack.c.l.s4 1414812756
    %v2139 = vunpack.c.0.s8 %v2138
    %v2140 = vlaneseq
    %v2141 = vshrl.u32 %v2140, 7
    %v2142 = vsub.s32 %v2139, %v2141
    %v2143 = vrot.slane %v297, %v2142
    %v2145 = vunpack.c.l.s4 1987475062
    %v2146 = vunpack.c.0.s8 %v2145
    %v2147 = vlaneseq
    %v2148 = vshrl.u32 %v2147, 7
    %v2149 = vsub.s32 %v2146, %v2148
    %v2150 = vrot.slane %v297, %v2149
    %v2152 = vunpack.c.l.s4 269488144
    %v2153 = vunpack.c.0.s8 %v2152
    %v2154 = vlaneseq
    %v2155 = vshrl.u32 %v2154, 7
    %v2156 = vsub.s32 %v2153, %v2155
    %v2157 = vrot.slane %v300, %v2156
    %v2159 = vunpack.c.l.s4 842150450
    %v2160 = vunpack.c.0.s8 %v2159
    %v2161 = vlaneseq
    %v2162 = vshrl.u32 %v2161, 7
    %v2163 = vsub.s32 %v2160, %v2162
    %v2164 = vrot.slane %v300, %v2163
    %v2166 = vunpack.c.l.s4 1414812756
    %v2167 = vunpack.c.0.s8 %v2166
    %v2168 = vlaneseq
    %v2169 = vshrl.u32 %v2168, 7
    %v2170 = vsub.s32 %v2167, %v2169
    %v2171 = vrot.slane %v300, %v2170
    %v2173 = vunpack.c.l.s4 1987475062
    %v2174 = vunpack.c.0.s8 %v2173
    %v2175 = vlaneseq
    %v2176 = vshrl.u32 %v2175, 7
    %v2177 = vsub.s32 %v2174, %v2176
    %v2178 = vrot.slane %v300, %v2177
    %v2180 = vunpack.c.l.s4 269488144
    %v2181 = vunpack.c.0.s8 %v2180
    %v2182 = vlaneseq
    %v2183 = vshrl.u32 %v2182, 7
    %v2184 = vsub.s32 %v2181, %v2183
    %v2185 = vrot.slane %v303, %v2184
    %v2187 = vunpack.c.l.s4 842150450
    %v2188 = vunpack.c.0.s8 %v2187
    %v2189 = vlaneseq
    %v2190 = vshrl.u32 %v2189, 7
    %v2191 = vsub.s32 %v2188, %v2190
    %v2192 = vrot.slane %v303, %v2191
    %v2194 = vunpack.c.l.s4 1414812756
    %v2195 = vunpack.c.0.s8 %v2194
    %v2196 = vlaneseq
    %v2197 = vshrl.u32 %v2196, 7
    %v2198 = vsub.s32 %v2195, %v2197
    %v2199 = vrot.slane %v303, %v2198
    %v2201 = vunpack.c.l.s4 1987475062
    %v2202 = vunpack.c.0.s8 %v2201
    %v2203 = vlaneseq
    %v2204 = vshrl.u32 %v2203, 7
    %v2205 = vsub.s32 %v2202, %v2204
    %v2206 = vrot.slane %v303, %v2205
    %v2208 = vunpack.c.l.s4 269488144
    %v2209 = vunpack.c.0.s8 %v2208
    %v2210 = vlaneseq
    %v2211 = vshrl.u32 %v2210, 7
    %v2212 = vsub.s32 %v2209, %v2211
    %v2213 = vrot.slane %v306, %v2212
    %v2215 = vunpack.c.l.s4 842150450
    %v2216 = vunpack.c.0.s8 %v2215
    %v2217 = vlaneseq
    %v2218 = vshrl.u32 %v2217, 7
    %v2219 = vsub.s32 %v2216, %v2218
    %v2220 = vrot.slane %v306, %v2219
    %v2222 = vunpack.c.l.s4 1414812756
    %v2223 = vunpack.c.0.s8 %v2222
    %v2224 = vlaneseq
    %v2225 = vshrl.u32 %v2224, 7
    %v2226 = vsub.s32 %v2223, %v2225
    %v2227 = vrot.slane %v306, %v2226
    %v2229 = vunpack.c.l.s4 1987475062
    %v2230 = vunpack.c.0.s8 %v2229
    %v2231 = vlaneseq
    %v2232 = vshrl.u32 %v2231, 7
    %v2233 = vsub.s32 %v2230, %v2232
    %v2234 = vrot.slane %v306, %v2233
    %v2236 = vunpack.c.l.s4 269488144
    %v2237 = vunpack.c.0.s8 %v2236
    %v2238 = vlaneseq
    %v2239 = vshrl.u32 %v2238, 7
    %v2240 = vsub.s32 %v2237, %v2239
    %v2241 = vrot.slane %v309, %v2240
    %v2243 = vunpack.c.l.s4 842150450
    %v2244 = vunpack.c.0.s8 %v2243
    %v2245 = vlaneseq
    %v2246 = vshrl.u32 %v2245, 7
    %v2247 = vsub.s32 %v2244, %v2246
    %v2248 = vrot.slane %v309, %v2247
    %v2250 = vunpack.c.l.s4 1414812756
    %v2251 = vunpack.c.0.s8 %v2250
    %v2252 = vlaneseq
    %v2253 = vshrl.u32 %v2252, 7
    %v2254 = vsub.s32 %v2251, %v2253
    %v2255 = vrot.slane %v309, %v2254
    %v2257 = vunpack.c.l.s4 1987475062
    %v2258 = vunpack.c.0.s8 %v2257
    %v2259 = vlaneseq
    %v2260 = vshrl.u32 %v2259, 7
    %v2261 = vsub.s32 %v2258, %v2260
    %v2262 = vrot.slane %v309, %v2261
    %v2264 = vunpack.c.l.s4 269488144
    %v2265 = vunpack.c.0.s8 %v2264
    %v2266 = vlaneseq
    %v2267 = vshrl.u32 %v2266, 7
    %v2268 = vsub.s32 %v2265, %v2267
    %v2269 = vrot.slane %v312, %v2268
    %v2271 = vunpack.c.l.s4 842150450
    %v2272 = vunpack.c.0.s8 %v2271
    %v2273 = vlaneseq
    %v2274 = vshrl.u32 %v2273, 7
    %v2275 = vsub.s32 %v2272, %v2274
    %v2276 = vrot.slane %v312, %v2275
    %v2278 = vunpack.c.l.s4 1414812756
    %v2279 = vunpack.c.0.s8 %v2278
    %v2280 = vlaneseq
    %v2281 = vshrl.u32 %v2280, 7
    %v2282 = vsub.s32 %v2279, %v2281
    %v2283 = vrot.slane %v312, %v2282
    %v2285 = vunpack.c.l.s4 1987475062
    %v2286 = vunpack.c.0.s8 %v2285
    %v2287 = vlaneseq
    %v2288 = vshrl.u32 %v2287, 7
    %v2289 = vsub.s32 %v2286, %v2288
    %v2290 = vrot.slane %v312, %v2289
    %v2292 = vunpack.c.l.s4 269488144
    %v2293 = vunpack.c.0.s8 %v2292
    %v2294 = vlaneseq
    %v2295 = vshrl.u32 %v2294, 7
    %v2296 = vsub.s32 %v2293, %v2295
    %v2297 = vrot.slane %v315, %v2296
    %v2299 = vunpack.c.l.s4 842150450
    %v2300 = vunpack.c.0.s8 %v2299
    %v2301 = vlaneseq
    %v2302 = vshrl.u32 %v2301, 7
    %v2303 = vsub.s32 %v2300, %v2302
    %v2304 = vrot.slane %v315, %v2303
    %v2306 = vunpack.c.l.s4 1414812756
    %v2307 = vunpack.c.0.s8 %v2306
    %v2308 = vlaneseq
    %v2309 = vshrl.u32 %v2308, 7
    %v2310 = vsub.s32 %v2307, %v2309
    %v2311 = vrot.slane %v315, %v2310
    %v2313 = vunpack.c.l.s4 1987475062
    %v2314 = vunpack.c.0.s8 %v2313
    %v2315 = vlaneseq
    %v2316 = vshrl.u32 %v2315, 7
    %v2317 = vsub.s32 %v2314, %v2316
    %v2318 = vrot.slane %v315, %v2317
    %v2320 = vunpack.c.l.s4 269488144
    %v2321 = vunpack.c.0.s8 %v2320
    %v2322 = vlaneseq
    %v2323 = vshrl.u32 %v2322, 7
    %v2324 = vsub.s32 %v2321, %v2323
    %v2325 = vrot.slane %v318, %v2324
    %v2327 = vunpack.c.l.s4 842150450
    %v2328 = vunpack.c.0.s8 %v2327
    %v2329 = vlaneseq
    %v2330 = vshrl.u32 %v2329, 7
    %v2331 = vsub.s32 %v2328, %v2330
    %v2332 = vrot.slane %v318, %v2331
    %v2334 = vunpack.c.l.s4 1414812756
    %v2335 = vunpack.c.0.s8 %v2334
    %v2336 = vlaneseq
    %v2337 = vshrl.u32 %v2336, 7
    %v2338 = vsub.s32 %v2335, %v2337
    %v2339 = vrot.slane %v318, %v2338
    %v2341 = vunpack.c.l.s4 1987475062
    %v2342 = vunpack.c.0.s8 %v2341
    %v2343 = vlaneseq
    %v2344 = vshrl.u32 %v2343, 7
    %v2345 = vsub.s32 %v2342, %v2344
    %v2346 = vrot.slane %v318, %v2345
    %v2348 = vunpack.c.l.s4 269488144
    %v2349 = vunpack.c.0.s8 %v2348
    %v2350 = vlaneseq
    %v2351 = vshrl.u32 %v2350, 7
    %v2352 = vsub.s32 %v2349, %v2351
    %v2353 = vrot.slane %v321, %v2352
    %v2355 = vunpack.c.l.s4 842150450
    %v2356 = vunpack.c.0.s8 %v2355
    %v2357 = vlaneseq
    %v2358 = vshrl.u32 %v2357, 7
    %v2359 = vsub.s32 %v2356, %v2358
    %v2360 = vrot.slane %v321, %v2359
    %v2362 = vunpack.c.l.s4 1414812756
    %v2363 = vunpack.c.0.s8 %v2362
    %v2364 = vlaneseq
    %v2365 = vshrl.u32 %v2364, 7
    %v2366 = vsub.s32 %v2363, %v2365
    %v2367 = vrot.slane %v321, %v2366
    %v2369 = vunpack.c.l.s4 1987475062
    %v2370 = vunpack.c.0.s8 %v2369
    %v2371 = vlaneseq
    %v2372 = vshrl.u32 %v2371, 7
    %v2373 = vsub.s32 %v2370, %v2372
    %v2374 = vrot.slane %v321, %v2373
    %v2376 = vunpack.c.l.s4 269488144
    %v2377 = vunpack.c.0.s8 %v2376
    %v2378 = vlaneseq
    %v2379 = vshrl.u32 %v2378, 7
    %v2380 = vsub.s32 %v2377, %v2379
    %v2381 = vrot.slane %v324, %v2380
    %v2383 = vunpack.c.l.s4 842150450
    %v2384 = vunpack.c.0.s8 %v2383
    %v2385 = vlaneseq
    %v2386 = vshrl.u32 %v2385, 7
    %v2387 = vsub.s32 %v2384, %v2386
    %v2388 = vrot.slane %v324, %v2387
    %v2390 = vunpack.c.l.s4 1414812756
    %v2391 = vunpack.c.0.s8 %v2390
    %v2392 = vlaneseq
    %v2393 = vshrl.u32 %v2392, 7
    %v2394 = vsub.s32 %v2391, %v2393
    %v2395 = vrot.slane %v324, %v2394
    %v2397 = vunpack.c.l.s4 1987475062
    %v2398 = vunpack.c.0.s8 %v2397
    %v2399 = vlaneseq
    %v2400 = vshrl.u32 %v2399, 7
    %v2401 = vsub.s32 %v2398, %v2400
    %v2402 = vrot.slane %v324, %v2401
    %v2404 = vunpack.c.l.s4 269488144
    %v2405 = vunpack.c.0.s8 %v2404
    %v2406 = vlaneseq
    %v2407 = vshrl.u32 %v2406, 7
    %v2408 = vsub.s32 %v2405, %v2407
    %v2409 = vrot.slane %v327, %v2408
    %v2411 = vunpack.c.l.s4 842150450
    %v2412 = vunpack.c.0.s8 %v2411
    %v2413 = vlaneseq
    %v2414 = vshrl.u32 %v2413, 7
    %v2415 = vsub.s32 %v2412, %v2414
    %v2416 = vrot.slane %v327, %v2415
    %v2418 = vunpack.c.l.s4 1414812756
    %v2419 = vunpack.c.0.s8 %v2418
    %v2420 = vlaneseq
    %v2421 = vshrl.u32 %v2420, 7
    %v2422 = vsub.s32 %v2419, %v2421
    %v2423 = vrot.slane %v327, %v2422
    %v2425 = vunpack.c.l.s4 1987475062
    %v2426 = vunpack.c.0.s8 %v2425
    %v2427 = vlaneseq
    %v2428 = vshrl.u32 %v2427, 7
    %v2429 = vsub.s32 %v2426, %v2428
    %v2430 = vrot.slane %v327, %v2429
    %v2432 = vunpack.c.l.s4 269488144
    %v2433 = vunpack.c.0.s8 %v2432
    %v2434 = vlaneseq
    %v2435 = vshrl.u32 %v2434, 7
    %v2436 = vsub.s32 %v2433, %v2435
    %v2437 = vrot.slane %v330, %v2436
    %v2439 = vunpack.c.l.s4 842150450
    %v2440 = vunpack.c.0.s8 %v2439
    %v2441 = vlaneseq
    %v2442 = vshrl.u32 %v2441, 7
    %v2443 = vsub.s32 %v2440, %v2442
    %v2444 = vrot.slane %v330, %v2443
    %v2446 = vunpack.c.l.s4 1414812756
    %v2447 = vunpack.c.0.s8 %v2446
    %v2448 = vlaneseq
    %v2449 = vshrl.u32 %v2448, 7
    %v2450 = vsub.s32 %v2447, %v2449
    %v2451 = vrot.slane %v330, %v2450
    %v2453 = vunpack.c.l.s4 1987475062
    %v2454 = vunpack.c.0.s8 %v2453
    %v2455 = vlaneseq
    %v2456 = vshrl.u32 %v2455, 7
    %v2457 = vsub.s32 %v2454, %v2456
    %v2458 = vrot.slane %v330, %v2457
    %v2460 = vunpack.c.l.s4 269488144
    %v2461 = vunpack.c.0.s8 %v2460
    %v2462 = vlaneseq
    %v2463 = vshrl.u32 %v2462, 7
    %v2464 = vsub.s32 %v2461, %v2463
    %v2465 = vrot.slane %v333, %v2464
    %v2467 = vunpack.c.l.s4 842150450
    %v2468 = vunpack.c.0.s8 %v2467
    %v2469 = vlaneseq
    %v2470 = vshrl.u32 %v2469, 7
    %v2471 = vsub.s32 %v2468, %v2470
    %v2472 = vrot.slane %v333, %v2471
    %v2474 = vunpack.c.l.s4 1414812756
    %v2475 = vunpack.c.0.s8 %v2474
    %v2476 = vlaneseq
    %v2477 = vshrl.u32 %v2476, 7
    %v2478 = vsub.s32 %v2475, %v2477
    %v2479 = vrot.slane %v333, %v2478
    %v2481 = vunpack.c.l.s4 1987475062
    %v2482 = vunpack.c.0.s8 %v2481
    %v2483 = vlaneseq
    %v2484 = vshrl.u32 %v2483, 7
    %v2485 = vsub.s32 %v2482, %v2484
    %v2486 = vrot.slane %v333, %v2485
    %v2488 = vunpack.c.l.s4 269488144
    %v2489 = vunpack.c.0.s8 %v2488
    %v2490 = vlaneseq
    %v2491 = vshrl.u32 %v2490, 7
    %v2492 = vsub.s32 %v2489, %v2491
    %v2493 = vrot.slane %v336, %v2492
    %v2495 = vunpack.c.l.s4 842150450
    %v2496 = vunpack.c.0.s8 %v2495
    %v2497 = vlaneseq
    %v2498 = vshrl.u32 %v2497, 7
    %v2499 = vsub.s32 %v2496, %v2498
    %v2500 = vrot.slane %v336, %v2499
    %v2502 = vunpack.c.l.s4 1414812756
    %v2503 = vunpack.c.0.s8 %v2502
    %v2504 = vlaneseq
    %v2505 = vshrl.u32 %v2504, 7
    %v2506 = vsub.s32 %v2503, %v2505
    %v2507 = vrot.slane %v336, %v2506
    %v2509 = vunpack.c.l.s4 1987475062
    %v2510 = vunpack.c.0.s8 %v2509
    %v2511 = vlaneseq
    %v2512 = vshrl.u32 %v2511, 7
    %v2513 = vsub.s32 %v2510, %v2512
    %v2514 = vrot.slane %v336, %v2513
    %v2516 = vunpack.c.l.s4 269488144
    %v2517 = vunpack.c.0.s8 %v2516
    %v2518 = vlaneseq
    %v2519 = vshrl.u32 %v2518, 7
    %v2520 = vsub.s32 %v2517, %v2519
    %v2521 = vrot.slane %v339, %v2520
    %v2523 = vunpack.c.l.s4 842150450
    %v2524 = vunpack.c.0.s8 %v2523
    %v2525 = vlaneseq
    %v2526 = vshrl.u32 %v2525, 7
    %v2527 = vsub.s32 %v2524, %v2526
    %v2528 = vrot.slane %v339, %v2527
    %v2530 = vunpack.c.l.s4 1414812756
    %v2531 = vunpack.c.0.s8 %v2530
    %v2532 = vlaneseq
    %v2533 = vshrl.u32 %v2532, 7
    %v2534 = vsub.s32 %v2531, %v2533
    %v2535 = vrot.slane %v339, %v2534
    %v2537 = vunpack.c.l.s4 1987475062
    %v2538 = vunpack.c.0.s8 %v2537
    %v2539 = vlaneseq
    %v2540 = vshrl.u32 %v2539, 7
    %v2541 = vsub.s32 %v2538, %v2540
    %v2542 = vrot.slane %v339, %v2541
    %v2544 = vunpack.c.l.s4 269488144
    %v2545 = vunpack.c.0.s8 %v2544
    %v2546 = vlaneseq
    %v2547 = vshrl.u32 %v2546, 7
    %v2548 = vsub.s32 %v2545, %v2547
    %v2549 = vrot.slane %v342, %v2548
    %v2551 = vunpack.c.l.s4 842150450
    %v2552 = vunpack.c.0.s8 %v2551
    %v2553 = vlaneseq
    %v2554 = vshrl.u32 %v2553, 7
    %v2555 = vsub.s32 %v2552, %v2554
    %v2556 = vrot.slane %v342, %v2555
    %v2558 = vunpack.c.l.s4 1414812756
    %v2559 = vunpack.c.0.s8 %v2558
    %v2560 = vlaneseq
    %v2561 = vshrl.u32 %v2560, 7
    %v2562 = vsub.s32 %v2559, %v2561
    %v2563 = vrot.slane %v342, %v2562
    %v2565 = vunpack.c.l.s4 1987475062
    %v2566 = vunpack.c.0.s8 %v2565
    %v2567 = vlaneseq
    %v2568 = vshrl.u32 %v2567, 7
    %v2569 = vsub.s32 %v2566, %v2568
    %v2570 = vrot.slane %v342, %v2569
    %v2572 = vunpack.c.l.s4 269488144
    %v2573 = vunpack.c.0.s8 %v2572
    %v2574 = vlaneseq
    %v2575 = vshrl.u32 %v2574, 7
    %v2576 = vsub.s32 %v2573, %v2575
    %v2577 = vrot.slane %v345, %v2576
    %v2579 = vunpack.c.l.s4 842150450
    %v2580 = vunpack.c.0.s8 %v2579
    %v2581 = vlaneseq
    %v2582 = vshrl.u32 %v2581, 7
    %v2583 = vsub.s32 %v2580, %v2582
    %v2584 = vrot.slane %v345, %v2583
    %v2586 = vunpack.c.l.s4 1414812756
    %v2587 = vunpack.c.0.s8 %v2586
    %v2588 = vlaneseq
    %v2589 = vshrl.u32 %v2588, 7
    %v2590 = vsub.s32 %v2587, %v2589
    %v2591 = vrot.slane %v345, %v2590
    %v2593 = vunpack.c.l.s4 1987475062
    %v2594 = vunpack.c.0.s8 %v2593
    %v2595 = vlaneseq
    %v2596 = vshrl.u32 %v2595, 7
    %v2597 = vsub.s32 %v2594, %v2596
    %v2598 = vrot.slane %v345, %v2597
    %v2600 = vunpack.c.l.s4 269488144
    %v2601 = vunpack.c.0.s8 %v2600
    %v2602 = vlaneseq
    %v2603 = vshrl.u32 %v2602, 7
    %v2604 = vsub.s32 %v2601, %v2603
    %v2605 = vrot.slane %v348, %v2604
    %v2607 = vunpack.c.l.s4 842150450
    %v2608 = vunpack.c.0.s8 %v2607
    %v2609 = vlaneseq
    %v2610 = vshrl.u32 %v2609, 7
    %v2611 = vsub.s32 %v2608, %v2610
    %v2612 = vrot.slane %v348, %v2611
    %v2614 = vunpack.c.l.s4 1414812756
    %v2615 = vunpack.c.0.s8 %v2614
    %v2616 = vlaneseq
    %v2617 = vshrl.u32 %v2616, 7
    %v2618 = vsub.s32 %v2615, %v2617
    %v2619 = vrot.slane %v348, %v2618
    %v2621 = vunpack.c.l.s4 1987475062
    %v2622 = vunpack.c.0.s8 %v2621
    %v2623 = vlaneseq
    %v2624 = vshrl.u32 %v2623, 7
    %v2625 = vsub.s32 %v2622, %v2624
    %v2626 = vrot.slane %v348, %v2625
    %v2628 = vunpack.c.l.s4 269488144
    %v2629 = vunpack.c.0.s8 %v2628
    %v2630 = vlaneseq
    %v2631 = vshrl.u32 %v2630, 7
    %v2632 = vsub.s32 %v2629, %v2631
    %v2633 = vrot.slane %v351, %v2632
    %v2635 = vunpack.c.l.s4 842150450
    %v2636 = vunpack.c.0.s8 %v2635
    %v2637 = vlaneseq
    %v2638 = vshrl.u32 %v2637, 7
    %v2639 = vsub.s32 %v2636, %v2638
    %v2640 = vrot.slane %v351, %v2639
    %v2642 = vunpack.c.l.s4 1414812756
    %v2643 = vunpack.c.0.s8 %v2642
    %v2644 = vlaneseq
    %v2645 = vshrl.u32 %v2644, 7
    %v2646 = vsub.s32 %v2643, %v2645
    %v2647 = vrot.slane %v351, %v2646
    %v2649 = vunpack.c.l.s4 1987475062
    %v2650 = vunpack.c.0.s8 %v2649
    %v2651 = vlaneseq
    %v2652 = vshrl.u32 %v2651, 7
    %v2653 = vsub.s32 %v2650, %v2652
    %v2654 = vrot.slane %v351, %v2653
    %v2656 = vunpack.c.l.s4 269488144
    %v2657 = vunpack.c.0.s8 %v2656
    %v2658 = vlaneseq
    %v2659 = vshrl.u32 %v2658, 7
    %v2660 = vsub.s32 %v2657, %v2659
    %v2661 = vrot.slane %v354, %v2660
    %v2663 = vunpack.c.l.s4 842150450
    %v2664 = vunpack.c.0.s8 %v2663
    %v2665 = vlaneseq
    %v2666 = vshrl.u32 %v2665, 7
    %v2667 = vsub.s32 %v2664, %v2666
    %v2668 = vrot.slane %v354, %v2667
    %v2670 = vunpack.c.l.s4 1414812756
    %v2671 = vunpack.c.0.s8 %v2670
    %v2672 = vlaneseq
    %v2673 = vshrl.u32 %v2672, 7
    %v2674 = vsub.s32 %v2671, %v2673
    %v2675 = vrot.slane %v354, %v2674
    %v2677 = vunpack.c.l.s4 1987475062
    %v2678 = vunpack.c.0.s8 %v2677
    %v2679 = vlaneseq
    %v2680 = vshrl.u32 %v2679, 7
    %v2681 = vsub.s32 %v2678, %v2680
    %v2682 = vrot.slane %v354, %v2681
    %v2684 = vunpack.c.l.s4 269488144
    %v2685 = vunpack.c.0.s8 %v2684
    %v2686 = vlaneseq
    %v2687 = vshrl.u32 %v2686, 7
    %v2688 = vsub.s32 %v2685, %v2687
    %v2689 = vrot.slane %v357, %v2688
    %v2691 = vunpack.c.l.s4 842150450
    %v2692 = vunpack.c.0.s8 %v2691
    %v2693 = vlaneseq
    %v2694 = vshrl.u32 %v2693, 7
    %v2695 = vsub.s32 %v2692, %v2694
    %v2696 = vrot.slane %v357, %v2695
    %v2698 = vunpack.c.l.s4 1414812756
    %v2699 = vunpack.c.0.s8 %v2698
    %v2700 = vlaneseq
    %v2701 = vshrl.u32 %v2700, 7
    %v2702 = vsub.s32 %v2699, %v2701
    %v2703 = vrot.slane %v357, %v2702
    %v2705 = vunpack.c.l.s4 1987475062
    %v2706 = vunpack.c.0.s8 %v2705
    %v2707 = vlaneseq
    %v2708 = vshrl.u32 %v2707, 7
    %v2709 = vsub.s32 %v2706, %v2708
    %v2710 = vrot.slane %v357, %v2709
    %v2712 = vunpack.c.l.s4 269488144
    %v2713 = vunpack.c.0.s8 %v2712
    %v2714 = vlaneseq
    %v2715 = vshrl.u32 %v2714, 7
    %v2716 = vsub.s32 %v2713, %v2715
    %v2717 = vrot.slane %v360, %v2716
    %v2719 = vunpack.c.l.s4 842150450
    %v2720 = vunpack.c.0.s8 %v2719
    %v2721 = vlaneseq
    %v2722 = vshrl.u32 %v2721, 7
    %v2723 = vsub.s32 %v2720, %v2722
    %v2724 = vrot.slane %v360, %v2723
    %v2726 = vunpack.c.l.s4 1414812756
    %v2727 = vunpack.c.0.s8 %v2726
    %v2728 = vlaneseq
    %v2729 = vshrl.u32 %v2728, 7
    %v2730 = vsub.s32 %v2727, %v2729
    %v2731 = vrot.slane %v360, %v2730
    %v2733 = vunpack.c.l.s4 1987475062
    %v2734 = vunpack.c.0.s8 %v2733
    %v2735 = vlaneseq
    %v2736 = vshrl.u32 %v2735, 7
    %v2737 = vsub.s32 %v2734, %v2736
    %v2738 = vrot.slane %v360, %v2737
    %v2739 = vcombine.low %v449, %v456
    %v2740 = vcombine.low %v463, %v470
    %v2742 = vunpack.c.l.s4 1983009808
    %v2743 = vunpack.c.0.s8 %v2742
    %v2744 = vlaneseq
    %v2745 = vshrl.u32 %v2744, 7
    %v2746 = vsub.s32 %v2743, %v2745
    %v2747 = vrot.slane %v2739, %v2746
    %v2749 = vunpack.c.l.s4 1983009808
    %v2750 = vunpack.c.0.s8 %v2749
    %v2751 = vlaneseq
    %v2752 = vshrl.u32 %v2751, 7
    %v2753 = vsub.s32 %v2750, %v2752
    %v2754 = vrot.slane %v2740, %v2753
    %v2755 = vcombine.low %v2747, %v2754
    %v2756 = vcombine.low %v477, %v484
    %v2757 = vcombine.low %v491, %v498
    %v2759 = vunpack.c.l.s4 1983009808
    %v2760 = vunpack.c.0.s8 %v2759
    %v2761 = vlaneseq
    %v2762 = vshrl.u32 %v2761, 7
    %v2763 = vsub.s32 %v2760, %v2762
    %v2764 = vrot.slane %v2756, %v2763
    %v2766 = vunpack.c.l.s4 1983009808
    %v2767 = vunpack.c.0.s8 %v2766
    %v2768 = vlaneseq
    %v2769 = vshrl.u32 %v2768, 7
    %v2770 = vsub.s32 %v2767, %v2769
    %v2771 = vrot.slane %v2757, %v2770
    %v2772 = vcombine.low %v2764, %v2771
    %v2773 = vcombine.low %v505, %v512
    %v2774 = vcombine.low %v519, %v526
    %v2776 = vunpack.c.l.s4 1983009808
    %v2777 = vunpack.c.0.s8 %v2776
    %v2778 = vlaneseq
    %v2779 = vshrl.u32 %v2778, 7
    %v2780 = vsub.s32 %v2777, %v2779
    %v2781 = vrot.slane %v2773, %v2780
    %v2783 = vunpack.c.l.s4 1983009808
    %v2784 = vunpack.c.0.s8 %v2783
    %v2785 = vlaneseq
    %v2786 = vshrl.u32 %v2785, 7
    %v2787 = vsub.s32 %v2784, %v2786
    %v2788 = vrot.slane %v2774, %v2787
    %v2789 = vcombine.low %v2781, %v2788
    %v2790 = vcombine.low %v533, %v540
    %v2791 = vcombine.low %v547, %v554
    %v2793 = vunpack.c.l.s4 1983009808
    %v2794 = vunpack.c.0.s8 %v2793
    %v2795 = vlaneseq
    %v2796 = vshrl.u32 %v2795, 7
    %v2797 = vsub.s32 %v2794, %v2796
    %v2798 = vrot.slane %v2790, %v2797
    %v2800 = vunpack.c.l.s4 1983009808
    %v2801 = vunpack.c.0.s8 %v2800
    %v2802 = vlaneseq
    %v2803 = vshrl.u32 %v2802, 7
    %v2804 = vsub.s32 %v2801, %v2803
    %v2805 = vrot.slane %v2791, %v2804
    %v2806 = vcombine.low %v2798, %v2805
    %v2807 = vcombine.low %v561, %v568
    %v2808 = vcombine.low %v575, %v582
    %v2810 = vunpack.c.l.s4 1983009808
    %v2811 = vunpack.c.0.s8 %v2810
    %v2812 = vlaneseq
    %v2813 = vshrl.u32 %v2812, 7
    %v2814 = vsub.s32 %v2811, %v2813
    %v2815 = vrot.slane %v2807, %v2814
    %v2817 = vunpack.c.l.s4 1983009808
    %v2818 = vunpack.c.0.s8 %v2817
    %v2819 = vlaneseq
    %v2820 = vshrl.u32 %v2819, 7
    %v2821 = vsub.s32 %v2818, %v2820
    %v2822 = vrot.slane %v2808, %v2821
    %v2823 = vcombine.low %v2815, %v2822
    %v2824 = vcombine.low %v589, %v596
    %v2825 = vcombine.low %v603, %v610
    %v2827 = vunpack.c.l.s4 1983009808
    %v2828 = vunpack.c.0.s8 %v2827
    %v2829 = vlaneseq
    %v2830 = vshrl.u32 %v2829, 7
    %v2831 = vsub.s32 %v2828, %v2830
    %v2832 = vrot.slane %v2824, %v2831
    %v2834 = vunpack.c.l.s4 1983009808
    %v2835 = vunpack.c.0.s8 %v2834
    %v2836 = vlaneseq
    %v2837 = vshrl.u32 %v2836, 7
    %v2838 = vsub.s32 %v2835, %v2837
    %v2839 = vrot.slane %v2825, %v2838
    %v2840 = vcombine.low %v2832, %v2839
    %v2841 = vcombine.low %v617, %v624
    %v2842 = vcombine.low %v631, %v638
    %v2844 = vunpack.c.l.s4 1983009808
    %v2845 = vunpack.c.0.s8 %v2844
    %v2846 = vlaneseq
    %v2847 = vshrl.u32 %v2846, 7
    %v2848 = vsub.s32 %v2845, %v2847
    %v2849 = vrot.slane %v2841, %v2848
    %v2851 = vunpack.c.l.s4 1983009808
    %v2852 = vunpack.c.0.s8 %v2851
    %v2853 = vlaneseq
    %v2854 = vshrl.u32 %v2853, 7
    %v2855 = vsub.s32 %v2852, %v2854
    %v2856 = vrot.slane %v2842, %v2855
    %v2857 = vcombine.low %v2849, %v2856
    %v2858 = vcombine.low %v645, %v652
    %v2859 = vcombine.low %v659, %v666
    %v2861 = vunpack.c.l.s4 1983009808
    %v2862 = vunpack.c.0.s8 %v2861
    %v2863 = vlaneseq
    %v2864 = vshrl.u32 %v2863, 7
    %v2865 = vsub.s32 %v2862, %v2864
    %v2866 = vrot.slane %v2858, %v2865
    %v2868 = vunpack.c.l.s4 1983009808
    %v2869 = vunpack.c.0.s8 %v2868
    %v2870 = vlaneseq
    %v2871 = vshrl.u32 %v2870, 7
    %v2872 = vsub.s32 %v2869, %v2871
    %v2873 = vrot.slane %v2859, %v2872
    %v2874 = vcombine.low %v2866, %v2873
    %v2875 = vcombine.low %v673, %v680
    %v2876 = vcombine.low %v687, %v694
    %v2878 = vunpack.c.l.s4 1983009808
    %v2879 = vunpack.c.0.s8 %v2878
    %v2880 = vlaneseq
    %v2881 = vshrl.u32 %v2880, 7
    %v2882 = vsub.s32 %v2879, %v2881
    %v2883 = vrot.slane %v2875, %v2882
    %v2885 = vunpack.c.l.s4 1983009808
    %v2886 = vunpack.c.0.s8 %v2885
    %v2887 = vlaneseq
    %v2888 = vshrl.u32 %v2887, 7
    %v2889 = vsub.s32 %v2886, %v2888
    %v2890 = vrot.slane %v2876, %v2889
    %v2891 = vcombine.low %v2883, %v2890
    %v2892 = vcombine.low %v701, %v708
    %v2893 = vcombine.low %v715, %v722
    %v2895 = vunpack.c.l.s4 1983009808
    %v2896 = vunpack.c.0.s8 %v2895
    %v2897 = vlaneseq
    %v2898 = vshrl.u32 %v2897, 7
    %v2899 = vsub.s32 %v2896, %v2898
    %v2900 = vrot.slane %v2892, %v2899
    %v2902 = vunpack.c.l.s4 1983009808
    %v2903 = vunpack.c.0.s8 %v2902
    %v2904 = vlaneseq
    %v2905 = vshrl.u32 %v2904, 7
    %v2906 = vsub.s32 %v2903, %v2905
    %v2907 = vrot.slane %v2893, %v2906
    %v2908 = vcombine.low %v2900, %v2907
    %v2909 = vcombine.low %v729, %v736
    %v2910 = vcombine.low %v743, %v750
    %v2912 = vunpack.c.l.s4 1983009808
    %v2913 = vunpack.c.0.s8 %v2912
    %v2914 = vlaneseq
    %v2915 = vshrl.u32 %v2914, 7
    %v2916 = vsub.s32 %v2913, %v2915
    %v2917 = vrot.slane %v2909, %v2916
    %v2919 = vunpack.c.l.s4 1983009808
    %v2920 = vunpack.c.0.s8 %v2919
    %v2921 = vlaneseq
    %v2922 = vshrl.u32 %v2921, 7
    %v2923 = vsub.s32 %v2920, %v2922
    %v2924 = vrot.slane %v2910, %v2923
    %v2925 = vcombine.low %v2917, %v2924
    %v2926 = vcombine.low %v757, %v764
    %v2927 = vcombine.low %v771, %v778
    %v2929 = vunpack.c.l.s4 1983009808
    %v2930 = vunpack.c.0.s8 %v2929
    %v2931 = vlaneseq
    %v2932 = vshrl.u32 %v2931, 7
    %v2933 = vsub.s32 %v2930, %v2932
    %v2934 = vrot.slane %v2926, %v2933
    %v2936 = vunpack.c.l.s4 1983009808
    %v2937 = vunpack.c.0.s8 %v2936
    %v2938 = vlaneseq
    %v2939 = vshrl.u32 %v2938, 7
    %v2940 = vsub.s32 %v2937, %v2939
    %v2941 = vrot.slane %v2927, %v2940
    %v2942 = vcombine.low %v2934, %v2941
    %v2943 = vcombine.low %v785, %v792
    %v2944 = vcombine.low %v799, %v806
    %v2946 = vunpack.c.l.s4 1983009808
    %v2947 = vunpack.c.0.s8 %v2946
    %v2948 = vlaneseq
    %v2949 = vshrl.u32 %v2948, 7
    %v2950 = vsub.s32 %v2947, %v2949
    %v2951 = vrot.slane %v2943, %v2950
    %v2953 = vunpack.c.l.s4 1983009808
    %v2954 = vunpack.c.0.s8 %v2953
    %v2955 = vlaneseq
    %v2956 = vshrl.u32 %v2955, 7
    %v2957 = vsub.s32 %v2954, %v2956
    %v2958 = vrot.slane %v2944, %v2957
    %v2959 = vcombine.low %v2951, %v2958
    %v2960 = vcombine.low %v813, %v820
    %v2961 = vcombine.low %v827, %v834
    %v2963 = vunpack.c.l.s4 1983009808
    %v2964 = vunpack.c.0.s8 %v2963
    %v2965 = vlaneseq
    %v2966 = vshrl.u32 %v2965, 7
    %v2967 = vsub.s32 %v2964, %v2966
    %v2968 = vrot.slane %v2960, %v2967
    %v2970 = vunpack.c.l.s4 1983009808
    %v2971 = vunpack.c.0.s8 %v2970
    %v2972 = vlaneseq
    %v2973 = vshrl.u32 %v2972, 7
    %v2974 = vsub.s32 %v2971, %v2973
    %v2975 = vrot.slane %v2961, %v2974
    %v2976 = vcombine.low %v2968, %v2975
    %v2977 = vcombine.low %v841, %v848
    %v2978 = vcombine.low %v855, %v862
    %v2980 = vunpack.c.l.s4 1983009808
    %v2981 = vunpack.c.0.s8 %v2980
    %v2982 = vlaneseq
    %v2983 = vshrl.u32 %v2982, 7
    %v2984 = vsub.s32 %v2981, %v2983
    %v2985 = vrot.slane %v2977, %v2984
    %v2987 = vunpack.c.l.s4 1983009808
    %v2988 = vunpack.c.0.s8 %v2987
    %v2989 = vlaneseq
    %v2990 = vshrl.u32 %v2989, 7
    %v2991 = vsub.s32 %v2988, %v2990
    %v2992 = vrot.slane %v2978, %v2991
    %v2993 = vcombine.low %v2985, %v2992
    %v2994 = vcombine.low %v869, %v876
    %v2995 = vcombine.low %v883, %v890
    %v2997 = vunpack.c.l.s4 1983009808
    %v2998 = vunpack.c.0.s8 %v2997
    %v2999 = vlaneseq
    %v3000 = vshrl.u32 %v2999, 7
    %v3001 = vsub.s32 %v2998, %v3000
    %v3002 = vrot.slane %v2994, %v3001
    %v3004 = vunpack.c.l.s4 1983009808
    %v3005 = vunpack.c.0.s8 %v3004
    %v3006 = vlaneseq
    %v3007 = vshrl.u32 %v3006, 7
    %v3008 = vsub.s32 %v3005, %v3007
    %v3009 = vrot.slane %v2995, %v3008
    %v3010 = vcombine.low %v3002, %v3009
    %v3011 = vcombine.low %v897, %v904
    %v3012 = vcombine.low %v911, %v918
    %v3014 = vunpack.c.l.s4 1983009808
    %v3015 = vunpack.c.0.s8 %v3014
    %v3016 = vlaneseq
    %v3017 = vshrl.u32 %v3016, 7
    %v3018 = vsub.s32 %v3015, %v3017
    %v3019 = vrot.slane %v3011, %v3018
    %v3021 = vunpack.c.l.s4 1983009808
    %v3022 = vunpack.c.0.s8 %v3021
    %v3023 = vlaneseq
    %v3024 = vshrl.u32 %v3023, 7
    %v3025 = vsub.s32 %v3022, %v3024
    %v3026 = vrot.slane %v3012, %v3025
    %v3027 = vcombine.low %v3019, %v3026
    %v3028 = vcombine.low %v925, %v932
    %v3029 = vcombine.low %v939, %v946
    %v3031 = vunpack.c.l.s4 1983009808
    %v3032 = vunpack.c.0.s8 %v3031
    %v3033 = vlaneseq
    %v3034 = vshrl.u32 %v3033, 7
    %v3035 = vsub.s32 %v3032, %v3034
    %v3036 = vrot.slane %v3028, %v3035
    %v3038 = vunpack.c.l.s4 1983009808
    %v3039 = vunpack.c.0.s8 %v3038
    %v3040 = vlaneseq
    %v3041 = vshrl.u32 %v3040, 7
    %v3042 = vsub.s32 %v3039, %v3041
    %v3043 = vrot.slane %v3029, %v3042
    %v3044 = vcombine.low %v3036, %v3043
    %v3045 = vcombine.low %v953, %v960
    %v3046 = vcombine.low %v967, %v974
    %v3048 = vunpack.c.l.s4 1983009808
    %v3049 = vunpack.c.0.s8 %v3048
    %v3050 = vlaneseq
    %v3051 = vshrl.u32 %v3050, 7
    %v3052 = vsub.s32 %v3049, %v3051
    %v3053 = vrot.slane %v3045, %v3052
    %v3055 = vunpack.c.l.s4 1983009808
    %v3056 = vunpack.c.0.s8 %v3055
    %v3057 = vlaneseq
    %v3058 = vshrl.u32 %v3057, 7
    %v3059 = vsub.s32 %v3056, %v3058
    %v3060 = vrot.slane %v3046, %v3059
    %v3061 = vcombine.low %v3053, %v3060
    %v3062 = vcombine.low %v981, %v988
    %v3063 = vcombine.low %v995, %v1002
    %v3065 = vunpack.c.l.s4 1983009808
    %v3066 = vunpack.c.0.s8 %v3065
    %v3067 = vlaneseq
    %v3068 = vshrl.u32 %v3067, 7
    %v3069 = vsub.s32 %v3066, %v3068
    %v3070 = vrot.slane %v3062, %v3069
    %v3072 = vunpack.c.l.s4 1983009808
    %v3073 = vunpack.c.0.s8 %v3072
    %v3074 = vlaneseq
    %v3075 = vshrl.u32 %v3074, 7
    %v3076 = vsub.s32 %v3073, %v3075
    %v3077 = vrot.slane %v3063, %v3076
    %v3078 = vcombine.low %v3070, %v3077
    %v3079 = vcombine.low %v1009, %v1016
    %v3080 = vcombine.low %v1023, %v1030
    %v3082 = vunpack.c.l.s4 1983009808
    %v3083 = vunpack.c.0.s8 %v3082
    %v3084 = vlaneseq
    %v3085 = vshrl.u32 %v3084, 7
    %v3086 = vsub.s32 %v3083, %v3085
    %v3087 = vrot.slane %v3079, %v3086
    %v3089 = vunpack.c.l.s4 1983009808
    %v3090 = vunpack.c.0.s8 %v3089
    %v3091 = vlaneseq
    %v3092 = vshrl.u32 %v3091, 7
    %v3093 = vsub.s32 %v3090, %v3092
    %v3094 = vrot.slane %v3080, %v3093
    %v3095 = vcombine.low %v3087, %v3094
    %v3096 = vcombine.low %v1037, %v1044
    %v3097 = vcombine.low %v1051, %v1058
    %v3099 = vunpack.c.l.s4 1983009808
    %v3100 = vunpack.c.0.s8 %v3099
    %v3101 = vlaneseq
    %v3102 = vshrl.u32 %v3101, 7
    %v3103 = vsub.s32 %v3100, %v3102
    %v3104 = vrot.slane %v3096, %v3103
    %v3106 = vunpack.c.l.s4 1983009808
    %v3107 = vunpack.c.0.s8 %v3106
    %v3108 = vlaneseq
    %v3109 = vshrl.u32 %v3108, 7
    %v3110 = vsub.s32 %v3107, %v3109
    %v3111 = vrot.slane %v3097, %v3110
    %v3112 = vcombine.low %v3104, %v3111
    %v3113 = vcombine.low %v1065, %v1072
    %v3114 = vcombine.low %v1079, %v1086
    %v3116 = vunpack.c.l.s4 1983009808
    %v3117 = vunpack.c.0.s8 %v3116
    %v3118 = vlaneseq
    %v3119 = vshrl.u32 %v3118, 7
    %v3120 = vsub.s32 %v3117, %v3119
    %v3121 = vrot.slane %v3113, %v3120
    %v3123 = vunpack.c.l.s4 1983009808
    %v3124 = vunpack.c.0.s8 %v3123
    %v3125 = vlaneseq
    %v3126 = vshrl.u32 %v3125, 7
    %v3127 = vsub.s32 %v3124, %v3126
    %v3128 = vrot.slane %v3114, %v3127
    %v3129 = vcombine.low %v3121, %v3128
    %v3130 = vcombine.low %v1093, %v1100
    %v3131 = vcombine.low %v1107, %v1114
    %v3133 = vunpack.c.l.s4 1983009808
    %v3134 = vunpack.c.0.s8 %v3133
    %v3135 = vlaneseq
    %v3136 = vshrl.u32 %v3135, 7
    %v3137 = vsub.s32 %v3134, %v3136
    %v3138 = vrot.slane %v3130, %v3137
    %v3140 = vunpack.c.l.s4 1983009808
    %v3141 = vunpack.c.0.s8 %v3140
    %v3142 = vlaneseq
    %v3143 = vshrl.u32 %v3142, 7
    %v3144 = vsub.s32 %v3141, %v3143
    %v3145 = vrot.slane %v3131, %v3144
    %v3146 = vcombine.low %v3138, %v3145
    %v3147 = vcombine.low %v1121, %v1128
    %v3148 = vcombine.low %v1135, %v1142
    %v3150 = vunpack.c.l.s4 1983009808
    %v3151 = vunpack.c.0.s8 %v3150
    %v3152 = vlaneseq
    %v3153 = vshrl.u32 %v3152, 7
    %v3154 = vsub.s32 %v3151, %v3153
    %v3155 = vrot.slane %v3147, %v3154
    %v3157 = vunpack.c.l.s4 1983009808
    %v3158 = vunpack.c.0.s8 %v3157
    %v3159 = vlaneseq
    %v3160 = vshrl.u32 %v3159, 7
    %v3161 = vsub.s32 %v3158, %v3160
    %v3162 = vrot.slane %v3148, %v3161
    %v3163 = vcombine.low %v3155, %v3162
    %v3164 = vcombine.low %v1149, %v1156
    %v3165 = vcombine.low %v1163, %v1170
    %v3167 = vunpack.c.l.s4 1983009808
    %v3168 = vunpack.c.0.s8 %v3167
    %v3169 = vlaneseq
    %v3170 = vshrl.u32 %v3169, 7
    %v3171 = vsub.s32 %v3168, %v3170
    %v3172 = vrot.slane %v3164, %v3171
    %v3174 = vunpack.c.l.s4 1983009808
    %v3175 = vunpack.c.0.s8 %v3174
    %v3176 = vlaneseq
    %v3177 = vshrl.u32 %v3176, 7
    %v3178 = vsub.s32 %v3175, %v3177
    %v3179 = vrot.slane %v3165, %v3178
    %v3180 = vcombine.low %v3172, %v3179
    %v3181 = vcombine.low %v1177, %v1184
    %v3182 = vcombine.low %v1191, %v1198
    %v3184 = vunpack.c.l.s4 1983009808
    %v3185 = vunpack.c.0.s8 %v3184
    %v3186 = vlaneseq
    %v3187 = vshrl.u32 %v3186, 7
    %v3188 = vsub.s32 %v3185, %v3187
    %v3189 = vrot.slane %v3181, %v3188
    %v3191 = vunpack.c.l.s4 1983009808
    %v3192 = vunpack.c.0.s8 %v3191
    %v3193 = vlaneseq
    %v3194 = vshrl.u32 %v3193, 7
    %v3195 = vsub.s32 %v3192, %v3194
    %v3196 = vrot.slane %v3182, %v3195
    %v3197 = vcombine.low %v3189, %v3196
    %v3198 = vcombine.low %v1205, %v1212
    %v3199 = vcombine.low %v1219, %v1226
    %v3201 = vunpack.c.l.s4 1983009808
    %v3202 = vunpack.c.0.s8 %v3201
    %v3203 = vlaneseq
    %v3204 = vshrl.u32 %v3203, 7
    %v3205 = vsub.s32 %v3202, %v3204
    %v3206 = vrot.slane %v3198, %v3205
    %v3208 = vunpack.c.l.s4 1983009808
    %v3209 = vunpack.c.0.s8 %v3208
    %v3210 = vlaneseq
    %v3211 = vshrl.u32 %v3210, 7
    %v3212 = vsub.s32 %v3209, %v3211
    %v3213 = vrot.slane %v3199, %v3212
    %v3214 = vcombine.low %v3206, %v3213
    %v3215 = vcombine.low %v1233, %v1240
    %v3216 = vcombine.low %v1247, %v1254
    %v3218 = vunpack.c.l.s4 1983009808
    %v3219 = vunpack.c.0.s8 %v3218
    %v3220 = vlaneseq
    %v3221 = vshrl.u32 %v3220, 7
    %v3222 = vsub.s32 %v3219, %v3221
    %v3223 = vrot.slane %v3215, %v3222
    %v3225 = vunpack.c.l.s4 1983009808
    %v3226 = vunpack.c.0.s8 %v3225
    %v3227 = vlaneseq
    %v3228 = vshrl.u32 %v3227, 7
    %v3229 = vsub.s32 %v3226, %v3228
    %v3230 = vrot.slane %v3216, %v3229
    %v3231 = vcombine.low %v3223, %v3230
    %v3232 = vcombine.low %v1261, %v1268
    %v3233 = vcombine.low %v1275, %v1282
    %v3235 = vunpack.c.l.s4 1983009808
    %v3236 = vunpack.c.0.s8 %v3235
    %v3237 = vlaneseq
    %v3238 = vshrl.u32 %v3237, 7
    %v3239 = vsub.s32 %v3236, %v3238
    %v3240 = vrot.slane %v3232, %v3239
    %v3242 = vunpack.c.l.s4 1983009808
    %v3243 = vunpack.c.0.s8 %v3242
    %v3244 = vlaneseq
    %v3245 = vshrl.u32 %v3244, 7
    %v3246 = vsub.s32 %v3243, %v3245
    %v3247 = vrot.slane %v3233, %v3246
    %v3248 = vcombine.low %v3240, %v3247
    %v3249 = vcombine.low %v1289, %v1296
    %v3250 = vcombine.low %v1303, %v1310
    %v3252 = vunpack.c.l.s4 1983009808
    %v3253 = vunpack.c.0.s8 %v3252
    %v3254 = vlaneseq
    %v3255 = vshrl.u32 %v3254, 7
    %v3256 = vsub.s32 %v3253, %v3255
    %v3257 = vrot.slane %v3249, %v3256
    %v3259 = vunpack.c.l.s4 1983009808
    %v3260 = vunpack.c.0.s8 %v3259
    %v3261 = vlaneseq
    %v3262 = vshrl.u32 %v3261, 7
    %v3263 = vsub.s32 %v3260, %v3262
    %v3264 = vrot.slane %v3250, %v3263
    %v3265 = vcombine.low %v3257, %v3264
    %v3266 = vcombine.low %v1317, %v1324
    %v3267 = vcombine.low %v1331, %v1338
    %v3269 = vunpack.c.l.s4 1983009808
    %v3270 = vunpack.c.0.s8 %v3269
    %v3271 = vlaneseq
    %v3272 = vshrl.u32 %v3271, 7
    %v3273 = vsub.s32 %v3270, %v3272
    %v3274 = vrot.slane %v3266, %v3273
    %v3276 = vunpack.c.l.s4 1983009808
    %v3277 = vunpack.c.0.s8 %v3276
    %v3278 = vlaneseq
    %v3279 = vshrl.u32 %v3278, 7
    %v3280 = vsub.s32 %v3277, %v3279
    %v3281 = vrot.slane %v3267, %v3280
    %v3282 = vcombine.low %v3274, %v3281
    %v3283 = vcombine.low %v1345, %v1352
    %v3284 = vcombine.low %v1359, %v1366
    %v3286 = vunpack.c.l.s4 1983009808
    %v3287 = vunpack.c.0.s8 %v3286
    %v3288 = vlaneseq
    %v3289 = vshrl.u32 %v3288, 7
    %v3290 = vsub.s32 %v3287, %v3289
    %v3291 = vrot.slane %v3283, %v3290
    %v3293 = vunpack.c.l.s4 1983009808
    %v3294 = vunpack.c.0.s8 %v3293
    %v3295 = vlaneseq
    %v3296 = vshrl.u32 %v3295, 7
    %v3297 = vsub.s32 %v3294, %v3296
    %v3298 = vrot.slane %v3284, %v3297
    %v3299 = vcombine.low %v3291, %v3298
    %v3300 = vcombine.low %v1373, %v1380
    %v3301 = vcombine.low %v1387, %v1394
    %v3303 = vunpack.c.l.s4 1983009808
    %v3304 = vunpack.c.0.s8 %v3303
    %v3305 = vlaneseq
    %v3306 = vshrl.u32 %v3305, 7
    %v3307 = vsub.s32 %v3304, %v3306
    %v3308 = vrot.slane %v3300, %v3307
    %v3310 = vunpack.c.l.s4 1983009808
    %v3311 = vunpack.c.0.s8 %v3310
    %v3312 = vlaneseq
    %v3313 = vshrl.u32 %v3312, 7
    %v3314 = vsub.s32 %v3311, %v3313
    %v3315 = vrot.slane %v3301, %v3314
    %v3316 = vcombine.low %v3308, %v3315
    %v3317 = vcombine.low %v1401, %v1408
    %v3318 = vcombine.low %v1415, %v1422
    %v3320 = vunpack.c.l.s4 1983009808
    %v3321 = vunpack.c.0.s8 %v3320
    %v3322 = vlaneseq
    %v3323 = vshrl.u32 %v3322, 7
    %v3324 = vsub.s32 %v3321, %v3323
    %v3325 = vrot.slane %v3317, %v3324
    %v3327 = vunpack.c.l.s4 1983009808
    %v3328 = vunpack.c.0.s8 %v3327
    %v3329 = vlaneseq
    %v3330 = vshrl.u32 %v3329, 7
    %v3331 = vsub.s32 %v3328, %v3330
    %v3332 = vrot.slane %v3318, %v3331
    %v3333 = vcombine.low %v3325, %v3332
    %v3334 = vcombine.low %v1429, %v1436
    %v3335 = vcombine.low %v1443, %v1450
    %v3337 = vunpack.c.l.s4 1983009808
    %v3338 = vunpack.c.0.s8 %v3337
    %v3339 = vlaneseq
    %v3340 = vshrl.u32 %v3339, 7
    %v3341 = vsub.s32 %v3338, %v3340
    %v3342 = vrot.slane %v3334, %v3341
    %v3344 = vunpack.c.l.s4 1983009808
    %v3345 = vunpack.c.0.s8 %v3344
    %v3346 = vlaneseq
    %v3347 = vshrl.u32 %v3346, 7
    %v3348 = vsub.s32 %v3345, %v3347
    %v3349 = vrot.slane %v3335, %v3348
    %v3350 = vcombine.low %v3342, %v3349
    %v3351 = vcombine.low %v1457, %v1464
    %v3352 = vcombine.low %v1471, %v1478
    %v3354 = vunpack.c.l.s4 1983009808
    %v3355 = vunpack.c.0.s8 %v3354
    %v3356 = vlaneseq
    %v3357 = vshrl.u32 %v3356, 7
    %v3358 = vsub.s32 %v3355, %v3357
    %v3359 = vrot.slane %v3351, %v3358
    %v3361 = vunpack.c.l.s4 1983009808
    %v3362 = vunpack.c.0.s8 %v3361
    %v3363 = vlaneseq
    %v3364 = vshrl.u32 %v3363, 7
    %v3365 = vsub.s32 %v3362, %v3364
    %v3366 = vrot.slane %v3352, %v3365
    %v3367 = vcombine.low %v3359, %v3366
    %v3368 = vcombine.low %v1485, %v1492
    %v3369 = vcombine.low %v1499, %v1506
    %v3371 = vunpack.c.l.s4 1983009808
    %v3372 = vunpack.c.0.s8 %v3371
    %v3373 = vlaneseq
    %v3374 = vshrl.u32 %v3373, 7
    %v3375 = vsub.s32 %v3372, %v3374
    %v3376 = vrot.slane %v3368, %v3375
    %v3378 = vunpack.c.l.s4 1983009808
    %v3379 = vunpack.c.0.s8 %v3378
    %v3380 = vlaneseq
    %v3381 = vshrl.u32 %v3380, 7
    %v3382 = vsub.s32 %v3379, %v3381
    %v3383 = vrot.slane %v3369, %v3382
    %v3384 = vcombine.low %v3376, %v3383
    %v3385 = vcombine.low %v1513, %v1520
    %v3386 = vcombine.low %v1527, %v1534
    %v3388 = vunpack.c.l.s4 1983009808
    %v3389 = vunpack.c.0.s8 %v3388
    %v3390 = vlaneseq
    %v3391 = vshrl.u32 %v3390, 7
    %v3392 = vsub.s32 %v3389, %v3391
    %v3393 = vrot.slane %v3385, %v3392
    %v3395 = vunpack.c.l.s4 1983009808
    %v3396 = vunpack.c.0.s8 %v3395
    %v3397 = vlaneseq
    %v3398 = vshrl.u32 %v3397, 7
    %v3399 = vsub.s32 %v3396, %v3398
    %v3400 = vrot.slane %v3386, %v3399
    %v3401 = vcombine.low %v3393, %v3400
    %v3402 = vcombine.low %v1541, %v1548
    %v3403 = vcombine.low %v1555, %v1562
    %v3405 = vunpack.c.l.s4 1983009808
    %v3406 = vunpack.c.0.s8 %v3405
    %v3407 = vlaneseq
    %v3408 = vshrl.u32 %v3407, 7
    %v3409 = vsub.s32 %v3406, %v3408
    %v3410 = vrot.slane %v3402, %v3409
    %v3412 = vunpack.c.l.s4 1983009808
    %v3413 = vunpack.c.0.s8 %v3412
    %v3414 = vlaneseq
    %v3415 = vshrl.u32 %v3414, 7
    %v3416 = vsub.s32 %v3413, %v3415
    %v3417 = vrot.slane %v3403, %v3416
    %v3418 = vcombine.low %v3410, %v3417
    %v3419 = vcombine.low %v1569, %v1576
    %v3420 = vcombine.low %v1583, %v1590
    %v3422 = vunpack.c.l.s4 1983009808
    %v3423 = vunpack.c.0.s8 %v3422
    %v3424 = vlaneseq
    %v3425 = vshrl.u32 %v3424, 7
    %v3426 = vsub.s32 %v3423, %v3425
    %v3427 = vrot.slane %v3419, %v3426
    %v3429 = vunpack.c.l.s4 1983009808
    %v3430 = vunpack.c.0.s8 %v3429
    %v3431 = vlaneseq
    %v3432 = vshrl.u32 %v3431, 7
    %v3433 = vsub.s32 %v3430, %v3432
    %v3434 = vrot.slane %v3420, %v3433
    %v3435 = vcombine.low %v3427, %v3434
    %v3436 = vcombine.low %v1597, %v1604
    %v3437 = vcombine.low %v1611, %v1618
    %v3439 = vunpack.c.l.s4 1983009808
    %v3440 = vunpack.c.0.s8 %v3439
    %v3441 = vlaneseq
    %v3442 = vshrl.u32 %v3441, 7
    %v3443 = vsub.s32 %v3440, %v3442
    %v3444 = vrot.slane %v3436, %v3443
    %v3446 = vunpack.c.l.s4 1983009808
    %v3447 = vunpack.c.0.s8 %v3446
    %v3448 = vlaneseq
    %v3449 = vshrl.u32 %v3448, 7
    %v3450 = vsub.s32 %v3447, %v3449
    %v3451 = vrot.slane %v3437, %v3450
    %v3452 = vcombine.low %v3444, %v3451
    %v3453 = vcombine.low %v1625, %v1632
    %v3454 = vcombine.low %v1639, %v1646
    %v3456 = vunpack.c.l.s4 1983009808
    %v3457 = vunpack.c.0.s8 %v3456
    %v3458 = vlaneseq
    %v3459 = vshrl.u32 %v3458, 7
    %v3460 = vsub.s32 %v3457, %v3459
    %v3461 = vrot.slane %v3453, %v3460
    %v3463 = vunpack.c.l.s4 1983009808
    %v3464 = vunpack.c.0.s8 %v3463
    %v3465 = vlaneseq
    %v3466 = vshrl.u32 %v3465, 7
    %v3467 = vsub.s32 %v3464, %v3466
    %v3468 = vrot.slane %v3454, %v3467
    %v3469 = vcombine.low %v3461, %v3468
    %v3470 = vcombine.low %v1653, %v1660
    %v3471 = vcombine.low %v1667, %v1674
    %v3473 = vunpack.c.l.s4 1983009808
    %v3474 = vunpack.c.0.s8 %v3473
    %v3475 = vlaneseq
    %v3476 = vshrl.u32 %v3475, 7
    %v3477 = vsub.s32 %v3474, %v3476
    %v3478 = vrot.slane %v3470, %v3477
    %v3480 = vunpack.c.l.s4 1983009808
    %v3481 = vunpack.c.0.s8 %v3480
    %v3482 = vlaneseq
    %v3483 = vshrl.u32 %v3482, 7
    %v3484 = vsub.s32 %v3481, %v3483
    %v3485 = vrot.slane %v3471, %v3484
    %v3486 = vcombine.low %v3478, %v3485
    %v3487 = vcombine.low %v1681, %v1688
    %v3488 = vcombine.low %v1695, %v1702
    %v3490 = vunpack.c.l.s4 1983009808
    %v3491 = vunpack.c.0.s8 %v3490
    %v3492 = vlaneseq
    %v3493 = vshrl.u32 %v3492, 7
    %v3494 = vsub.s32 %v3491, %v3493
    %v3495 = vrot.slane %v3487, %v3494
    %v3497 = vunpack.c.l.s4 1983009808
    %v3498 = vunpack.c.0.s8 %v3497
    %v3499 = vlaneseq
    %v3500 = vshrl.u32 %v3499, 7
    %v3501 = vsub.s32 %v3498, %v3500
    %v3502 = vrot.slane %v3488, %v3501
    %v3503 = vcombine.low %v3495, %v3502
    %v3504 = vcombine.low %v1709, %v1716
    %v3505 = vcombine.low %v1723, %v1730
    %v3507 = vunpack.c.l.s4 1983009808
    %v3508 = vunpack.c.0.s8 %v3507
    %v3509 = vlaneseq
    %v3510 = vshrl.u32 %v3509, 7
    %v3511 = vsub.s32 %v3508, %v3510
    %v3512 = vrot.slane %v3504, %v3511
    %v3514 = vunpack.c.l.s4 1983009808
    %v3515 = vunpack.c.0.s8 %v3514
    %v3516 = vlaneseq
    %v3517 = vshrl.u32 %v3516, 7
    %v3518 = vsub.s32 %v3515, %v3517
    %v3519 = vrot.slane %v3505, %v3518
    %v3520 = vcombine.low %v3512, %v3519
    %v3521 = vcombine.low %v1737, %v1744
    %v3522 = vcombine.low %v1751, %v1758
    %v3524 = vunpack.c.l.s4 1983009808
    %v3525 = vunpack.c.0.s8 %v3524
    %v3526 = vlaneseq
    %v3527 = vshrl.u32 %v3526, 7
    %v3528 = vsub.s32 %v3525, %v3527
    %v3529 = vrot.slane %v3521, %v3528
    %v3531 = vunpack.c.l.s4 1983009808
    %v3532 = vunpack.c.0.s8 %v3531
    %v3533 = vlaneseq
    %v3534 = vshrl.u32 %v3533, 7
    %v3535 = vsub.s32 %v3532, %v3534
    %v3536 = vrot.slane %v3522, %v3535
    %v3537 = vcombine.low %v3529, %v3536
    %v3538 = vcombine.low %v1765, %v1772
    %v3539 = vcombine.low %v1779, %v1786
    %v3541 = vunpack.c.l.s4 1983009808
    %v3542 = vunpack.c.0.s8 %v3541
    %v3543 = vlaneseq
    %v3544 = vshrl.u32 %v3543, 7
    %v3545 = vsub.s32 %v3542, %v3544
    %v3546 = vrot.slane %v3538, %v3545
    %v3548 = vunpack.c.l.s4 1983009808
    %v3549 = vunpack.c.0.s8 %v3548
    %v3550 = vlaneseq
    %v3551 = vshrl.u32 %v3550, 7
    %v3552 = vsub.s32 %v3549, %v3551
    %v3553 = vrot.slane %v3539, %v3552
    %v3554 = vcombine.low %v3546, %v3553
    %v3555 = vcombine.low %v1793, %v1800
    %v3556 = vcombine.low %v1807, %v1814
    %v3558 = vunpack.c.l.s4 1983009808
    %v3559 = vunpack.c.0.s8 %v3558
    %v3560 = vlaneseq
    %v3561 = vshrl.u32 %v3560, 7
    %v3562 = vsub.s32 %v3559, %v3561
    %v3563 = vrot.slane %v3555, %v3562
    %v3565 = vunpack.c.l.s4 1983009808
    %v3566 = vunpack.c.0.s8 %v3565
    %v3567 = vlaneseq
    %v3568 = vshrl.u32 %v3567, 7
    %v3569 = vsub.s32 %v3566, %v3568
    %v3570 = vrot.slane %v3556, %v3569
    %v3571 = vcombine.low %v3563, %v3570
    %v3572 = vcombine.low %v1821, %v1828
    %v3573 = vcombine.low %v1835, %v1842
    %v3575 = vunpack.c.l.s4 1983009808
    %v3576 = vunpack.c.0.s8 %v3575
    %v3577 = vlaneseq
    %v3578 = vshrl.u32 %v3577, 7
    %v3579 = vsub.s32 %v3576, %v3578
    %v3580 = vrot.slane %v3572, %v3579
    %v3582 = vunpack.c.l.s4 1983009808
    %v3583 = vunpack.c.0.s8 %v3582
    %v3584 = vlaneseq
    %v3585 = vshrl.u32 %v3584, 7
    %v3586 = vsub.s32 %v3583, %v3585
    %v3587 = vrot.slane %v3573, %v3586
    %v3588 = vcombine.low %v3580, %v3587
    %v3589 = vcombine.low %v1849, %v1856
    %v3590 = vcombine.low %v1863, %v1870
    %v3592 = vunpack.c.l.s4 1983009808
    %v3593 = vunpack.c.0.s8 %v3592
    %v3594 = vlaneseq
    %v3595 = vshrl.u32 %v3594, 7
    %v3596 = vsub.s32 %v3593, %v3595
    %v3597 = vrot.slane %v3589, %v3596
    %v3599 = vunpack.c.l.s4 1983009808
    %v3600 = vunpack.c.0.s8 %v3599
    %v3601 = vlaneseq
    %v3602 = vshrl.u32 %v3601, 7
    %v3603 = vsub.s32 %v3600, %v3602
    %v3604 = vrot.slane %v3590, %v3603
    %v3605 = vcombine.low %v3597, %v3604
    %v3606 = vcombine.low %v1877, %v1884
    %v3607 = vcombine.low %v1891, %v1898
    %v3609 = vunpack.c.l.s4 1983009808
    %v3610 = vunpack.c.0.s8 %v3609
    %v3611 = vlaneseq
    %v3612 = vshrl.u32 %v3611, 7
    %v3613 = vsub.s32 %v3610, %v3612
    %v3614 = vrot.slane %v3606, %v3613
    %v3616 = vunpack.c.l.s4 1983009808
    %v3617 = vunpack.c.0.s8 %v3616
    %v3618 = vlaneseq
    %v3619 = vshrl.u32 %v3618, 7
    %v3620 = vsub.s32 %v3617, %v3619
    %v3621 = vrot.slane %v3607, %v3620
    %v3622 = vcombine.low %v3614, %v3621
    %v3623 = vcombine.low %v1905, %v1912
    %v3624 = vcombine.low %v1919, %v1926
    %v3626 = vunpack.c.l.s4 1983009808
    %v3627 = vunpack.c.0.s8 %v3626
    %v3628 = vlaneseq
    %v3629 = vshrl.u32 %v3628, 7
    %v3630 = vsub.s32 %v3627, %v3629
    %v3631 = vrot.slane %v3623, %v3630
    %v3633 = vunpack.c.l.s4 1983009808
    %v3634 = vunpack.c.0.s8 %v3633
    %v3635 = vlaneseq
    %v3636 = vshrl.u32 %v3635, 7
    %v3637 = vsub.s32 %v3634, %v3636
    %v3638 = vrot.slane %v3624, %v3637
    %v3639 = vcombine.low %v3631, %v3638
    %v3640 = vcombine.low %v1933, %v1940
    %v3641 = vcombine.low %v1947, %v1954
    %v3643 = vunpack.c.l.s4 1983009808
    %v3644 = vunpack.c.0.s8 %v3643
    %v3645 = vlaneseq
    %v3646 = vshrl.u32 %v3645, 7
    %v3647 = vsub.s32 %v3644, %v3646
    %v3648 = vrot.slane %v3640, %v3647
    %v3650 = vunpack.c.l.s4 1983009808
    %v3651 = vunpack.c.0.s8 %v3650
    %v3652 = vlaneseq
    %v3653 = vshrl.u32 %v3652, 7
    %v3654 = vsub.s32 %v3651, %v3653
    %v3655 = vrot.slane %v3641, %v3654
    %v3656 = vcombine.low %v3648, %v3655
    %v3657 = vcombine.low %v1961, %v1968
    %v3658 = vcombine.low %v1975, %v1982
    %v3660 = vunpack.c.l.s4 1983009808
    %v3661 = vunpack.c.0.s8 %v3660
    %v3662 = vlaneseq
    %v3663 = vshrl.u32 %v3662, 7
    %v3664 = vsub.s32 %v3661, %v3663
    %v3665 = vrot.slane %v3657, %v3664
    %v3667 = vunpack.c.l.s4 1983009808
    %v3668 = vunpack.c.0.s8 %v3667
    %v3669 = vlaneseq
    %v3670 = vshrl.u32 %v3669, 7
    %v3671 = vsub.s32 %v3668, %v3670
    %v3672 = vrot.slane %v3658, %v3671
    %v3673 = vcombine.low %v3665, %v3672
    %v3674 = vcombine.low %v1989, %v1996
    %v3675 = vcombine.low %v2003, %v2010
    %v3677 = vunpack.c.l.s4 1983009808
    %v3678 = vunpack.c.0.s8 %v3677
    %v3679 = vlaneseq
    %v3680 = vshrl.u32 %v3679, 7
    %v3681 = vsub.s32 %v3678, %v3680
    %v3682 = vrot.slane %v3674, %v3681
    %v3684 = vunpack.c.l.s4 1983009808
    %v3685 = vunpack.c.0.s8 %v3684
    %v3686 = vlaneseq
    %v3687 = vshrl.u32 %v3686, 7
    %v3688 = vsub.s32 %v3685, %v3687
    %v3689 = vrot.slane %v3675, %v3688
    %v3690 = vcombine.low %v3682, %v3689
    %v3691 = vcombine.low %v2017, %v2024
    %v3692 = vcombine.low %v2031, %v2038
    %v3694 = vunpack.c.l.s4 1983009808
    %v3695 = vunpack.c.0.s8 %v3694
    %v3696 = vlaneseq
    %v3697 = vshrl.u32 %v3696, 7
    %v3698 = vsub.s32 %v3695, %v3697
    %v3699 = vrot.slane %v3691, %v3698
    %v3701 = vunpack.c.l.s4 1983009808
    %v3702 = vunpack.c.0.s8 %v3701
    %v3703 = vlaneseq
    %v3704 = vshrl.u32 %v3703, 7
    %v3705 = vsub.s32 %v3702, %v3704
    %v3706 = vrot.slane %v3692, %v3705
    %v3707 = vcombine.low %v3699, %v3706
    %v3708 = vcombine.low %v2045, %v2052
    %v3709 = vcombine.low %v2059, %v2066
    %v3711 = vunpack.c.l.s4 1983009808
    %v3712 = vunpack.c.0.s8 %v3711
    %v3713 = vlaneseq
    %v3714 = vshrl.u32 %v3713, 7
    %v3715 = vsub.s32 %v3712, %v3714
    %v3716 = vrot.slane %v3708, %v3715
    %v3718 = vunpack.c.l.s4 1983009808
    %v3719 = vunpack.c.0.s8 %v3718
    %v3720 = vlaneseq
    %v3721 = vshrl.u32 %v3720, 7
    %v3722 = vsub.s32 %v3719, %v3721
    %v3723 = vrot.slane %v3709, %v3722
    %v3724 = vcombine.low %v3716, %v3723
    %v3725 = vcombine.low %v2073, %v2080
    %v3726 = vcombine.low %v2087, %v2094
    %v3728 = vunpack.c.l.s4 1983009808
    %v3729 = vunpack.c.0.s8 %v3728
    %v3730 = vlaneseq
    %v3731 = vshrl.u32 %v3730, 7
    %v3732 = vsub.s32 %v3729, %v3731
    %v3733 = vrot.slane %v3725, %v3732
    %v3735 = vunpack.c.l.s4 1983009808
    %v3736 = vunpack.c.0.s8 %v3735
    %v3737 = vlaneseq
    %v3738 = vshrl.u32 %v3737, 7
    %v3739 = vsub.s32 %v3736, %v3738
    %v3740 = vrot.slane %v3726, %v3739
    %v3741 = vcombine.low %v3733, %v3740
    %v3742 = vcombine.low %v2101, %v2108
    %v3743 = vcombine.low %v2115, %v2122
    %v3745 = vunpack.c.l.s4 1983009808
    %v3746 = vunpack.c.0.s8 %v3745
    %v3747 = vlaneseq
    %v3748 = vshrl.u32 %v3747, 7
    %v3749 = vsub.s32 %v3746, %v3748
    %v3750 = vrot.slane %v3742, %v3749
    %v3752 = vunpack.c.l.s4 1983009808
    %v3753 = vunpack.c.0.s8 %v3752
    %v3754 = vlaneseq
    %v3755 = vshrl.u32 %v3754, 7
    %v3756 = vsub.s32 %v3753, %v3755
    %v3757 = vrot.slane %v3743, %v3756
    %v3758 = vcombine.low %v3750, %v3757
    %v3759 = vcombine.low %v2129, %v2136
    %v3760 = vcombine.low %v2143, %v2150
    %v3762 = vunpack.c.l.s4 1983009808
    %v3763 = vunpack.c.0.s8 %v3762
    %v3764 = vlaneseq
    %v3765 = vshrl.u32 %v3764, 7
    %v3766 = vsub.s32 %v3763, %v3765
    %v3767 = vrot.slane %v3759, %v3766
    %v3769 = vunpack.c.l.s4 1983009808
    %v3770 = vunpack.c.0.s8 %v3769
    %v3771 = vlaneseq
    %v3772 = vshrl.u32 %v3771, 7
    %v3773 = vsub.s32 %v3770, %v3772
    %v3774 = vrot.slane %v3760, %v3773
    %v3775 = vcombine.low %v3767, %v3774
    %v3776 = vcombine.low %v2157, %v2164
    %v3777 = vcombine.low %v2171, %v2178
    %v3779 = vunpack.c.l.s4 1983009808
    %v3780 = vunpack.c.0.s8 %v3779
    %v3781 = vlaneseq
    %v3782 = vshrl.u32 %v3781, 7
    %v3783 = vsub.s32 %v3780, %v3782
    %v3784 = vrot.slane %v3776, %v3783
    %v3786 = vunpack.c.l.s4 1983009808
    %v3787 = vunpack.c.0.s8 %v3786
    %v3788 = vlaneseq
    %v3789 = vshrl.u32 %v3788, 7
    %v3790 = vsub.s32 %v3787, %v3789
    %v3791 = vrot.slane %v3777, %v3790
    %v3792 = vcombine.low %v3784, %v3791
    %v3793 = vcombine.low %v2185, %v2192
    %v3794 = vcombine.low %v2199, %v2206
    %v3796 = vunpack.c.l.s4 1983009808
    %v3797 = vunpack.c.0.s8 %v3796
    %v3798 = vlaneseq
    %v3799 = vshrl.u32 %v3798, 7
    %v3800 = vsub.s32 %v3797, %v3799
    %v3801 = vrot.slane %v3793, %v3800
    %v3803 = vunpack.c.l.s4 1983009808
    %v3804 = vunpack.c.0.s8 %v3803
    %v3805 = vlaneseq
    %v3806 = vshrl.u32 %v3805, 7
    %v3807 = vsub.s32 %v3804, %v3806
    %v3808 = vrot.slane %v3794, %v3807
    %v3809 = vcombine.low %v3801, %v3808
    %v3810 = vcombine.low %v2213, %v2220
    %v3811 = vcombine.low %v2227, %v2234
    %v3813 = vunpack.c.l.s4 1983009808
    %v3814 = vunpack.c.0.s8 %v3813
    %v3815 = vlaneseq
    %v3816 = vshrl.u32 %v3815, 7
    %v3817 = vsub.s32 %v3814, %v3816
    %v3818 = vrot.slane %v3810, %v3817
    %v3820 = vunpack.c.l.s4 1983009808
    %v3821 = vunpack.c.0.s8 %v3820
    %v3822 = vlaneseq
    %v3823 = vshrl.u32 %v3822, 7
    %v3824 = vsub.s32 %v3821, %v3823
    %v3825 = vrot.slane %v3811, %v3824
    %v3826 = vcombine.low %v3818, %v3825
    %v3827 = vcombine.low %v2241, %v2248
    %v3828 = vcombine.low %v2255, %v2262
    %v3830 = vunpack.c.l.s4 1983009808
    %v3831 = vunpack.c.0.s8 %v3830
    %v3832 = vlaneseq
    %v3833 = vshrl.u32 %v3832, 7
    %v3834 = vsub.s32 %v3831, %v3833
    %v3835 = vrot.slane %v3827, %v3834
    %v3837 = vunpack.c.l.s4 1983009808
    %v3838 = vunpack.c.0.s8 %v3837
    %v3839 = vlaneseq
    %v3840 = vshrl.u32 %v3839, 7
    %v3841 = vsub.s32 %v3838, %v3840
    %v3842 = vrot.slane %v3828, %v3841
    %v3843 = vcombine.low %v3835, %v3842
    %v3844 = vcombine.low %v2269, %v2276
    %v3845 = vcombine.low %v2283, %v2290
    %v3847 = vunpack.c.l.s4 1983009808
    %v3848 = vunpack.c.0.s8 %v3847
    %v3849 = vlaneseq
    %v3850 = vshrl.u32 %v3849, 7
    %v3851 = vsub.s32 %v3848, %v3850
    %v3852 = vrot.slane %v3844, %v3851
    %v3854 = vunpack.c.l.s4 1983009808
    %v3855 = vunpack.c.0.s8 %v3854
    %v3856 = vlaneseq
    %v3857 = vshrl.u32 %v3856, 7
    %v3858 = vsub.s32 %v3855, %v3857
    %v3859 = vrot.slane %v3845, %v3858
    %v3860 = vcombine.low %v3852, %v3859
    %v3861 = vcombine.low %v2297, %v2304
    %v3862 = vcombine.low %v2311, %v2318
    %v3864 = vunpack.c.l.s4 1983009808
    %v3865 = vunpack.c.0.s8 %v3864
    %v3866 = vlaneseq
    %v3867 = vshrl.u32 %v3866, 7
    %v3868 = vsub.s32 %v3865, %v3867
    %v3869 = vrot.slane %v3861, %v3868
    %v3871 = vunpack.c.l.s4 1983009808
    %v3872 = vunpack.c.0.s8 %v3871
    %v3873 = vlaneseq
    %v3874 = vshrl.u32 %v3873, 7
    %v3875 = vsub.s32 %v3872, %v3874
    %v3876 = vrot.slane %v3862, %v3875
    %v3877 = vcombine.low %v3869, %v3876
    %v3878 = vcombine.low %v2325, %v2332
    %v3879 = vcombine.low %v2339, %v2346
    %v3881 = vunpack.c.l.s4 1983009808
    %v3882 = vunpack.c.0.s8 %v3881
    %v3883 = vlaneseq
    %v3884 = vshrl.u32 %v3883, 7
    %v3885 = vsub.s32 %v3882, %v3884
    %v3886 = vrot.slane %v3878, %v3885
    %v3888 = vunpack.c.l.s4 1983009808
    %v3889 = vunpack.c.0.s8 %v3888
    %v3890 = vlaneseq
    %v3891 = vshrl.u32 %v3890, 7
    %v3892 = vsub.s32 %v3889, %v3891
    %v3893 = vrot.slane %v3879, %v3892
    %v3894 = vcombine.low %v3886, %v3893
    %v3895 = vcombine.low %v2353, %v2360
    %v3896 = vcombine.low %v2367, %v2374
    %v3898 = vunpack.c.l.s4 1983009808
    %v3899 = vunpack.c.0.s8 %v3898
    %v3900 = vlaneseq
    %v3901 = vshrl.u32 %v3900, 7
    %v3902 = vsub.s32 %v3899, %v3901
    %v3903 = vrot.slane %v3895, %v3902
    %v3905 = vunpack.c.l.s4 1983009808
    %v3906 = vunpack.c.0.s8 %v3905
    %v3907 = vlaneseq
    %v3908 = vshrl.u32 %v3907, 7
    %v3909 = vsub.s32 %v3906, %v3908
    %v3910 = vrot.slane %v3896, %v3909
    %v3911 = vcombine.low %v3903, %v3910
    %v3912 = vcombine.low %v2381, %v2388
    %v3913 = vcombine.low %v2395, %v2402
    %v3915 = vunpack.c.l.s4 1983009808
    %v3916 = vunpack.c.0.s8 %v3915
    %v3917 = vlaneseq
    %v3918 = vshrl.u32 %v3917, 7
    %v3919 = vsub.s32 %v3916, %v3918
    %v3920 = vrot.slane %v3912, %v3919
    %v3922 = vunpack.c.l.s4 1983009808
    %v3923 = vunpack.c.0.s8 %v3922
    %v3924 = vlaneseq
    %v3925 = vshrl.u32 %v3924, 7
    %v3926 = vsub.s32 %v3923, %v3925
    %v3927 = vrot.slane %v3913, %v3926
    %v3928 = vcombine.low %v3920, %v3927
    %v3929 = vcombine.low %v2409, %v2416
    %v3930 = vcombine.low %v2423, %v2430
    %v3932 = vunpack.c.l.s4 1983009808
    %v3933 = vunpack.c.0.s8 %v3932
    %v3934 = vlaneseq
    %v3935 = vshrl.u32 %v3934, 7
    %v3936 = vsub.s32 %v3933, %v3935
    %v3937 = vrot.slane %v3929, %v3936
    %v3939 = vunpack.c.l.s4 1983009808
    %v3940 = vunpack.c.0.s8 %v3939
    %v3941 = vlaneseq
    %v3942 = vshrl.u32 %v3941, 7
    %v3943 = vsub.s32 %v3940, %v3942
    %v3944 = vrot.slane %v3930, %v3943
    %v3945 = vcombine.low %v3937, %v3944
    %v3946 = vcombine.low %v2437, %v2444
    %v3947 = vcombine.low %v2451, %v2458
    %v3949 = vunpack.c.l.s4 1983009808
    %v3950 = vunpack.c.0.s8 %v3949
    %v3951 = vlaneseq
    %v3952 = vshrl.u32 %v3951, 7
    %v3953 = vsub.s32 %v3950, %v3952
    %v3954 = vrot.slane %v3946, %v3953
    %v3956 = vunpack.c.l.s4 1983009808
    %v3957 = vunpack.c.0.s8 %v3956
    %v3958 = vlaneseq
    %v3959 = vshrl.u32 %v3958, 7
    %v3960 = vsub.s32 %v3957, %v3959
    %v3961 = vrot.slane %v3947, %v3960
    %v3962 = vcombine.low %v3954, %v3961
    %v3963 = vcombine.low %v2465, %v2472
    %v3964 = vcombine.low %v2479, %v2486
    %v3966 = vunpack.c.l.s4 1983009808
    %v3967 = vunpack.c.0.s8 %v3966
    %v3968 = vlaneseq
    %v3969 = vshrl.u32 %v3968, 7
    %v3970 = vsub.s32 %v3967, %v3969
    %v3971 = vrot.slane %v3963, %v3970
    %v3973 = vunpack.c.l.s4 1983009808
    %v3974 = vunpack.c.0.s8 %v3973
    %v3975 = vlaneseq
    %v3976 = vshrl.u32 %v3975, 7
    %v3977 = vsub.s32 %v3974, %v3976
    %v3978 = vrot.slane %v3964, %v3977
    %v3979 = vcombine.low %v3971, %v3978
    %v3980 = vcombine.low %v2493, %v2500
    %v3981 = vcombine.low %v2507, %v2514
    %v3983 = vunpack.c.l.s4 1983009808
    %v3984 = vunpack.c.0.s8 %v3983
    %v3985 = vlaneseq
    %v3986 = vshrl.u32 %v3985, 7
    %v3987 = vsub.s32 %v3984, %v3986
    %v3988 = vrot.slane %v3980, %v3987
    %v3990 = vunpack.c.l.s4 1983009808
    %v3991 = vunpack.c.0.s8 %v3990
    %v3992 = vlaneseq
    %v3993 = vshrl.u32 %v3992, 7
    %v3994 = vsub.s32 %v3991, %v3993
    %v3995 = vrot.slane %v3981, %v3994
    %v3996 = vcombine.low %v3988, %v3995
    %v3997 = vcombine.low %v2521, %v2528
    %v3998 = vcombine.low %v2535, %v2542
    %v4000 = vunpack.c.l.s4 1983009808
    %v4001 = vunpack.c.0.s8 %v4000
    %v4002 = vlaneseq
    %v4003 = vshrl.u32 %v4002, 7
    %v4004 = vsub.s32 %v4001, %v4003
    %v4005 = vrot.slane %v3997, %v4004
    %v4007 = vunpack.c.l.s4 1983009808
    %v4008 = vunpack.c.0.s8 %v4007
    %v4009 = vlaneseq
    %v4010 = vshrl.u32 %v4009, 7
    %v4011 = vsub.s32 %v4008, %v4010
    %v4012 = vrot.slane %v3998, %v4011
    %v4013 = vcombine.low %v4005, %v4012
    %v4014 = vcombine.low %v2549, %v2556
    %v4015 = vcombine.low %v2563, %v2570
    %v4017 = vunpack.c.l.s4 1983009808
    %v4018 = vunpack.c.0.s8 %v4017
    %v4019 = vlaneseq
    %v4020 = vshrl.u32 %v4019, 7
    %v4021 = vsub.s32 %v4018, %v4020
    %v4022 = vrot.slane %v4014, %v4021
    %v4024 = vunpack.c.l.s4 1983009808
    %v4025 = vunpack.c.0.s8 %v4024
    %v4026 = vlaneseq
    %v4027 = vshrl.u32 %v4026, 7
    %v4028 = vsub.s32 %v4025, %v4027
    %v4029 = vrot.slane %v4015, %v4028
    %v4030 = vcombine.low %v4022, %v4029
    %v4031 = vcombine.low %v2577, %v2584
    %v4032 = vcombine.low %v2591, %v2598
    %v4034 = vunpack.c.l.s4 1983009808
    %v4035 = vunpack.c.0.s8 %v4034
    %v4036 = vlaneseq
    %v4037 = vshrl.u32 %v4036, 7
    %v4038 = vsub.s32 %v4035, %v4037
    %v4039 = vrot.slane %v4031, %v4038
    %v4041 = vunpack.c.l.s4 1983009808
    %v4042 = vunpack.c.0.s8 %v4041
    %v4043 = vlaneseq
    %v4044 = vshrl.u32 %v4043, 7
    %v4045 = vsub.s32 %v4042, %v4044
    %v4046 = vrot.slane %v4032, %v4045
    %v4047 = vcombine.low %v4039, %v4046
    %v4048 = vcombine.low %v2605, %v2612
    %v4049 = vcombine.low %v2619, %v2626
    %v4051 = vunpack.c.l.s4 1983009808
    %v4052 = vunpack.c.0.s8 %v4051
    %v4053 = vlaneseq
    %v4054 = vshrl.u32 %v4053, 7
    %v4055 = vsub.s32 %v4052, %v4054
    %v4056 = vrot.slane %v4048, %v4055
    %v4058 = vunpack.c.l.s4 1983009808
    %v4059 = vunpack.c.0.s8 %v4058
    %v4060 = vlaneseq
    %v4061 = vshrl.u32 %v4060, 7
    %v4062 = vsub.s32 %v4059, %v4061
    %v4063 = vrot.slane %v4049, %v4062
    %v4064 = vcombine.low %v4056, %v4063
    %v4065 = vcombine.low %v2633, %v2640
    %v4066 = vcombine.low %v2647, %v2654
    %v4068 = vunpack.c.l.s4 1983009808
    %v4069 = vunpack.c.0.s8 %v4068
    %v4070 = vlaneseq
    %v4071 = vshrl.u32 %v4070, 7
    %v4072 = vsub.s32 %v4069, %v4071
    %v4073 = vrot.slane %v4065, %v4072
    %v4075 = vunpack.c.l.s4 1983009808
    %v4076 = vunpack.c.0.s8 %v4075
    %v4077 = vlaneseq
    %v4078 = vshrl.u32 %v4077, 7
    %v4079 = vsub.s32 %v4076, %v4078
    %v4080 = vrot.slane %v4066, %v4079
    %v4081 = vcombine.low %v4073, %v4080
    %v4082 = vcombine.low %v2661, %v2668
    %v4083 = vcombine.low %v2675, %v2682
    %v4085 = vunpack.c.l.s4 1983009808
    %v4086 = vunpack.c.0.s8 %v4085
    %v4087 = vlaneseq
    %v4088 = vshrl.u32 %v4087, 7
    %v4089 = vsub.s32 %v4086, %v4088
    %v4090 = vrot.slane %v4082, %v4089
    %v4092 = vunpack.c.l.s4 1983009808
    %v4093 = vunpack.c.0.s8 %v4092
    %v4094 = vlaneseq
    %v4095 = vshrl.u32 %v4094, 7
    %v4096 = vsub.s32 %v4093, %v4095
    %v4097 = vrot.slane %v4083, %v4096
    %v4098 = vcombine.low %v4090, %v4097
    %v4099 = vcombine.low %v2689, %v2696
    %v4100 = vcombine.low %v2703, %v2710
    %v4102 = vunpack.c.l.s4 1983009808
    %v4103 = vunpack.c.0.s8 %v4102
    %v4104 = vlaneseq
    %v4105 = vshrl.u32 %v4104, 7
    %v4106 = vsub.s32 %v4103, %v4105
    %v4107 = vrot.slane %v4099, %v4106
    %v4109 = vunpack.c.l.s4 1983009808
    %v4110 = vunpack.c.0.s8 %v4109
    %v4111 = vlaneseq
    %v4112 = vshrl.u32 %v4111, 7
    %v4113 = vsub.s32 %v4110, %v4112
    %v4114 = vrot.slane %v4100, %v4113
    %v4115 = vcombine.low %v4107, %v4114
    %v4116 = vcombine.low %v2717, %v2724
    %v4117 = vcombine.low %v2731, %v2738
    %v4119 = vunpack.c.l.s4 1983009808
    %v4120 = vunpack.c.0.s8 %v4119
    %v4121 = vlaneseq
    %v4122 = vshrl.u32 %v4121, 7
    %v4123 = vsub.s32 %v4120, %v4122
    %v4124 = vrot.slane %v4116, %v4123
    %v4126 = vunpack.c.l.s4 1983009808
    %v4127 = vunpack.c.0.s8 %v4126
    %v4128 = vlaneseq
    %v4129 = vshrl.u32 %v4128, 7
    %v4130 = vsub.s32 %v4127, %v4129
    %v4131 = vrot.slane %v4117, %v4130
    %v4132 = vcombine.low %v4124, %v4131
    %4133 = vset.pattern.permute.xlu0 0
    %4134 = vperm.xlu0 %4133, %v2755
    %v4135 = vpop.permute.xlu0 %4134
    %4136 = vset.pattern.permute.xlu0 0
    %4137 = vperm.xlu0 %4136, %v2772
    %v4138 = vpop.permute.xlu0 %4137
    %4139 = vset.pattern.permute.xlu0 0
    %4140 = vperm.xlu0 %4139, %v2789
    %v4141 = vpop.permute.xlu0 %4140
    %4142 = vset.pattern.permute.xlu0 0
    %4143 = vperm.xlu0 %4142, %v2806
    %v4144 = vpop.permute.xlu0 %4143
    %4145 = vset.pattern.permute.xlu0 0
    %4146 = vperm.xlu0 %4145, %v2823
    %v4147 = vpop.permute.xlu0 %4146
    %4148 = vset.pattern.permute.xlu0 0
    %4149 = vperm.xlu0 %4148, %v2840
    %v4150 = vpop.permute.xlu0 %4149
    %4151 = vset.pattern.permute.xlu0 0
    %4152 = vperm.xlu0 %4151, %v2857
    %v4153 = vpop.permute.xlu0 %4152
    %4154 = vset.pattern.permute.xlu0 0
    %4155 = vperm.xlu0 %4154, %v2874
    %v4156 = vpop.permute.xlu0 %4155
    %4157 = vset.pattern.permute.xlu0 0
    %4158 = vperm.xlu0 %4157, %v2891
    %v4159 = vpop.permute.xlu0 %4158
    %4160 = vset.pattern.permute.xlu0 0
    %4161 = vperm.xlu0 %4160, %v2908
    %v4162 = vpop.permute.xlu0 %4161
    %4163 = vset.pattern.permute.xlu0 0
    %4164 = vperm.xlu0 %4163, %v2925
    %v4165 = vpop.permute.xlu0 %4164
    %4166 = vset.pattern.permute.xlu0 0
    %4167 = vperm.xlu0 %4166, %v2942
    %v4168 = vpop.permute.xlu0 %4167
    %4169 = vset.pattern.permute.xlu0 0
    %4170 = vperm.xlu0 %4169, %v2959
    %v4171 = vpop.permute.xlu0 %4170
    %4172 = vset.pattern.permute.xlu0 0
    %4173 = vperm.xlu0 %4172, %v2976
    %v4174 = vpop.permute.xlu0 %4173
    %4175 = vset.pattern.permute.xlu0 0
    %4176 = vperm.xlu0 %4175, %v2993
    %v4177 = vpop.permute.xlu0 %4176
    %4178 = vset.pattern.permute.xlu0 0
    %4179 = vperm.xlu0 %4178, %v3010
    %v4180 = vpop.permute.xlu0 %4179
    %4181 = vset.pattern.permute.xlu0 0
    %4182 = vperm.xlu0 %4181, %v3027
    %v4183 = vpop.permute.xlu0 %4182
    %4184 = vset.pattern.permute.xlu0 0
    %4185 = vperm.xlu0 %4184, %v3044
    %v4186 = vpop.permute.xlu0 %4185
    %4187 = vset.pattern.permute.xlu0 0
    %4188 = vperm.xlu0 %4187, %v3061
    %v4189 = vpop.permute.xlu0 %4188
    %4190 = vset.pattern.permute.xlu0 0
    %4191 = vperm.xlu0 %4190, %v3078
    %v4192 = vpop.permute.xlu0 %4191
    %4193 = vset.pattern.permute.xlu0 0
    %4194 = vperm.xlu0 %4193, %v3095
    %v4195 = vpop.permute.xlu0 %4194
    %4196 = vset.pattern.permute.xlu0 0
    %4197 = vperm.xlu0 %4196, %v3112
    %v4198 = vpop.permute.xlu0 %4197
    %4199 = vset.pattern.permute.xlu0 0
    %4200 = vperm.xlu0 %4199, %v3129
    %v4201 = vpop.permute.xlu0 %4200
    %4202 = vset.pattern.permute.xlu0 0
    %4203 = vperm.xlu0 %4202, %v3146
    %v4204 = vpop.permute.xlu0 %4203
    %4205 = vset.pattern.permute.xlu0 0
    %4206 = vperm.xlu0 %4205, %v3163
    %v4207 = vpop.permute.xlu0 %4206
    %4208 = vset.pattern.permute.xlu0 0
    %4209 = vperm.xlu0 %4208, %v3180
    %v4210 = vpop.permute.xlu0 %4209
    %4211 = vset.pattern.permute.xlu0 0
    %4212 = vperm.xlu0 %4211, %v3197
    %v4213 = vpop.permute.xlu0 %4212
    %4214 = vset.pattern.permute.xlu0 0
    %4215 = vperm.xlu0 %4214, %v3214
    %v4216 = vpop.permute.xlu0 %4215
    %4217 = vset.pattern.permute.xlu0 0
    %4218 = vperm.xlu0 %4217, %v3231
    %v4219 = vpop.permute.xlu0 %4218
    %4220 = vset.pattern.permute.xlu0 0
    %4221 = vperm.xlu0 %4220, %v3248
    %v4222 = vpop.permute.xlu0 %4221
    %4223 = vset.pattern.permute.xlu0 0
    %4224 = vperm.xlu0 %4223, %v3265
    %v4225 = vpop.permute.xlu0 %4224
    %4226 = vset.pattern.permute.xlu0 0
    %4227 = vperm.xlu0 %4226, %v3282
    %v4228 = vpop.permute.xlu0 %4227
    %4229 = vset.pattern.permute.xlu0 0
    %4230 = vperm.xlu0 %4229, %v3299
    %v4231 = vpop.permute.xlu0 %4230
    %4232 = vset.pattern.permute.xlu0 0
    %4233 = vperm.xlu0 %4232, %v3316
    %v4234 = vpop.permute.xlu0 %4233
    %4235 = vset.pattern.permute.xlu0 0
    %4236 = vperm.xlu0 %4235, %v3333
    %v4237 = vpop.permute.xlu0 %4236
    %4238 = vset.pattern.permute.xlu0 0
    %4239 = vperm.xlu0 %4238, %v3350
    %v4240 = vpop.permute.xlu0 %4239
    %4241 = vset.pattern.permute.xlu0 0
    %4242 = vperm.xlu0 %4241, %v3367
    %v4243 = vpop.permute.xlu0 %4242
    %4244 = vset.pattern.permute.xlu0 0
    %4245 = vperm.xlu0 %4244, %v3384
    %v4246 = vpop.permute.xlu0 %4245
    %4247 = vset.pattern.permute.xlu0 0
    %4248 = vperm.xlu0 %4247, %v3401
    %v4249 = vpop.permute.xlu0 %4248
    %4250 = vset.pattern.permute.xlu0 0
    %4251 = vperm.xlu0 %4250, %v3418
    %v4252 = vpop.permute.xlu0 %4251
    %4253 = vset.pattern.permute.xlu0 0
    %4254 = vperm.xlu0 %4253, %v3435
    %v4255 = vpop.permute.xlu0 %4254
    %4256 = vset.pattern.permute.xlu0 0
    %4257 = vperm.xlu0 %4256, %v3452
    %v4258 = vpop.permute.xlu0 %4257
    %4259 = vset.pattern.permute.xlu0 0
    %4260 = vperm.xlu0 %4259, %v3469
    %v4261 = vpop.permute.xlu0 %4260
    %4262 = vset.pattern.permute.xlu0 0
    %4263 = vperm.xlu0 %4262, %v3486
    %v4264 = vpop.permute.xlu0 %4263
    %4265 = vset.pattern.permute.xlu0 0
    %4266 = vperm.xlu0 %4265, %v3503
    %v4267 = vpop.permute.xlu0 %4266
    %4268 = vset.pattern.permute.xlu0 0
    %4269 = vperm.xlu0 %4268, %v3520
    %v4270 = vpop.permute.xlu0 %4269
    %4271 = vset.pattern.permute.xlu0 0
    %4272 = vperm.xlu0 %4271, %v3537
    %v4273 = vpop.permute.xlu0 %4272
    %4274 = vset.pattern.permute.xlu0 0
    %4275 = vperm.xlu0 %4274, %v3554
    %v4276 = vpop.permute.xlu0 %4275
    %4277 = vset.pattern.permute.xlu0 0
    %4278 = vperm.xlu0 %4277, %v3571
    %v4279 = vpop.permute.xlu0 %4278
    %4280 = vset.pattern.permute.xlu0 0
    %4281 = vperm.xlu0 %4280, %v3588
    %v4282 = vpop.permute.xlu0 %4281
    %4283 = vset.pattern.permute.xlu0 0
    %4284 = vperm.xlu0 %4283, %v3605
    %v4285 = vpop.permute.xlu0 %4284
    %4286 = vset.pattern.permute.xlu0 0
    %4287 = vperm.xlu0 %4286, %v3622
    %v4288 = vpop.permute.xlu0 %4287
    %4289 = vset.pattern.permute.xlu0 0
    %4290 = vperm.xlu0 %4289, %v3639
    %v4291 = vpop.permute.xlu0 %4290
    %4292 = vset.pattern.permute.xlu0 0
    %4293 = vperm.xlu0 %4292, %v3656
    %v4294 = vpop.permute.xlu0 %4293
    %4295 = vset.pattern.permute.xlu0 0
    %4296 = vperm.xlu0 %4295, %v3673
    %v4297 = vpop.permute.xlu0 %4296
    %4298 = vset.pattern.permute.xlu0 0
    %4299 = vperm.xlu0 %4298, %v3690
    %v4300 = vpop.permute.xlu0 %4299
    %4301 = vset.pattern.permute.xlu0 0
    %4302 = vperm.xlu0 %4301, %v3707
    %v4303 = vpop.permute.xlu0 %4302
    %4304 = vset.pattern.permute.xlu0 0
    %4305 = vperm.xlu0 %4304, %v3724
    %v4306 = vpop.permute.xlu0 %4305
    %4307 = vset.pattern.permute.xlu0 0
    %4308 = vperm.xlu0 %4307, %v3741
    %v4309 = vpop.permute.xlu0 %4308
    %4310 = vset.pattern.permute.xlu0 0
    %4311 = vperm.xlu0 %4310, %v3758
    %v4312 = vpop.permute.xlu0 %4311
    %4313 = vset.pattern.permute.xlu0 0
    %4314 = vperm.xlu0 %4313, %v3775
    %v4315 = vpop.permute.xlu0 %4314
    %4316 = vset.pattern.permute.xlu0 0
    %4317 = vperm.xlu0 %4316, %v3792
    %v4318 = vpop.permute.xlu0 %4317
    %4319 = vset.pattern.permute.xlu0 0
    %4320 = vperm.xlu0 %4319, %v3809
    %v4321 = vpop.permute.xlu0 %4320
    %4322 = vset.pattern.permute.xlu0 0
    %4323 = vperm.xlu0 %4322, %v3826
    %v4324 = vpop.permute.xlu0 %4323
    %4325 = vset.pattern.permute.xlu0 0
    %4326 = vperm.xlu0 %4325, %v3843
    %v4327 = vpop.permute.xlu0 %4326
    %4328 = vset.pattern.permute.xlu0 0
    %4329 = vperm.xlu0 %4328, %v3860
    %v4330 = vpop.permute.xlu0 %4329
    %4331 = vset.pattern.permute.xlu0 0
    %4332 = vperm.xlu0 %4331, %v3877
    %v4333 = vpop.permute.xlu0 %4332
    %4334 = vset.pattern.permute.xlu0 0
    %4335 = vperm.xlu0 %4334, %v3894
    %v4336 = vpop.permute.xlu0 %4335
    %4337 = vset.pattern.permute.xlu0 0
    %4338 = vperm.xlu0 %4337, %v3911
    %v4339 = vpop.permute.xlu0 %4338
    %4340 = vset.pattern.permute.xlu0 0
    %4341 = vperm.xlu0 %4340, %v3928
    %v4342 = vpop.permute.xlu0 %4341
    %4343 = vset.pattern.permute.xlu0 0
    %4344 = vperm.xlu0 %4343, %v3945
    %v4345 = vpop.permute.xlu0 %4344
    %4346 = vset.pattern.permute.xlu0 0
    %4347 = vperm.xlu0 %4346, %v3962
    %v4348 = vpop.permute.xlu0 %4347
    %4349 = vset.pattern.permute.xlu0 0
    %4350 = vperm.xlu0 %4349, %v3979
    %v4351 = vpop.permute.xlu0 %4350
    %4352 = vset.pattern.permute.xlu0 0
    %4353 = vperm.xlu0 %4352, %v3996
    %v4354 = vpop.permute.xlu0 %4353
    %4355 = vset.pattern.permute.xlu0 0
    %4356 = vperm.xlu0 %4355, %v4013
    %v4357 = vpop.permute.xlu0 %4356
    %4358 = vset.pattern.permute.xlu0 0
    %4359 = vperm.xlu0 %4358, %v4030
    %v4360 = vpop.permute.xlu0 %4359
    %4361 = vset.pattern.permute.xlu0 0
    %4362 = vperm.xlu0 %4361, %v4047
    %v4363 = vpop.permute.xlu0 %4362
    %4364 = vset.pattern.permute.xlu0 0
    %4365 = vperm.xlu0 %4364, %v4064
    %v4366 = vpop.permute.xlu0 %4365
    %4367 = vset.pattern.permute.xlu0 0
    %4368 = vperm.xlu0 %4367, %v4081
    %v4369 = vpop.permute.xlu0 %4368
    %4370 = vset.pattern.permute.xlu0 0
    %4371 = vperm.xlu0 %4370, %v4098
    %v4372 = vpop.permute.xlu0 %4371
    %4373 = vset.pattern.permute.xlu0 0
    %4374 = vperm.xlu0 %4373, %v4115
    %v4375 = vpop.permute.xlu0 %4374
    %4376 = vset.pattern.permute.xlu0 0
    %4377 = vperm.xlu0 %4376, %v4132
    %v4378 = vpop.permute.xlu0 %4377
    %v4379 = vlaneseq
    %v4380 = vand.u32 %v4379, 127
    %v4381 = vlaneseq
    %v4382 = vshrl.u32 %v4381, 7
    %v4383 = vsub.s32 %v4380, %v4382
    %v4384 = vrot.slane %v4135, %v4383
    %v4385 = vadd.s32 %v4380, 4294967288
    %v4386 = vlaneseq
    %v4387 = vshrl.u32 %v4386, 7
    %v4388 = vsub.s32 %v4385, %v4387
    %v4389 = vrot.slane %v4138, %v4388
    %vm4390 = vcmask 130112
    %v4391 = vsel %vm4390, %v4389, %v4384
    %v4392 = vadd.s32 %v4380, 4294967280
    %v4393 = vlaneseq
    %v4394 = vshrl.u32 %v4393, 7
    %v4395 = vsub.s32 %v4392, %v4394
    %v4396 = vrot.slane %v4141, %v4395
    %vm4397 = vcmask 195712
    %v4398 = vsel %vm4397, %v4396, %v4391
    %v4399 = vadd.s32 %v4380, 4294967272
    %v4400 = vlaneseq
    %v4401 = vshrl.u32 %v4400, 7
    %v4402 = vsub.s32 %v4399, %v4401
    %v4403 = vrot.slane %v4144, %v4402
    %vm4404 = vcmask 261312
    %v4405 = vsel %vm4404, %v4403, %v4398
    %v4406 = vadd.s32 %v4380, 4294967264
    %v4407 = vlaneseq
    %v4408 = vshrl.u32 %v4407, 7
    %v4409 = vsub.s32 %v4406, %v4408
    %v4410 = vrot.slane %v4147, %v4409
    %vm4411 = vcmask 326912
    %v4412 = vsel %vm4411, %v4410, %v4405
    %v4413 = vadd.s32 %v4380, 4294967256
    %v4414 = vlaneseq
    %v4415 = vshrl.u32 %v4414, 7
    %v4416 = vsub.s32 %v4413, %v4415
    %v4417 = vrot.slane %v4150, %v4416
    %vm4418 = vcmask 392512
    %v4419 = vsel %vm4418, %v4417, %v4412
    %v4420 = vadd.s32 %v4380, 4294967248
    %v4421 = vlaneseq
    %v4422 = vshrl.u32 %v4421, 7
    %v4423 = vsub.s32 %v4420, %v4422
    %v4424 = vrot.slane %v4153, %v4423
    %vm4425 = vcmask 458112
    %v4426 = vsel %vm4425, %v4424, %v4419
    %v4427 = vadd.s32 %v4380, 4294967240
    %v4428 = vlaneseq
    %v4429 = vshrl.u32 %v4428, 7
    %v4430 = vsub.s32 %v4427, %v4429
    %v4431 = vrot.slane %v4156, %v4430
    %vm4432 = vcmask 523712
    %v4433 = vsel %vm4432, %v4431, %v4426
    %v4434 = vadd.s32 %v4380, 4294967232
    %v4435 = vlaneseq
    %v4436 = vshrl.u32 %v4435, 7
    %v4437 = vsub.s32 %v4434, %v4436
    %v4438 = vrot.slane %v4159, %v4437
    %vm4439 = vcmask 589312
    %v4440 = vsel %vm4439, %v4438, %v4433
    %v4441 = vadd.s32 %v4380, 4294967224
    %v4442 = vlaneseq
    %v4443 = vshrl.u32 %v4442, 7
    %v4444 = vsub.s32 %v4441, %v4443
    %v4445 = vrot.slane %v4162, %v4444
    %vm4446 = vcmask 654912
    %v4447 = vsel %vm4446, %v4445, %v4440
    %v4448 = vadd.s32 %v4380, 4294967216
    %v4449 = vlaneseq
    %v4450 = vshrl.u32 %v4449, 7
    %v4451 = vsub.s32 %v4448, %v4450
    %v4452 = vrot.slane %v4165, %v4451
    %vm4453 = vcmask 720512
    %v4454 = vsel %vm4453, %v4452, %v4447
    %v4455 = vadd.s32 %v4380, 4294967208
    %v4456 = vlaneseq
    %v4457 = vshrl.u32 %v4456, 7
    %v4458 = vsub.s32 %v4455, %v4457
    %v4459 = vrot.slane %v4168, %v4458
    %vm4460 = vcmask 786112
    %v4461 = vsel %vm4460, %v4459, %v4454
    %v4462 = vadd.s32 %v4380, 4294967200
    %v4463 = vlaneseq
    %v4464 = vshrl.u32 %v4463, 7
    %v4465 = vsub.s32 %v4462, %v4464
    %v4466 = vrot.slane %v4171, %v4465
    %vm4467 = vcmask 851712
    %v4468 = vsel %vm4467, %v4466, %v4461
    %v4469 = vadd.s32 %v4380, 4294967192
    %v4470 = vlaneseq
    %v4471 = vshrl.u32 %v4470, 7
    %v4472 = vsub.s32 %v4469, %v4471
    %v4473 = vrot.slane %v4174, %v4472
    %vm4474 = vcmask 917312
    %v4475 = vsel %vm4474, %v4473, %v4468
    %v4476 = vadd.s32 %v4380, 4294967184
    %v4477 = vlaneseq
    %v4478 = vshrl.u32 %v4477, 7
    %v4479 = vsub.s32 %v4476, %v4478
    %v4480 = vrot.slane %v4177, %v4479
    %vm4481 = vcmask 982912
    %v4482 = vsel %vm4481, %v4480, %v4475
    %v4483 = vadd.s32 %v4380, 4294967176
    %v4484 = vlaneseq
    %v4485 = vshrl.u32 %v4484, 7
    %v4486 = vsub.s32 %v4483, %v4485
    %v4487 = vrot.slane %v4180, %v4486
    %vm4488 = vcmask 1048512
    %v4489 = vsel %vm4488, %v4487, %v4482
    %v4490 = vlaneseq
    %v4491 = vshrl.u32 %v4490, 7
    %v4492 = vsub.s32 %v4380, %v4491
    %v4493 = vrot.slane %v4183, %v4492
    %v4494 = vlaneseq
    %v4495 = vshrl.u32 %v4494, 7
    %v4496 = vsub.s32 %v4385, %v4495
    %v4497 = vrot.slane %v4186, %v4496
    %v4498 = vsel %vm4390, %v4497, %v4493
    %v4499 = vlaneseq
    %v4500 = vshrl.u32 %v4499, 7
    %v4501 = vsub.s32 %v4392, %v4500
    %v4502 = vrot.slane %v4189, %v4501
    %v4503 = vsel %vm4397, %v4502, %v4498
    %v4504 = vlaneseq
    %v4505 = vshrl.u32 %v4504, 7
    %v4506 = vsub.s32 %v4399, %v4505
    %v4507 = vrot.slane %v4192, %v4506
    %v4508 = vsel %vm4404, %v4507, %v4503
    %v4509 = vlaneseq
    %v4510 = vshrl.u32 %v4509, 7
    %v4511 = vsub.s32 %v4406, %v4510
    %v4512 = vrot.slane %v4195, %v4511
    %v4513 = vsel %vm4411, %v4512, %v4508
    %v4514 = vlaneseq
    %v4515 = vshrl.u32 %v4514, 7
    %v4516 = vsub.s32 %v4413, %v4515
    %v4517 = vrot.slane %v4198, %v4516
    %v4518 = vsel %vm4418, %v4517, %v4513
    %v4519 = vlaneseq
    %v4520 = vshrl.u32 %v4519, 7
    %v4521 = vsub.s32 %v4420, %v4520
    %v4522 = vrot.slane %v4201, %v4521
    %v4523 = vsel %vm4425, %v4522, %v4518
    %v4524 = vlaneseq
    %v4525 = vshrl.u32 %v4524, 7
    %v4526 = vsub.s32 %v4427, %v4525
    %v4527 = vrot.slane %v4204, %v4526
    %v4528 = vsel %vm4432, %v4527, %v4523
    %v4529 = vlaneseq
    %v4530 = vshrl.u32 %v4529, 7
    %v4531 = vsub.s32 %v4434, %v4530
    %v4532 = vrot.slane %v4207, %v4531
    %v4533 = vsel %vm4439, %v4532, %v4528
    %v4534 = vlaneseq
    %v4535 = vshrl.u32 %v4534, 7
    %v4536 = vsub.s32 %v4441, %v4535
    %v4537 = vrot.slane %v4210, %v4536
    %v4538 = vsel %vm4446, %v4537, %v4533
    %v4539 = vlaneseq
    %v4540 = vshrl.u32 %v4539, 7
    %v4541 = vsub.s32 %v4448, %v4540
    %v4542 = vrot.slane %v4213, %v4541
    %v4543 = vsel %vm4453, %v4542, %v4538
    %v4544 = vlaneseq
    %v4545 = vshrl.u32 %v4544, 7
    %v4546 = vsub.s32 %v4455, %v4545
    %v4547 = vrot.slane %v4216, %v4546
    %v4548 = vsel %vm4460, %v4547, %v4543
    %v4549 = vlaneseq
    %v4550 = vshrl.u32 %v4549, 7
    %v4551 = vsub.s32 %v4462, %v4550
    %v4552 = vrot.slane %v4219, %v4551
    %v4553 = vsel %vm4467, %v4552, %v4548
    %v4554 = vlaneseq
    %v4555 = vshrl.u32 %v4554, 7
    %v4556 = vsub.s32 %v4469, %v4555
    %v4557 = vrot.slane %v4222, %v4556
    %v4558 = vsel %vm4474, %v4557, %v4553
    %v4559 = vlaneseq
    %v4560 = vshrl.u32 %v4559, 7
    %v4561 = vsub.s32 %v4476, %v4560
    %v4562 = vrot.slane %v4225, %v4561
    %v4563 = vsel %vm4481, %v4562, %v4558
    %v4564 = vlaneseq
    %v4565 = vshrl.u32 %v4564, 7
    %v4566 = vsub.s32 %v4483, %v4565
    %v4567 = vrot.slane %v4228, %v4566
    %v4568 = vsel %vm4488, %v4567, %v4563
    %v4569 = vlaneseq
    %v4570 = vshrl.u32 %v4569, 7
    %v4571 = vsub.s32 %v4380, %v4570
    %v4572 = vrot.slane %v4231, %v4571
    %v4573 = vlaneseq
    %v4574 = vshrl.u32 %v4573, 7
    %v4575 = vsub.s32 %v4385, %v4574
    %v4576 = vrot.slane %v4234, %v4575
    %v4577 = vsel %vm4390, %v4576, %v4572
    %v4578 = vlaneseq
    %v4579 = vshrl.u32 %v4578, 7
    %v4580 = vsub.s32 %v4392, %v4579
    %v4581 = vrot.slane %v4237, %v4580
    %v4582 = vsel %vm4397, %v4581, %v4577
    %v4583 = vlaneseq
    %v4584 = vshrl.u32 %v4583, 7
    %v4585 = vsub.s32 %v4399, %v4584
    %v4586 = vrot.slane %v4240, %v4585
    %v4587 = vsel %vm4404, %v4586, %v4582
    %v4588 = vlaneseq
    %v4589 = vshrl.u32 %v4588, 7
    %v4590 = vsub.s32 %v4406, %v4589
    %v4591 = vrot.slane %v4243, %v4590
    %v4592 = vsel %vm4411, %v4591, %v4587
    %v4593 = vlaneseq
    %v4594 = vshrl.u32 %v4593, 7
    %v4595 = vsub.s32 %v4413, %v4594
    %v4596 = vrot.slane %v4246, %v4595
    %v4597 = vsel %vm4418, %v4596, %v4592
    %v4598 = vlaneseq
    %v4599 = vshrl.u32 %v4598, 7
    %v4600 = vsub.s32 %v4420, %v4599
    %v4601 = vrot.slane %v4249, %v4600
    %v4602 = vsel %vm4425, %v4601, %v4597
    %v4603 = vlaneseq
    %v4604 = vshrl.u32 %v4603, 7
    %v4605 = vsub.s32 %v4427, %v4604
    %v4606 = vrot.slane %v4252, %v4605
    %v4607 = vsel %vm4432, %v4606, %v4602
    %v4608 = vlaneseq
    %v4609 = vshrl.u32 %v4608, 7
    %v4610 = vsub.s32 %v4434, %v4609
    %v4611 = vrot.slane %v4255, %v4610
    %v4612 = vsel %vm4439, %v4611, %v4607
    %v4613 = vlaneseq
    %v4614 = vshrl.u32 %v4613, 7
    %v4615 = vsub.s32 %v4380, %v4614
    %v4616 = vrot.slane %v4258, %v4615
    %v4617 = vlaneseq
    %v4618 = vshrl.u32 %v4617, 7
    %v4619 = vsub.s32 %v4385, %v4618
    %v4620 = vrot.slane %v4261, %v4619
    %v4621 = vsel %vm4390, %v4620, %v4616
    %v4622 = vlaneseq
    %v4623 = vshrl.u32 %v4622, 7
    %v4624 = vsub.s32 %v4392, %v4623
    %v4625 = vrot.slane %v4264, %v4624
    %v4626 = vsel %vm4397, %v4625, %v4621
    %v4627 = vlaneseq
    %v4628 = vshrl.u32 %v4627, 7
    %v4629 = vsub.s32 %v4399, %v4628
    %v4630 = vrot.slane %v4267, %v4629
    %v4631 = vsel %vm4404, %v4630, %v4626
    %v4632 = vlaneseq
    %v4633 = vshrl.u32 %v4632, 7
    %v4634 = vsub.s32 %v4406, %v4633
    %v4635 = vrot.slane %v4270, %v4634
    %v4636 = vsel %vm4411, %v4635, %v4631
    %v4637 = vlaneseq
    %v4638 = vshrl.u32 %v4637, 7
    %v4639 = vsub.s32 %v4413, %v4638
    %v4640 = vrot.slane %v4273, %v4639
    %v4641 = vsel %vm4418, %v4640, %v4636
    %v4642 = vlaneseq
    %v4643 = vshrl.u32 %v4642, 7
    %v4644 = vsub.s32 %v4420, %v4643
    %v4645 = vrot.slane %v4276, %v4644
    %v4646 = vsel %vm4425, %v4645, %v4641
    %v4647 = vlaneseq
    %v4648 = vshrl.u32 %v4647, 7
    %v4649 = vsub.s32 %v4427, %v4648
    %v4650 = vrot.slane %v4279, %v4649
    %v4651 = vsel %vm4432, %v4650, %v4646
    %v4652 = vlaneseq
    %v4653 = vshrl.u32 %v4652, 7
    %v4654 = vsub.s32 %v4434, %v4653
    %v4655 = vrot.slane %v4282, %v4654
    %v4656 = vsel %vm4439, %v4655, %v4651
    %v4657 = vlaneseq
    %v4658 = vshrl.u32 %v4657, 7
    %v4659 = vsub.s32 %v4441, %v4658
    %v4660 = vrot.slane %v4285, %v4659
    %v4661 = vsel %vm4446, %v4660, %v4656
    %v4662 = vlaneseq
    %v4663 = vshrl.u32 %v4662, 7
    %v4664 = vsub.s32 %v4448, %v4663
    %v4665 = vrot.slane %v4288, %v4664
    %v4666 = vsel %vm4453, %v4665, %v4661
    %v4667 = vlaneseq
    %v4668 = vshrl.u32 %v4667, 7
    %v4669 = vsub.s32 %v4455, %v4668
    %v4670 = vrot.slane %v4291, %v4669
    %v4671 = vsel %vm4460, %v4670, %v4666
    %v4672 = vlaneseq
    %v4673 = vshrl.u32 %v4672, 7
    %v4674 = vsub.s32 %v4462, %v4673
    %v4675 = vrot.slane %v4294, %v4674
    %v4676 = vsel %vm4467, %v4675, %v4671
    %v4677 = vlaneseq
    %v4678 = vshrl.u32 %v4677, 7
    %v4679 = vsub.s32 %v4469, %v4678
    %v4680 = vrot.slane %v4297, %v4679
    %v4681 = vsel %vm4474, %v4680, %v4676
    %v4682 = vlaneseq
    %v4683 = vshrl.u32 %v4682, 7
    %v4684 = vsub.s32 %v4476, %v4683
    %v4685 = vrot.slane %v4300, %v4684
    %v4686 = vsel %vm4481, %v4685, %v4681
    %v4687 = vlaneseq
    %v4688 = vshrl.u32 %v4687, 7
    %v4689 = vsub.s32 %v4483, %v4688
    %v4690 = vrot.slane %v4303, %v4689
    %v4691 = vsel %vm4488, %v4690, %v4686
    %v4692 = vlaneseq
    %v4693 = vshrl.u32 %v4692, 7
    %v4694 = vsub.s32 %v4380, %v4693
    %v4695 = vrot.slane %v4306, %v4694
    %v4696 = vlaneseq
    %v4697 = vshrl.u32 %v4696, 7
    %v4698 = vsub.s32 %v4385, %v4697
    %v4699 = vrot.slane %v4309, %v4698
    %v4700 = vsel %vm4390, %v4699, %v4695
    %v4701 = vlaneseq
    %v4702 = vshrl.u32 %v4701, 7
    %v4703 = vsub.s32 %v4392, %v4702
    %v4704 = vrot.slane %v4312, %v4703
    %v4705 = vsel %vm4397, %v4704, %v4700
    %v4706 = vlaneseq
    %v4707 = vshrl.u32 %v4706, 7
    %v4708 = vsub.s32 %v4399, %v4707
    %v4709 = vrot.slane %v4315, %v4708
    %v4710 = vsel %vm4404, %v4709, %v4705
    %v4711 = vlaneseq
    %v4712 = vshrl.u32 %v4711, 7
    %v4713 = vsub.s32 %v4406, %v4712
    %v4714 = vrot.slane %v4318, %v4713
    %v4715 = vsel %vm4411, %v4714, %v4710
    %v4716 = vlaneseq
    %v4717 = vshrl.u32 %v4716, 7
    %v4718 = vsub.s32 %v4413, %v4717
    %v4719 = vrot.slane %v4321, %v4718
    %v4720 = vsel %vm4418, %v4719, %v4715
    %v4721 = vlaneseq
    %v4722 = vshrl.u32 %v4721, 7
    %v4723 = vsub.s32 %v4420, %v4722
    %v4724 = vrot.slane %v4324, %v4723
    %v4725 = vsel %vm4425, %v4724, %v4720
    %v4726 = vlaneseq
    %v4727 = vshrl.u32 %v4726, 7
    %v4728 = vsub.s32 %v4427, %v4727
    %v4729 = vrot.slane %v4327, %v4728
    %v4730 = vsel %vm4432, %v4729, %v4725
    %v4731 = vlaneseq
    %v4732 = vshrl.u32 %v4731, 7
    %v4733 = vsub.s32 %v4434, %v4732
    %v4734 = vrot.slane %v4330, %v4733
    %v4735 = vsel %vm4439, %v4734, %v4730
    %v4736 = vlaneseq
    %v4737 = vshrl.u32 %v4736, 7
    %v4738 = vsub.s32 %v4441, %v4737
    %v4739 = vrot.slane %v4333, %v4738
    %v4740 = vsel %vm4446, %v4739, %v4735
    %v4741 = vlaneseq
    %v4742 = vshrl.u32 %v4741, 7
    %v4743 = vsub.s32 %v4448, %v4742
    %v4744 = vrot.slane %v4336, %v4743
    %v4745 = vsel %vm4453, %v4744, %v4740
    %v4746 = vlaneseq
    %v4747 = vshrl.u32 %v4746, 7
    %v4748 = vsub.s32 %v4455, %v4747
    %v4749 = vrot.slane %v4339, %v4748
    %v4750 = vsel %vm4460, %v4749, %v4745
    %v4751 = vlaneseq
    %v4752 = vshrl.u32 %v4751, 7
    %v4753 = vsub.s32 %v4462, %v4752
    %v4754 = vrot.slane %v4342, %v4753
    %v4755 = vsel %vm4467, %v4754, %v4750
    %v4756 = vlaneseq
    %v4757 = vshrl.u32 %v4756, 7
    %v4758 = vsub.s32 %v4469, %v4757
    %v4759 = vrot.slane %v4345, %v4758
    %v4760 = vsel %vm4474, %v4759, %v4755
    %v4761 = vlaneseq
    %v4762 = vshrl.u32 %v4761, 7
    %v4763 = vsub.s32 %v4476, %v4762
    %v4764 = vrot.slane %v4348, %v4763
    %v4765 = vsel %vm4481, %v4764, %v4760
    %v4766 = vlaneseq
    %v4767 = vshrl.u32 %v4766, 7
    %v4768 = vsub.s32 %v4483, %v4767
    %v4769 = vrot.slane %v4351, %v4768
    %v4770 = vsel %vm4488, %v4769, %v4765
    %v4771 = vlaneseq
    %v4772 = vshrl.u32 %v4771, 7
    %v4773 = vsub.s32 %v4380, %v4772
    %v4774 = vrot.slane %v4354, %v4773
    %v4775 = vlaneseq
    %v4776 = vshrl.u32 %v4775, 7
    %v4777 = vsub.s32 %v4385, %v4776
    %v4778 = vrot.slane %v4357, %v4777
    %v4779 = vsel %vm4390, %v4778, %v4774
    %v4780 = vlaneseq
    %v4781 = vshrl.u32 %v4780, 7
    %v4782 = vsub.s32 %v4392, %v4781
    %v4783 = vrot.slane %v4360, %v4782
    %v4784 = vsel %vm4397, %v4783, %v4779
    %v4785 = vlaneseq
    %v4786 = vshrl.u32 %v4785, 7
    %v4787 = vsub.s32 %v4399, %v4786
    %v4788 = vrot.slane %v4363, %v4787
    %v4789 = vsel %vm4404, %v4788, %v4784
    %v4790 = vlaneseq
    %v4791 = vshrl.u32 %v4790, 7
    %v4792 = vsub.s32 %v4406, %v4791
    %v4793 = vrot.slane %v4366, %v4792
    %v4794 = vsel %vm4411, %v4793, %v4789
    %v4795 = vlaneseq
    %v4796 = vshrl.u32 %v4795, 7
    %v4797 = vsub.s32 %v4413, %v4796
    %v4798 = vrot.slane %v4369, %v4797
    %v4799 = vsel %vm4418, %v4798, %v4794
    %v4800 = vlaneseq
    %v4801 = vshrl.u32 %v4800, 7
    %v4802 = vsub.s32 %v4420, %v4801
    %v4803 = vrot.slane %v4372, %v4802
    %v4804 = vsel %vm4425, %v4803, %v4799
    %v4805 = vlaneseq
    %v4806 = vshrl.u32 %v4805, 7
    %v4807 = vsub.s32 %v4427, %v4806
    %v4808 = vrot.slane %v4375, %v4807
    %v4809 = vsel %vm4432, %v4808, %v4804
    %v4810 = vlaneseq
    %v4811 = vshrl.u32 %v4810, 7
    %v4812 = vsub.s32 %v4434, %v4811
    %v4813 = vrot.slane %v4378, %v4812
    %v4814 = vsel %vm4439, %v4813, %v4809
    %vm4815 = vcmask 1041409
    %v4816 = vsel %vm4815, %v4691, %v4489
    %v4817 = vsel %vm4815, %v4770, %v4568
    %v4818 = vsel %vm4815, %v4814, %v4612
    %v4819 = vcombine.low %v4816, %v4817
    %v4821 = vunpack.c.l.s4 1983009808
    %v4822 = vunpack.c.0.s8 %v4821
    %v4823 = vlaneseq
    %v4824 = vshrl.u32 %v4823, 7
    %v4825 = vsub.s32 %v4822, %v4824
    %v4826 = vrot.slane %v4819, %v4825
    %v4828 = vunpack.c.l.s4 1983009808
    %v4829 = vunpack.c.0.s8 %v4828
    %v4830 = vlaneseq
    %v4831 = vshrl.u32 %v4830, 7
    %v4832 = vsub.s32 %v4829, %v4831
    %v4833 = vrot.slane %v4818, %v4832
    %v4834 = vcombine.low %v4826, %v4833
    %v4836 = vadd.f32 %v113, %v4834
    %vm4837 = vcmask 1041408
    %vm4838 = vcmask 1043458
    %vm4839 = vmor %vm4838, %vm4837
    %vm4840 = vcmask 586756
    %vm4841 = vmor %vm4840, %vm4839
    %4842 = vst.msk [vmem:[#allocation2] sm:$0x3f] %vm4841, %v4836
    // Predicated region
    $region26: #{tpu_custom_call.1} parent=1 // pred_check
      %p4843 = pneg %p21
    $region27: #{tpu_custom_call.1} parent=1 // pred_check_branch
      %4845 = sbr.rel (%p4843) target = $region29
    $region28: #{tpu_custom_call.1} parent=1 // pred_region
      %v4846 = vld [vmem:[#allocation2] sm:$0x3f]
      %v4847 = vmul.f32 %v4846, 0.015625
      %v4848 = vld [vmem:[%s1] sm:$0xff]
      %v4849 = vld [vmem:[%s1 + $0x8] sm:$0xff]
      %v4850 = vld [vmem:[%s1 + $0x10] sm:$0xff]
      %v4851 = vld [vmem:[%s1 + $0x18] sm:$0xff]
      %v4852 = vld [vmem:[%s1 + $0x20] sm:$0xff]
      %v4853 = vld [vmem:[%s1 + $0x28] sm:$0xff]
      %v4854 = vld [vmem:[%s1 + $0x30] sm:$0xff]
      %v4855 = vld [vmem:[%s1 + $0x38] sm:$0xff]
      %v4856 = vld [vmem:[%s1 + $0x40] sm:$0xff]
      %v4857 = vld [vmem:[%s1 + $0x48] sm:$0xff]
      %v4858 = vld [vmem:[%s1 + $0x50] sm:$0xff]
      %v4859 = vld [vmem:[%s1 + $0x58] sm:$0xff]
      %v4860 = vld [vmem:[%s1 + $0x60] sm:$0xff]
      %v4861 = vld [vmem:[%s1 + $0x68] sm:$0xff]
      %v4862 = vld [vmem:[%s1 + $0x70] sm:$0xff]
      %v4863 = vld [vmem:[%s1 + $0x78] sm:$0xff]
      %v4864 = vld [vmem:[%s1 + $0x80] sm:$0xff]
      %v4865 = vld [vmem:[%s1 + $0x88] sm:$0xff]
      %v4866 = vld [vmem:[%s1 + $0x90] sm:$0xff]
      %v4867 = vld [vmem:[%s1 + $0x98] sm:$0xff]
      %v4868 = vld [vmem:[%s1 + $0xa0] sm:$0xff]
      %v4869 = vld [vmem:[%s1 + $0xa8] sm:$0xff]
      %v4870 = vld [vmem:[%s1 + $0xb0] sm:$0xff]
      %v4871 = vld [vmem:[%s1 + $0xb8] sm:$0xff]
      %v4872 = vld [vmem:[%s1 + $0xc0] sm:$0xff]
      %v4873 = vld [vmem:[%s1 + $0xc8] sm:$0xff]
      %v4874 = vld [vmem:[%s1 + $0xd0] sm:$0xff]
      %v4875 = vld [vmem:[%s1 + $0xd8] sm:$0xff]
      %v4876 = vld [vmem:[%s1 + $0xe0] sm:$0xff]
      %v4877 = vld [vmem:[%s1 + $0xe8] sm:$0xff]
      %v4878 = vld [vmem:[%s1 + $0xf0] sm:$0xff]
      %v4879 = vld [vmem:[%s1 + $0xf8] sm:$0xff]
      %v4880 = vld [vmem:[%s1 + $0x100] sm:$0xff]
      %v4881 = vld [vmem:[%s1 + $0x108] sm:$0xff]
      %v4882 = vld [vmem:[%s1 + $0x110] sm:$0xff]
      %v4883 = vld [vmem:[%s1 + $0x118] sm:$0xff]
      %v4884 = vld [vmem:[%s1 + $0x120] sm:$0xff]
      %v4885 = vld [vmem:[%s1 + $0x128] sm:$0xff]
      %v4886 = vld [vmem:[%s1 + $0x130] sm:$0xff]
      %v4887 = vld [vmem:[%s1 + $0x138] sm:$0xff]
      %v4888 = vld [vmem:[%s1 + $0x140] sm:$0xff]
      %v4889 = vld [vmem:[%s2] sm:$0x1]
      %v4891 = vlaneseq
      %v4892 = vshrl.u32 %v4891, 7
      %v4893 = vsub.s32 0, %v4892
      %v4894 = vrot.slane %v4889, %v4893
      %v4897 = vcombine.high %v4847, %v4847
      %v4899 = vunpack.c.l.s4 1983009808
      %v4900 = vunpack.c.0.s8 %v4899
      %v4901 = vlaneseq
      %v4902 = vshrl.u32 %v4901, 7
      %v4903 = vsub.s32 %v4900, %v4902
      %v4904 = vrot.slane %v4847, %v4903
      %v4906 = vunpack.c.l.s4 1983009808
      %v4907 = vunpack.c.0.s8 %v4906
      %v4908 = vlaneseq
      %v4909 = vshrl.u32 %v4908, 7
      %v4910 = vsub.s32 %v4907, %v4909
      %v4911 = vrot.slane %v4897, %v4910
      %v4912 = vcombine.high %v4904, %v4904
      %vm4915 = vcmask 588800
      %v4916 = vsel %vm4915, %v4911, 0
      %4918 = vmatprep.subr.mxu0 0.0
      %4919 = vmatpush1.msra.mxu0 %v4863
      %4920 = vmatprep.subr.mxu0 0.0
      %4921 = vmatpush1.msra.mxu0 %v4862
      %4922 = vmatprep.subr.mxu0 0.0
      %4923 = vmatpush1.msra.mxu0 %v4861
      %4924 = vmatprep.subr.mxu0 0.0
      %4925 = vmatpush1.msra.mxu0 %v4860
      %4926 = vmatprep.subr.mxu0 0.0
      %4927 = vmatpush1.msra.mxu0 %v4859
      %4928 = vmatprep.subr.mxu0 0.0
      %4929 = vmatpush1.msra.mxu0 %v4858
      %4930 = vmatprep.subr.mxu0 0.0
      %4931 = vmatpush1.msra.mxu0 %v4857
      %4932 = vmatprep.subr.mxu0 0.0
      %4933 = vmatpush1.msra.mxu0 %v4856
      %4934 = vmatprep.subr.mxu0 0.0
      %4935 = vmatpush1.msra.mxu0 %v4855
      %4936 = vmatprep.subr.mxu0 0.0
      %4937 = vmatpush1.msra.mxu0 %v4854
      %4938 = vmatprep.subr.mxu0 0.0
      %4939 = vmatpush1.msra.mxu0 %v4853
      %4940 = vmatprep.subr.mxu0 0.0
      %4941 = vmatpush1.msra.mxu0 %v4852
      %4942 = vmatprep.subr.mxu0 0.0
      %4943 = vmatpush1.msra.mxu0 %v4851
      %4944 = vmatprep.subr.mxu0 0.0
      %4945 = vmatpush1.msra.mxu0 %v4850
      %4946 = vmatprep.subr.mxu0 0.0
      %4947 = vmatpush1.msra.mxu0 %v4849
      %4948 = vmatprep.subr.mxu0 0.0
      %4949 = vmatpush1.msra.mxu0 %v4848
      %4950 = vmatprep.subr.mxu0 0.0
      %4951 = vmatpush2.msra.mxu0 %v4879
      %4952 = vmatprep.subr.mxu0 0.0
      %4953 = vmatpush2.msra.mxu0 %v4878
      %4954 = vmatprep.subr.mxu0 0.0
      %4955 = vmatpush2.msra.mxu0 %v4877
      %4956 = vmatprep.subr.mxu0 0.0
      %4957 = vmatpush2.msra.mxu0 %v4876
      %4958 = vmatprep.subr.mxu0 0.0
      %4959 = vmatpush2.msra.mxu0 %v4875
      %4960 = vmatprep.subr.mxu0 0.0
      %4961 = vmatpush2.msra.mxu0 %v4874
      %4962 = vmatprep.subr.mxu0 0.0
      %4963 = vmatpush2.msra.mxu0 %v4873
      %4964 = vmatprep.subr.mxu0 0.0
      %4965 = vmatpush2.msra.mxu0 %v4872
      %4966 = vmatprep.subr.mxu0 0.0
      %4967 = vmatpush2.msra.mxu0 %v4871
      %4968 = vmatprep.subr.mxu0 0.0
      %4969 = vmatpush2.msra.mxu0 %v4870
      %4970 = vmatprep.subr.mxu0 0.0
      %4971 = vmatpush2.msra.mxu0 %v4869
      %4972 = vmatprep.subr.mxu0 0.0
      %4973 = vmatpush2.msra.mxu0 %v4868
      %4974 = vmatprep.subr.mxu0 0.0
      %4975 = vmatpush2.msra.mxu0 %v4867
      %4976 = vmatprep.subr.mxu0 0.0
      %4977 = vmatpush2.msra.mxu0 %v4866
      %4978 = vmatprep.subr.mxu0 0.0
      %4979 = vmatpush2.msra.mxu0 %v4865
      %4980 = vmatprep.subr.mxu0 0.0
      %4981 = vmatpush2.msra.mxu0 %v4864
      %4982 = vmatprep.mubr.f32.mxu0 %v4912
      %4983 = vmatmul.mubr.f32.gmra.mxu0 %v4904
      %v4984 = vpop.f32.mrf.mxu0
      %v4985 = vadd.f32 %v4894, %v4984
      %v4986 = vpop.f32.mrf.mxu0
      %4987 = vdwg.mxu0
      %4988 = vmatprep.subr.mxu0 0.0
      %4989 = vmatpush1.msra.mxu0 0.0
      %4990 = vmatprep.subr.mxu0 0.0
      %4991 = vmatpush1.msra.mxu0 0.0
      %4992 = vmatprep.subr.mxu0 0.0
      %4993 = vmatpush1.msra.mxu0 0.0
      %4994 = vmatprep.subr.mxu0 0.0
      %4995 = vmatpush1.msra.mxu0 0.0
      %4996 = vmatprep.subr.mxu0 0.0
      %4997 = vmatpush1.msra.mxu0 0.0
      %4998 = vmatprep.subr.mxu0 0.0
      %4999 = vmatpush1.msra.mxu0 0.0
      %5000 = vmatprep.subr.mxu0 0.0
      %5001 = vmatpush1.msra.mxu0 0.0
      %5002 = vmatprep.subr.mxu0 0.0
      %5003 = vmatpush1.msra.mxu0 %v4888
      %5004 = vmatprep.subr.mxu0 0.0
      %5005 = vmatpush1.msra.mxu0 %v4887
      %5006 = vmatprep.subr.mxu0 0.0
      %5007 = vmatpush1.msra.mxu0 %v4886
      %5008 = vmatprep.subr.mxu0 0.0
      %5009 = vmatpush1.msra.mxu0 %v4885
      %5010 = vmatprep.subr.mxu0 0.0
      %5011 = vmatpush1.msra.mxu0 %v4884
      %5012 = vmatprep.subr.mxu0 0.0
      %5013 = vmatpush1.msra.mxu0 %v4883
      %5014 = vmatprep.subr.mxu0 0.0
      %5015 = vmatpush1.msra.mxu0 %v4882
      %5016 = vmatprep.subr.mxu0 0.0
      %5017 = vmatpush1.msra.mxu0 %v4881
      %5018 = vmatprep.subr.mxu0 0.0
      %5019 = vmatpush1.msra.mxu0 %v4880
      %5020 = vmatprep.subr.mxu0 0.0
      %5021 = vmatpush2.msra.mxu0 0.0
      %5022 = vmatprep.subr.mxu0 0.0
      %5023 = vmatpush2.msra.mxu0 0.0
      %5024 = vmatprep.subr.mxu0 0.0
      %5025 = vmatpush2.msra.mxu0 0.0
      %5026 = vmatprep.subr.mxu0 0.0
      %5027 = vmatpush2.msra.mxu0 0.0
      %5028 = vmatprep.subr.mxu0 0.0
      %5029 = vmatpush2.msra.mxu0 0.0
      %5030 = vmatprep.subr.mxu0 0.0
      %5031 = vmatpush2.msra.mxu0 0.0
      %5032 = vmatprep.subr.mxu0 0.0
      %5033 = vmatpush2.msra.mxu0 0.0
      %5034 = vmatprep.subr.mxu0 0.0
      %5035 = vmatpush2.msra.mxu0 0.0
      %5036 = vmatprep.subr.mxu0 0.0
      %5037 = vmatpush2.msra.mxu0 0.0
      %5038 = vmatprep.subr.mxu0 0.0
      %5039 = vmatpush2.msra.mxu0 0.0
      %5040 = vmatprep.subr.mxu0 0.0
      %5041 = vmatpush2.msra.mxu0 0.0
      %5042 = vmatprep.subr.mxu0 0.0
      %5043 = vmatpush2.msra.mxu0 0.0
      %5044 = vmatprep.subr.mxu0 0.0
      %5045 = vmatpush2.msra.mxu0 0.0
      %5046 = vmatprep.subr.mxu0 0.0
      %5047 = vmatpush2.msra.mxu0 0.0
      %5048 = vmatprep.subr.mxu0 0.0
      %5049 = vmatpush2.msra.mxu0 0.0
      %5050 = vmatprep.subr.mxu0 0.0
      %5051 = vmatpush2.msra.mxu0 0.0
      %5052 = vmatprep.mubr.f32.mxu0 0.0
      %5053 = vmatmul.mubr.f32.gmra.mxu0 %v4916
      %v5054 = vpop.f32.mrf.mxu0
      %v5055 = vadd.f32 %v4985, %v5054
      %v5056 = vpop.f32.mrf.mxu0
      %5057 = vdwg.mxu0
      %v5058 = vmax.f32 %v5055, 0.0
      %v5059 = vld [vmem:[%s3] sm:$0xff]
      %v5060 = vld [vmem:[%s3 + $0x8] sm:$0xff]
      %v5061 = vld [vmem:[%s3 + $0x10] sm:$0xff]
      %v5062 = vld [vmem:[%s3 + $0x18] sm:$0xff]
      %v5063 = vld [vmem:[%s3 + $0x20] sm:$0xff]
      %v5064 = vld [vmem:[%s3 + $0x28] sm:$0xff]
      %v5065 = vld [vmem:[%s3 + $0x30] sm:$0xff]
      %v5066 = vld [vmem:[%s3 + $0x38] sm:$0xff]
      %v5067 = vld [vmem:[%s3 + $0x40] sm:$0xff]
      %v5068 = vld [vmem:[%s3 + $0x48] sm:$0xff]
      %v5069 = vld [vmem:[%s3 + $0x50] sm:$0xff]
      %v5070 = vld [vmem:[%s3 + $0x58] sm:$0xff]
      %v5071 = vld [vmem:[%s3 + $0x60] sm:$0xff]
      %v5072 = vld [vmem:[%s3 + $0x68] sm:$0xff]
      %v5073 = vld [vmem:[%s3 + $0x70] sm:$0xff]
      %v5074 = vld [vmem:[%s3 + $0x78] sm:$0xff]
      %v5075 = vld [vmem:[%s3 + $0x80] sm:$0xff]
      %v5076 = vld [vmem:[%s3 + $0x88] sm:$0xff]
      %v5077 = vld [vmem:[%s3 + $0x90] sm:$0xff]
      %v5078 = vld [vmem:[%s3 + $0x98] sm:$0xff]
      %v5079 = vld [vmem:[%s3 + $0xa0] sm:$0xff]
      %v5080 = vld [vmem:[%s3 + $0xa8] sm:$0xff]
      %v5081 = vld [vmem:[%s3 + $0xb0] sm:$0xff]
      %v5082 = vld [vmem:[%s3 + $0xb8] sm:$0xff]
      %v5083 = vld [vmem:[%s3 + $0xc0] sm:$0xff]
      %v5084 = vld [vmem:[%s3 + $0xc8] sm:$0xff]
      %v5085 = vld [vmem:[%s3 + $0xd0] sm:$0xff]
      %v5086 = vld [vmem:[%s3 + $0xd8] sm:$0xff]
      %v5087 = vld [vmem:[%s3 + $0xe0] sm:$0xff]
      %v5088 = vld [vmem:[%s3 + $0xe8] sm:$0xff]
      %v5089 = vld [vmem:[%s3 + $0xf0] sm:$0xff]
      %v5090 = vld [vmem:[%s3 + $0xf8] sm:$0xff]
      %v5091 = vld [vmem:[%s3 + $0x100] sm:$0xff]
      %v5092 = vld [vmem:[%s3 + $0x108] sm:$0xff]
      %v5093 = vld [vmem:[%s3 + $0x110] sm:$0xff]
      %v5094 = vld [vmem:[%s3 + $0x118] sm:$0xff]
      %v5095 = vld [vmem:[%s3 + $0x120] sm:$0xff]
      %v5096 = vld [vmem:[%s3 + $0x128] sm:$0xff]
      %v5097 = vld [vmem:[%s3 + $0x130] sm:$0xff]
      %v5098 = vld [vmem:[%s3 + $0x138] sm:$0xff]
      %v5099 = vld [vmem:[%s3 + $0x140] sm:$0xff]
      %v5100 = vld [vmem:[%s3 + $0x148] sm:$0xff]
      %v5101 = vld [vmem:[%s3 + $0x150] sm:$0xff]
      %v5102 = vld [vmem:[%s3 + $0x158] sm:$0xff]
      %v5103 = vld [vmem:[%s3 + $0x160] sm:$0xff]
      %v5104 = vld [vmem:[%s3 + $0x168] sm:$0xff]
      %v5105 = vld [vmem:[%s3 + $0x170] sm:$0xff]
      %v5106 = vld [vmem:[%s3 + $0x178] sm:$0xff]
      %v5107 = vld [vmem:[%s4] sm:$0x7]
      %v5109 = vlaneseq
      %v5110 = vshrl.u32 %v5109, 7
      %v5111 = vsub.s32 0, %v5110
      %v5112 = vrot.slane %v5107, %v5111
      %v5113 = vlaneseq
      %v5114 = vshrl.u32 %v5113, 7
      %v5115 = vsub.s32 1, %v5114
      %v5116 = vrot.slane %v5107, %v5115
      %v5117 = vlaneseq
      %v5118 = vshrl.u32 %v5117, 7
      %v5119 = vsub.s32 2, %v5118
      %v5120 = vrot.slane %v5107, %v5119
      %5124 = vmatprep.subr.mxu0 %v5105
      %5125 = vmatpush1.msra.mxu0 %v5104
      %5126 = vmatprep.subr.mxu0 %v5102
      %5127 = vmatpush1.msra.mxu0 %v5101
      %5128 = vmatprep.subr.mxu0 %v5099
      %5129 = vmatpush1.msra.mxu0 %v5098
      %5130 = vmatprep.subr.mxu0 %v5096
      %5131 = vmatpush1.msra.mxu0 %v5095
      %5132 = vmatprep.subr.mxu0 %v5093
      %5133 = vmatpush1.msra.mxu0 %v5092
      %5134 = vmatprep.subr.mxu0 %v5090
      %5135 = vmatpush1.msra.mxu0 %v5089
      %5136 = vmatprep.subr.mxu0 %v5087
      %5137 = vmatpush1.msra.mxu0 %v5086
      %5138 = vmatprep.subr.mxu0 %v5084
      %5139 = vmatpush1.msra.mxu0 %v5083
      %5140 = vmatprep.subr.mxu0 %v5081
      %5141 = vmatpush1.msra.mxu0 %v5080
      %5142 = vmatprep.subr.mxu0 %v5078
      %5143 = vmatpush1.msra.mxu0 %v5077
      %5144 = vmatprep.subr.mxu0 %v5075
      %5145 = vmatpush1.msra.mxu0 %v5074
      %5146 = vmatprep.subr.mxu0 %v5072
      %5147 = vmatpush1.msra.mxu0 %v5071
      %5148 = vmatprep.subr.mxu0 %v5069
      %5149 = vmatpush1.msra.mxu0 %v5068
      %5150 = vmatprep.subr.mxu0 %v5066
      %5151 = vmatpush1.msra.mxu0 %v5065
      %5152 = vmatprep.subr.mxu0 %v5063
      %5153 = vmatpush1.msra.mxu0 %v5062
      %5154 = vmatprep.subr.mxu0 %v5060
      %5155 = vmatpush1.msra.mxu0 %v5059
      %5156 = vmatprep.subr.mxu0 0.0
      %5157 = vmatpush2.msra.mxu0 0.0
      %5158 = vmatprep.subr.mxu0 0.0
      %5159 = vmatpush2.msra.mxu0 0.0
      %5160 = vmatprep.subr.mxu0 0.0
      %5161 = vmatpush2.msra.mxu0 0.0
      %5162 = vmatprep.subr.mxu0 0.0
      %5163 = vmatpush2.msra.mxu0 0.0
      %5164 = vmatprep.subr.mxu0 0.0
      %5165 = vmatpush2.msra.mxu0 0.0
      %5166 = vmatprep.subr.mxu0 0.0
      %5167 = vmatpush2.msra.mxu0 0.0
      %5168 = vmatprep.subr.mxu0 0.0
      %5169 = vmatpush2.msra.mxu0 0.0
      %5170 = vmatprep.subr.mxu0 0.0
      %5171 = vmatpush2.msra.mxu0 0.0
      %5172 = vmatprep.subr.mxu0 0.0
      %5173 = vmatpush2.msra.mxu0 0.0
      %5174 = vmatprep.subr.mxu0 0.0
      %5175 = vmatpush2.msra.mxu0 0.0
      %5176 = vmatprep.subr.mxu0 0.0
      %5177 = vmatpush2.msra.mxu0 0.0
      %5178 = vmatprep.subr.mxu0 0.0
      %5179 = vmatpush2.msra.mxu0 0.0
      %5180 = vmatprep.subr.mxu0 0.0
      %5181 = vmatpush2.msra.mxu0 0.0
      %5182 = vmatprep.subr.mxu0 0.0
      %5183 = vmatpush2.msra.mxu0 0.0
      %5184 = vmatprep.subr.mxu0 0.0
      %5185 = vmatpush2.msra.mxu0 0.0
      %5186 = vmatprep.subr.mxu0 0.0
      %5187 = vmatpush2.msra.mxu0 0.0
      %5188 = vmatprep.mubr.f32.mxu0 0.0
      %5189 = vmatmul.mubr.f32.gmra.mxu0 %v5058
      %v5190 = vpop.f32.mrf.mxu0
      %v5191 = vadd.f32 %v5112, %v5190
      %v5192 = vpop.f32.mrf.mxu0
      %v5193 = vadd.f32 %v5116, %v5192
      %5194 = vdwg.mxu0
      %5195 = vmatprep.subr.mxu0 0.0
      %5196 = vmatpush1.msra.mxu0 %v5106
      %5197 = vmatprep.subr.mxu0 0.0
      %5198 = vmatpush1.msra.mxu0 %v5103
      %5199 = vmatprep.subr.mxu0 0.0
      %5200 = vmatpush1.msra.mxu0 %v5100
      %5201 = vmatprep.subr.mxu0 0.0
      %5202 = vmatpush1.msra.mxu0 %v5097
      %5203 = vmatprep.subr.mxu0 0.0
      %5204 = vmatpush1.msra.mxu0 %v5094
      %5205 = vmatprep.subr.mxu0 0.0
      %5206 = vmatpush1.msra.mxu0 %v5091
      %5207 = vmatprep.subr.mxu0 0.0
      %5208 = vmatpush1.msra.mxu0 %v5088
      %5209 = vmatprep.subr.mxu0 0.0
      %5210 = vmatpush1.msra.mxu0 %v5085
      %5211 = vmatprep.subr.mxu0 0.0
      %5212 = vmatpush1.msra.mxu0 %v5082
      %5213 = vmatprep.subr.mxu0 0.0
      %5214 = vmatpush1.msra.mxu0 %v5079
      %5215 = vmatprep.subr.mxu0 0.0
      %5216 = vmatpush1.msra.mxu0 %v5076
      %5217 = vmatprep.subr.mxu0 0.0
      %5218 = vmatpush1.msra.mxu0 %v5073
      %5219 = vmatprep.subr.mxu0 0.0
      %5220 = vmatpush1.msra.mxu0 %v5070
      %5221 = vmatprep.subr.mxu0 0.0
      %5222 = vmatpush1.msra.mxu0 %v5067
      %5223 = vmatprep.subr.mxu0 0.0
      %5224 = vmatpush1.msra.mxu0 %v5064
      %5225 = vmatprep.subr.mxu0 0.0
      %5226 = vmatpush1.msra.mxu0 %v5061
      %5227 = vmatprep.subr.mxu0 0.0
      %5228 = vmatpush2.msra.mxu0 0.0
      %5229 = vmatprep.subr.mxu0 0.0
      %5230 = vmatpush2.msra.mxu0 0.0
      %5231 = vmatprep.subr.mxu0 0.0
      %5232 = vmatpush2.msra.mxu0 0.0
      %5233 = vmatprep.subr.mxu0 0.0
      %5234 = vmatpush2.msra.mxu0 0.0
      %5235 = vmatprep.subr.mxu0 0.0
      %5236 = vmatpush2.msra.mxu0 0.0
      %5237 = vmatprep.subr.mxu0 0.0
      %5238 = vmatpush2.msra.mxu0 0.0
      %5239 = vmatprep.subr.mxu0 0.0
      %5240 = vmatpush2.msra.mxu0 0.0
      %5241 = vmatprep.subr.mxu0 0.0
      %5242 = vmatpush2.msra.mxu0 0.0
      %5243 = vmatprep.subr.mxu0 0.0
      %5244 = vmatpush2.msra.mxu0 0.0
      %5245 = vmatprep.subr.mxu0 0.0
      %5246 = vmatpush2.msra.mxu0 0.0
      %5247 = vmatprep.subr.mxu0 0.0
      %5248 = vmatpush2.msra.mxu0 0.0
      %5249 = vmatprep.subr.mxu0 0.0
      %5250 = vmatpush2.msra.mxu0 0.0
      %5251 = vmatprep.subr.mxu0 0.0
      %5252 = vmatpush2.msra.mxu0 0.0
      %5253 = vmatprep.subr.mxu0 0.0
      %5254 = vmatpush2.msra.mxu0 0.0
      %5255 = vmatprep.subr.mxu0 0.0
      %5256 = vmatpush2.msra.mxu0 0.0
      %5257 = vmatprep.subr.mxu0 0.0
      %5258 = vmatpush2.msra.mxu0 0.0
      %5259 = vmatprep.mubr.f32.mxu0 0.0
      %5260 = vmatmul.mubr.f32.gmra.mxu0 %v5058
      %v5261 = vpop.f32.mrf.mxu0
      %v5262 = vadd.f32 %v5120, %v5261
      %v5263 = vpop.f32.mrf.mxu0
      %5264 = vdwg.mxu0
      %v5265 = vxor.u32 %v5191, 2147483648
      %v5266 = vxor.u32 %v5193, 2147483648
      %v5267 = vxor.u32 %v5262, 2147483648
      %v5268 = vmul.f32 %v5265, 1.442695
      %v5269 = vpow.pop %v5268
      %v5270 = vmul.f32 %v5266, 1.442695
      %v5271 = vpow.pop %v5270
      %v5272 = vmul.f32 %v5267, 1.442695
      %v5273 = vpow.pop %v5272
      %v5274 = vadd.f32 %v5269, 1.0
      %v5275 = vadd.f32 %v5271, 1.0
      %v5276 = vadd.f32 %v5273, 1.0
      %v5277 = vrcp.pop %v5274
      %v5278 = vmul.f32 1.0, %v5277
      %v5279 = vrcp.pop %v5275
      %v5280 = vmul.f32 1.0, %v5279
      %v5281 = vrcp.pop %v5276
      %v5282 = vmul.f32 1.0, %v5281
      %v5286 = vcombine.low %v5278, %v5280
      %v5288 = vunpack.c.l.s4 1983009808
      %v5289 = vunpack.c.0.s8 %v5288
      %v5290 = vlaneseq
      %v5291 = vshrl.u32 %v5290, 7
      %v5292 = vsub.s32 %v5289, %v5291
      %v5293 = vrot.slane %v5286, %v5292
      %v5295 = vunpack.c.l.s4 1983009808
      %v5296 = vunpack.c.0.s8 %v5295
      %v5297 = vlaneseq
      %v5298 = vshrl.u32 %v5297, 7
      %v5299 = vsub.s32 %v5296, %v5298
      %v5300 = vrot.slane %v5282, %v5299
      %v5301 = vcombine.low %v5293, %v5300
      %5303 = vst.msk [vmem:[#allocation3] sm:$0x3f] %vm4841, %v5301
    $region29: #{tpu_custom_call.1} parent=1 // pred_fallthru
      _
    // Predicated region
    $region30: #{tpu_custom_call.1} parent=1 // pred_check
      _
    $region31: #{tpu_custom_call.1} parent=1 // pred_check_branch
      %5305 = sbr.rel (0) target = $region33
    $region32: #{tpu_custom_call.1} parent=1 // pred_region
      %s5307 = ssub.s32 96, 96
      %5308 = vsyncadd [#allocation4], %s5307
      %s5310 = sshll.u32 [#allocation3], 4
      %s5311 = int_to_ptr.vmem [resolvable:$true] %s5310
      %5313 = dma.vmem_to_hbm [thread:$0]  %s5311, 96, %s5, [#allocation4]
    $region33: #{tpu_custom_call.1} parent=1 // pred_fallthru
      _
    // Predicated region
    $region34: #{tpu_custom_call.1} parent=1 // pred_check
      _
    $region35: #{tpu_custom_call.1} parent=1 // pred_check_branch
      %5315 = sbr.rel (0) target = $region37
    $region36: #{tpu_custom_call.1} parent=1 // pred_region
      %5316 = dma.done [#allocation4], 96
    $region37: #{tpu_custom_call.1} parent=1 // pred_fallthru
      _
    %5317 = vsyncpa [#allocation4], 1

</llo_original>
